<compile_context>
chip_gen: v5e
topology: v5e:2x2
jax: 0.10.0
libtpu: 0.0.40
codegen_flags: <defaults>
</compile_context>

<pallas_src>
import functools

import jax
import jax.numpy as jnp
from jax.experimental import pallas as pl
from jax.experimental.pallas import tpu as pltpu


# ---------------------------------------------------------------------------
# Fused Pallas kernel: whole forward pass in one invocation, 5 inputs, 2 outputs.
# ---------------------------------------------------------------------------
def _vae_fused_kernel(x_ref, eps_ref, w_ref, w3_ref, vec_ref,
                      z_out_ref, dec_out_ref, *, latent, wlay, vlay):
    # Static slab slices (row offsets are multiples of 16 for bf16 tiles).
    def w(name):
        r0, nr, nc = wlay[name]
        return w_ref[r0:r0 + nr, 0:nc]

    # Static vector slices (lane offsets are multiples of 128).
    def v(name):
        c0, nc = vlay[name]
        return vec_ref[:, c0:c0 + nc]

    def mm(x, wmat):
        # bf16 x bf16 on the MXU, f32 accumulation.
        return jnp.dot(x.astype(jnp.bfloat16), wmat,
                       preferred_element_type=jnp.float32)

    def leaky(y):
        return jnp.where(y >= 0.0, y, 0.01 * y)

    def bn_leaky(y, gname, bname):
        # Training-mode BatchNorm1d: biased variance over the batch, eps=1e-5.
        mean = jnp.mean(y, axis=0, keepdims=True)
        var = jnp.mean((y - mean) ** 2, axis=0, keepdims=True)
        y = (y - mean) * jax.lax.rsqrt(var + 1e-5) * v(gname) + v(bname)
        return leaky(y)

    # --- encoder: 4 x [conv-as-matmul (bias cancelled by BN) + BN + LeakyReLU]
    h = x_ref[...]                                     # (B, 608) bf16 (zero padded)
    h = bn_leaky(mm(h, w("enc_w0")), "enc_g0", "enc_bt0")
    h = bn_leaky(mm(h, w("enc_w1")), "enc_g1", "enc_bt1")
    h = bn_leaky(mm(h, w("enc_w2")), "enc_g2", "enc_bt2")
    h = bn_leaky(mm(h, w("enc_w3")), "enc_g3", "enc_bt3")
    # Flatten is a no-op in (B, C) layout with L == 1.

    # --- fused z heads (single matmul) + reparameterization ---
    zz = mm(h, w("z_w")) + v("z_b")                    # (B, 2*latent) = [mu | logvar]
    mu = zz[:, :latent]
    logvar = zz[:, latent:]
    encoded = mu + eps_ref[...] * jnp.exp(0.5 * logvar)

    # Single lane-dense output slab: [mu | logvar | encoded | zeros] -> (B, 128).
    parts = [zz, encoded]
    pad_w = z_out_ref.shape[1] - 3 * latent
    if pad_w:
        parts.append(jnp.zeros((zz.shape[0], pad_w), jnp.float32))
    z_out_ref[...] = jnp.concatenate(parts, axis=-1)

    # --- decoder ---
    d = leaky(mm(encoded, w("dec_lin_w")) + v("dec_lin_b"))   # Linear(latent,64)+LeakyReLU
    # Reshape(-1, 64, 1) is a no-op in (B, C) layout.
    d = bn_leaky(mm(d, w("dec_w0")), "dec_g0", "dec_bt0")
    d = bn_leaky(mm(d, w("dec_w1")), "dec_g1", "dec_bt1")
    d = bn_leaky(mm(d, w("dec_w2")), "dec_g2", "dec_bt2")
    # Final deconv + Tanh; weight/bias lane-padded 600 -> 640 with zeros,
    # so the output store is fully lane-dense (wrapper slices back to 600).
    dec_out_ref[...] = jnp.tanh(mm(d, w3_ref[...]) + v("db3"))


# ---------------------------------------------------------------------------
# Parameter construction + packing (deterministic; shapes from PyTorch __init__)
# ---------------------------------------------------------------------------
def make_params_and_layout(key, input_dim, latent):
    keys = iter(jax.random.split(key, 64))

    def rnd(shape, scale=0.05):
        return (scale * jax.random.normal(next(keys), shape)).astype(jnp.float32)

    # ---- raw matrices (channels-last (in, out)) ----
    mats = {}
    enc_dims = [(input_dim, 512), (512, 256), (256, 128), (128, 64)]
    for li, (cin, cout) in enumerate(enc_dims):
        w_full = rnd((cout, cin, 3))                         # Conv1d weight (out,in,3)
        mats[f"enc_w{li}"] = jnp.transpose(w_full[:, :, 1])  # middle tap -> (in,out)
        # Conv bias omitted: cancelled exactly by the following BatchNorm.
    zm_w = jnp.transpose(rnd((latent, 64)))                  # Linear weight (out,in)->(in,out)
    zv_w = jnp.transpose(rnd((latent, 64)))
    mats["z_w"] = jnp.concatenate([zm_w, zv_w], axis=1)      # (64, 2*latent)
    mats["dec_lin_w"] = jnp.transpose(rnd((64, latent)))     # (latent, 64)
    dec_dims = [(64, 128), (128, 256), (256, 512), (512, 600)]
    for li, (cin, cout) in enumerate(dec_dims):
        w_full = rnd((cin, cout, 3))                         # ConvTranspose1d (in,out,3)
        mats[f"dec_w{li}"] = w_full[:, :, 1]                 # middle tap -> (in,out)

    # ---- raw per-channel vectors ----
    vecs = {}
    for li, (_, cout) in enumerate(enc_dims):
        vecs[f"enc_g{li}"] = 1.0 + rnd((1, cout), 0.01)      # BN gamma
        vecs[f"enc_bt{li}"] = rnd((1, cout), 0.01)           # BN beta
    vecs["z_b"] = jnp.concatenate([rnd((1, latent)), rnd((1, latent))], axis=1)
    vecs["dec_lin_b"] = rnd((1, 64))
    for li in range(3):
        cout = dec_dims[li][1]
        vecs[f"dec_g{li}"] = 1.0 + rnd((1, cout), 0.01)
        vecs[f"dec_bt{li}"] = rnd((1, cout), 0.01)
    vecs["db3"] = rnd((1, 600))                              # Tanh head keeps its bias

    # ---- pack all weights except dec_w3 into ONE (R, 512) bf16 slab ----
    SLAB_W = 512
    slab_names = ["enc_w0", "enc_w1", "enc_w2", "enc_w3",
                  "z_w", "dec_lin_w", "dec_w0", "dec_w1", "dec_w2"]
    w_layout, blocks, row_off = {}, [], 0
    for name in slab_names:
        m = mats[name]
        r, c = m.shape
        r_pad = -(-r // 16) * 16                             # bf16 sublane-tile aligned
        block = jnp.zeros((r_pad, SLAB_W), jnp.float32).at[:r, :c].set(m)
        blocks.append(block)
        # enc_w0's padded rows are matched by zero-padding x's lanes in the
        # wrapper, so the kernel always takes a tile-aligned slice.
        w_layout[name] = (row_off, r_pad if name == "enc_w0" else r, c)
        row_off += r_pad
    w_slab = jnp.concatenate(blocks, axis=0).astype(jnp.bfloat16)

    # Final deconv weight, lane-padded 600 -> 640 so the decoder output is lane-dense.
    out_pad = -(-600 // 128) * 128                           # 640
    w3 = jnp.zeros((512, out_pad), jnp.float32).at[:, :600].set(mats["dec_w3"])
    w3 = w3.astype(jnp.bfloat16)

    # ---- pack all per-channel vectors into ONE (1, V) f32 operand ----
    vec_order = []
    for li in range(4):
        vec_order += [f"enc_g{li}", f"enc_bt{li}"]
    vec_order += ["z_b", "dec_lin_b"]
    for li in range(3):
        vec_order += [f"dec_g{li}", f"dec_bt{li}"]
    vec_order += ["db3"]

    v_layout, chunks, off = {}, [], 0
    for name in vec_order:
        vv = vecs[name]
        c = vv.shape[1]
        c_pad = out_pad if name == "db3" else -(-c // 128) * 128
        chunk = jnp.zeros((1, c_pad), jnp.float32).at[:, :c].set(vv)
        chunks.append(chunk)
        # db3 keeps its padded width (zeros) so the final add/store is 640 wide.
        v_layout[name] = (off, c_pad if name == "db3" else c)
        off += c_pad
    vec = jnp.concatenate(chunks, axis=1)

    params = {"w_slab": w_slab, "w_dec3": w3, "vec": vec}
    layout = {"w": w_layout, "v": v_layout, "latent": latent,
              "out_dim": 600, "out_pad": out_pad,
              "x_cols": w_layout["enc_w0"][1]}
    return params, layout


# ---------------------------------------------------------------------------
# Full forward pass: one pallas_call, no grid, everything resident in VMEM.
# ---------------------------------------------------------------------------
def vae_forward(x_ncl, eps, params, *, layout):
    """x_ncl: (B, input_dim, 1) NCL as in PyTorch.  Returns the same 4-tuple."""
    B = x_ncl.shape[0]
    latent = layout["latent"]
    out_dim = layout["out_dim"]
    out_pad = layout["out_pad"]
    z_pad = max(128, -(-3 * latent // 128) * 128)

    x2d = x_ncl.reshape(B, -1).astype(jnp.bfloat16)          # (B, input_dim), L == 1
    x_cols = layout["x_cols"]
    if x_cols != x2d.shape[1]:                               # match padded contraction
        x2d = jnp.pad(x2d, ((0, 0), (0, x_cols - x2d.shape[1])))

    kern = functools.partial(_vae_fused_kernel, latent=latent,
                             wlay=layout["w"], vlay=layout["v"])

    vmem = lambda: pl.BlockSpec(memory_space=pltpu.MemorySpace.VMEM)
    z_out, dec_out = pl.pallas_call(
        kern,
        out_shape=(
            jax.ShapeDtypeStruct((B, z_pad), jnp.float32),    # [mu|logvar|encoded|0]
            jax.ShapeDtypeStruct((B, out_pad), jnp.float32),  # decoded, lane-padded
        ),
        in_specs=[vmem() for _ in range(5)],
        out_specs=(vmem(), vmem()),
        compiler_params=pltpu.CompilerParams(
            vmem_limit_bytes=12 * 1024 * 1024,   # ~3-5 MB actual footprint, single-buffered
        ),
    )(x2d, eps.astype(jnp.float32), params["w_slab"], params["w_dec3"],
      params["vec"])

    z_mean = z_out[:, :latent]
    z_log_var = z_out[:, latent:2 * latent]
    encoded = z_out[:, 2 * latent:3 * latent]
    decoded = dec_out[:, :out_dim].reshape(B, out_dim, 1)    # back to NCL
    return encoded, z_mean, z_log_var, decoded


# ---------------------------------------------------------------------------
if __name__ == "__main__":
    INPUT_DIM = 600   # fixed by the architecture (encoding_fn / final deconv -> 600)
    LATENT = 16
    BATCH = 4
    SEQ = 1           # the only length compatible with Flatten -> Linear(64, latent)

    root = jax.random.PRNGKey(0)
    k_params, k_x, k_eps = jax.random.split(root, 3)

    params, layout = make_params_and_layout(k_params, INPUT_DIM, LATENT)
    x = jax.random.normal(k_x, (BATCH, INPUT_DIM, SEQ), dtype=jnp.float32)
    eps = jax.random.normal(k_eps, (BATCH, LATENT), dtype=jnp.float32)  # torch.randn

    fwd = jax.jit(functools.partial(vae_forward, layout=layout))
    encoded, z_mean, z_log_var, decoded = fwd(x, eps, params)
    jax.block_until_ready((encoded, z_mean, z_log_var, decoded))

    assert encoded.shape == (BATCH, LATENT)
    assert z_mean.shape == (BATCH, LATENT)
    assert z_log_var.shape == (BATCH, LATENT)
    assert decoded.shape == (BATCH, 600, 1)
    assert bool(jnp.all(jnp.isfinite(decoded)))
    print("KERNEL_OK")
</pallas_src>

<mosaic_0001>
module attributes {stable_mosaic.version = 11 : i64} {
  func.func @_vae_fused_kernel(%arg0: memref<4x608xbf16, #tpu.memory_space<vmem>>, %arg1: memref<4x16xf32, #tpu.memory_space<vmem>>, %arg2: memref<2032x512xbf16, #tpu.memory_space<vmem>>, %arg3: memref<512x640xbf16, #tpu.memory_space<vmem>>, %arg4: memref<1x4736xf32, #tpu.memory_space<vmem>>, %arg5: memref<4x128xf32, #tpu.memory_space<vmem>>, %arg6: memref<4x640xf32, #tpu.memory_space<vmem>>) attributes {dimension_semantics = [], scalar_prefetch = 0 : i64, scratch_operands = 0 : i64, tpu.core_type = #tpu.core_type<tc>} {
    %c0 = arith.constant 0 : index
    %c0_0 = arith.constant 0 : index
    %0 = vector.load %arg0[%c0, %c0_0] : memref<4x608xbf16, #tpu.memory_space<vmem>>, vector<4x608xbf16>
    %c0_1 = arith.constant 0 : index
    %c0_2 = arith.constant 0 : index
    %1 = vector.load %arg2[%c0_1, %c0_2] : memref<2032x512xbf16, #tpu.memory_space<vmem>>, vector<608x512xbf16>
    %cst = arith.constant dense<0.000000e+00> : vector<4x512xf32>
    %2 = tpu.matmul %0, %1, %cst {dimension_numbers = #tpu.dot_dimension_numbers<[1], [0], [0], [1], [0, 0, 1, 1], [], []>} : vector<4x608xbf16>, vector<608x512xbf16>, vector<4x512xf32> -> vector<4x512xf32>
    %cst_3 = arith.constant dense<0.000000e+00> : vector<512xf32>
    %3 = vector.multi_reduction <add>, %2, %cst_3 [0] : vector<4x512xf32> to vector<512xf32>
    %4 = vector.shape_cast %3 : vector<512xf32> to vector<1x512xf32>
    %cst_4 = arith.constant 4.000000e+00 : f32
    %5 = vector.broadcast %cst_4 : f32 to vector<1x512xf32>
    %6 = arith.divf %4, %5 : vector<1x512xf32>
    %7 = vector.broadcast %6 : vector<1x512xf32> to vector<4x512xf32>
    %8 = arith.subf %2, %7 : vector<4x512xf32>
    %9 = arith.mulf %8, %8 : vector<4x512xf32>
    %cst_5 = arith.constant dense<0.000000e+00> : vector<512xf32>
    %10 = vector.multi_reduction <add>, %9, %cst_5 [0] : vector<4x512xf32> to vector<512xf32>
    %11 = vector.shape_cast %10 : vector<512xf32> to vector<1x512xf32>
    %cst_6 = arith.constant 4.000000e+00 : f32
    %12 = vector.broadcast %cst_6 : f32 to vector<1x512xf32>
    %13 = arith.divf %11, %12 : vector<1x512xf32>
    %14 = vector.broadcast %6 : vector<1x512xf32> to vector<4x512xf32>
    %15 = arith.subf %2, %14 : vector<4x512xf32>
    %cst_7 = arith.constant 9.99999974E-6 : f32
    %16 = vector.broadcast %cst_7 : f32 to vector<1x512xf32>
    %17 = arith.addf %13, %16 : vector<1x512xf32>
    %18 = math.rsqrt %17 : vector<1x512xf32>
    %19 = vector.broadcast %18 : vector<1x512xf32> to vector<4x512xf32>
    %20 = arith.mulf %15, %19 : vector<4x512xf32>
    %c0_8 = arith.constant 0 : index
    %c0_9 = arith.constant 0 : index
    %21 = vector.load %arg4[%c0_8, %c0_9] : memref<1x4736xf32, #tpu.memory_space<vmem>>, vector<1x512xf32>
    %22 = vector.broadcast %21 : vector<1x512xf32> to vector<4x512xf32>
    %23 = arith.mulf %20, %22 : vector<4x512xf32>
    %c0_10 = arith.constant 0 : index
    %c512 = arith.constant 512 : index
    %24 = vector.load %arg4[%c0_10, %c512] : memref<1x4736xf32, #tpu.memory_space<vmem>>, vector<1x512xf32>
    %25 = vector.broadcast %24 : vector<1x512xf32> to vector<4x512xf32>
    %26 = arith.addf %23, %25 : vector<4x512xf32>
    %cst_11 = arith.constant 0.000000e+00 : f32
    %27 = vector.broadcast %cst_11 : f32 to vector<4x512xf32>
    %28 = arith.cmpf oge, %26, %27 : vector<4x512xf32>
    %cst_12 = arith.constant 0.00999999977 : f32
    %29 = vector.broadcast %cst_12 : f32 to vector<4x512xf32>
    %30 = arith.mulf %29, %26 : vector<4x512xf32>
    %31 = arith.select %28, %26, %30 : vector<4x512xi1>, vector<4x512xf32>
    %c608 = arith.constant 608 : index
    %c0_13 = arith.constant 0 : index
    %32 = vector.load %arg2[%c608, %c0_13] : memref<2032x512xbf16, #tpu.memory_space<vmem>>, vector<512x256xbf16>
    %33 = arith.truncf %31 : vector<4x512xf32> to vector<4x512xbf16>
    %cst_14 = arith.constant dense<0.000000e+00> : vector<4x256xf32>
    %34 = tpu.matmul %33, %32, %cst_14 {dimension_numbers = #tpu.dot_dimension_numbers<[1], [0], [0], [1], [0, 0, 1, 1], [], []>} : vector<4x512xbf16>, vector<512x256xbf16>, vector<4x256xf32> -> vector<4x256xf32>
    %cst_15 = arith.constant dense<0.000000e+00> : vector<256xf32>
    %35 = vector.multi_reduction <add>, %34, %cst_15 [0] : vector<4x256xf32> to vector<256xf32>
    %36 = vector.shape_cast %35 : vector<256xf32> to vector<1x256xf32>
    %cst_16 = arith.constant 4.000000e+00 : f32
    %37 = vector.broadcast %cst_16 : f32 to vector<1x256xf32>
    %38 = arith.divf %36, %37 : vector<1x256xf32>
    %39 = vector.broadcast %38 : vector<1x256xf32> to vector<4x256xf32>
    %40 = arith.subf %34, %39 : vector<4x256xf32>
    %41 = arith.mulf %40, %40 : vector<4x256xf32>
    %cst_17 = arith.constant dense<0.000000e+00> : vector<256xf32>
    %42 = vector.multi_reduction <add>, %41, %cst_17 [0] : vector<4x256xf32> to vector<256xf32>
    %43 = vector.shape_cast %42 : vector<256xf32> to vector<1x256xf32>
    %cst_18 = arith.constant 4.000000e+00 : f32
    %44 = vector.broadcast %cst_18 : f32 to vector<1x256xf32>
    %45 = arith.divf %43, %44 : vector<1x256xf32>
    %46 = vector.broadcast %38 : vector<1x256xf32> to vector<4x256xf32>
    %47 = arith.subf %34, %46 : vector<4x256xf32>
    %cst_19 = arith.constant 9.99999974E-6 : f32
    %48 = vector.broadcast %cst_19 : f32 to vector<1x256xf32>
    %49 = arith.addf %45, %48 : vector<1x256xf32>
    %50 = math.rsqrt %49 : vector<1x256xf32>
    %51 = vector.broadcast %50 : vector<1x256xf32> to vector<4x256xf32>
    %52 = arith.mulf %47, %51 : vector<4x256xf32>
    %c0_20 = arith.constant 0 : index
    %c1024 = arith.constant 1024 : index
    %53 = vector.load %arg4[%c0_20, %c1024] : memref<1x4736xf32, #tpu.memory_space<vmem>>, vector<1x256xf32>
    %54 = vector.broadcast %53 : vector<1x256xf32> to vector<4x256xf32>
    %55 = arith.mulf %52, %54 : vector<4x256xf32>
    %c0_21 = arith.constant 0 : index
    %c1280 = arith.constant 1280 : index
    %56 = vector.load %arg4[%c0_21, %c1280] : memref<1x4736xf32, #tpu.memory_space<vmem>>, vector<1x256xf32>
    %57 = vector.broadcast %56 : vector<1x256xf32> to vector<4x256xf32>
    %58 = arith.addf %55, %57 : vector<4x256xf32>
    %cst_22 = arith.constant 0.000000e+00 : f32
    %59 = vector.broadcast %cst_22 : f32 to vector<4x256xf32>
    %60 = arith.cmpf oge, %58, %59 : vector<4x256xf32>
    %cst_23 = arith.constant 0.00999999977 : f32
    %61 = vector.broadcast %cst_23 : f32 to vector<4x256xf32>
    %62 = arith.mulf %61, %58 : vector<4x256xf32>
    %63 = arith.select %60, %58, %62 : vector<4x256xi1>, vector<4x256xf32>
    %c1120 = arith.constant 1120 : index
    %c0_24 = arith.constant 0 : index
    %64 = vector.load %arg2[%c1120, %c0_24] : memref<2032x512xbf16, #tpu.memory_space<vmem>>, vector<256x128xbf16>
    %65 = arith.truncf %63 : vector<4x256xf32> to vector<4x256xbf16>
    %cst_25 = arith.constant dense<0.000000e+00> : vector<4x128xf32>
    %66 = tpu.matmul %65, %64, %cst_25 {dimension_numbers = #tpu.dot_dimension_numbers<[1], [0], [0], [1], [0, 0, 1, 1], [], []>} : vector<4x256xbf16>, vector<256x128xbf16>, vector<4x128xf32> -> vector<4x128xf32>
    %cst_26 = arith.constant dense<0.000000e+00> : vector<128xf32>
    %67 = vector.multi_reduction <add>, %66, %cst_26 [0] : vector<4x128xf32> to vector<128xf32>
    %68 = vector.shape_cast %67 : vector<128xf32> to vector<1x128xf32>
    %cst_27 = arith.constant 4.000000e+00 : f32
    %69 = vector.broadcast %cst_27 : f32 to vector<1x128xf32>
    %70 = arith.divf %68, %69 : vector<1x128xf32>
    %71 = vector.broadcast %70 : vector<1x128xf32> to vector<4x128xf32>
    %72 = arith.subf %66, %71 : vector<4x128xf32>
    %73 = arith.mulf %72, %72 : vector<4x128xf32>
    %cst_28 = arith.constant dense<0.000000e+00> : vector<128xf32>
    %74 = vector.multi_reduction <add>, %73, %cst_28 [0] : vector<4x128xf32> to vector<128xf32>
    %75 = vector.shape_cast %74 : vector<128xf32> to vector<1x128xf32>
    %cst_29 = arith.constant 4.000000e+00 : f32
    %76 = vector.broadcast %cst_29 : f32 to vector<1x128xf32>
    %77 = arith.divf %75, %76 : vector<1x128xf32>
    %78 = vector.broadcast %70 : vector<1x128xf32> to vector<4x128xf32>
    %79 = arith.subf %66, %78 : vector<4x128xf32>
    %cst_30 = arith.constant 9.99999974E-6 : f32
    %80 = vector.broadcast %cst_30 : f32 to vector<1x128xf32>
    %81 = arith.addf %77, %80 : vector<1x128xf32>
    %82 = math.rsqrt %81 : vector<1x128xf32>
    %83 = vector.broadcast %82 : vector<1x128xf32> to vector<4x128xf32>
    %84 = arith.mulf %79, %83 : vector<4x128xf32>
    %c0_31 = arith.constant 0 : index
    %c1536 = arith.constant 1536 : index
    %85 = vector.load %arg4[%c0_31, %c1536] : memref<1x4736xf32, #tpu.memory_space<vmem>>, vector<1x128xf32>
    %86 = vector.broadcast %85 : vector<1x128xf32> to vector<4x128xf32>
    %87 = arith.mulf %84, %86 : vector<4x128xf32>
    %c0_32 = arith.constant 0 : index
    %c1664 = arith.constant 1664 : index
    %88 = vector.load %arg4[%c0_32, %c1664] : memref<1x4736xf32, #tpu.memory_space<vmem>>, vector<1x128xf32>
    %89 = vector.broadcast %88 : vector<1x128xf32> to vector<4x128xf32>
    %90 = arith.addf %87, %89 : vector<4x128xf32>
    %cst_33 = arith.constant 0.000000e+00 : f32
    %91 = vector.broadcast %cst_33 : f32 to vector<4x128xf32>
    %92 = arith.cmpf oge, %90, %91 : vector<4x128xf32>
    %cst_34 = arith.constant 0.00999999977 : f32
    %93 = vector.broadcast %cst_34 : f32 to vector<4x128xf32>
    %94 = arith.mulf %93, %90 : vector<4x128xf32>
    %95 = arith.select %92, %90, %94 : vector<4x128xi1>, vector<4x128xf32>
    %c1376 = arith.constant 1376 : index
    %c0_35 = arith.constant 0 : index
    %96 = vector.load %arg2[%c1376, %c0_35] : memref<2032x512xbf16, #tpu.memory_space<vmem>>, vector<128x64xbf16>
    %97 = arith.truncf %95 : vector<4x128xf32> to vector<4x128xbf16>
    %cst_36 = arith.constant dense<0.000000e+00> : vector<4x64xf32>
    %98 = tpu.matmul %97, %96, %cst_36 {dimension_numbers = #tpu.dot_dimension_numbers<[1], [0], [0], [1], [0, 0, 1, 1], [], []>} : vector<4x128xbf16>, vector<128x64xbf16>, vector<4x64xf32> -> vector<4x64xf32>
    %cst_37 = arith.constant dense<0.000000e+00> : vector<64xf32>
    %99 = vector.multi_reduction <add>, %98, %cst_37 [0] : vector<4x64xf32> to vector<64xf32>
    %100 = vector.shape_cast %99 : vector<64xf32> to vector<1x64xf32>
    %cst_38 = arith.constant 4.000000e+00 : f32
    %101 = vector.broadcast %cst_38 : f32 to vector<1x64xf32>
    %102 = arith.divf %100, %101 : vector<1x64xf32>
    %103 = vector.broadcast %102 : vector<1x64xf32> to vector<4x64xf32>
    %104 = arith.subf %98, %103 : vector<4x64xf32>
    %105 = arith.mulf %104, %104 : vector<4x64xf32>
    %cst_39 = arith.constant dense<0.000000e+00> : vector<64xf32>
    %106 = vector.multi_reduction <add>, %105, %cst_39 [0] : vector<4x64xf32> to vector<64xf32>
    %107 = vector.shape_cast %106 : vector<64xf32> to vector<1x64xf32>
    %cst_40 = arith.constant 4.000000e+00 : f32
    %108 = vector.broadcast %cst_40 : f32 to vector<1x64xf32>
    %109 = arith.divf %107, %108 : vector<1x64xf32>
    %110 = vector.broadcast %102 : vector<1x64xf32> to vector<4x64xf32>
    %111 = arith.subf %98, %110 : vector<4x64xf32>
    %cst_41 = arith.constant 9.99999974E-6 : f32
    %112 = vector.broadcast %cst_41 : f32 to vector<1x64xf32>
    %113 = arith.addf %109, %112 : vector<1x64xf32>
    %114 = math.rsqrt %113 : vector<1x64xf32>
    %115 = vector.broadcast %114 : vector<1x64xf32> to vector<4x64xf32>
    %116 = arith.mulf %111, %115 : vector<4x64xf32>
    %c0_42 = arith.constant 0 : index
    %c1792 = arith.constant 1792 : index
    %117 = vector.load %arg4[%c0_42, %c1792] : memref<1x4736xf32, #tpu.memory_space<vmem>>, vector<1x64xf32>
    %118 = vector.broadcast %117 : vector<1x64xf32> to vector<4x64xf32>
    %119 = arith.mulf %116, %118 : vector<4x64xf32>
    %c0_43 = arith.constant 0 : index
    %c1920 = arith.constant 1920 : index
    %120 = vector.load %arg4[%c0_43, %c1920] : memref<1x4736xf32, #tpu.memory_space<vmem>>, vector<1x64xf32>
    %121 = vector.broadcast %120 : vector<1x64xf32> to vector<4x64xf32>
    %122 = arith.addf %119, %121 : vector<4x64xf32>
    %cst_44 = arith.constant 0.000000e+00 : f32
    %123 = vector.broadcast %cst_44 : f32 to vector<4x64xf32>
    %124 = arith.cmpf oge, %122, %123 : vector<4x64xf32>
    %cst_45 = arith.constant 0.00999999977 : f32
    %125 = vector.broadcast %cst_45 : f32 to vector<4x64xf32>
    %126 = arith.mulf %125, %122 : vector<4x64xf32>
    %127 = arith.select %124, %122, %126 : vector<4x64xi1>, vector<4x64xf32>
    %c1504 = arith.constant 1504 : index
    %c0_46 = arith.constant 0 : index
    %128 = vector.load %arg2[%c1504, %c0_46] : memref<2032x512xbf16, #tpu.memory_space<vmem>>, vector<64x32xbf16>
    %129 = arith.truncf %127 : vector<4x64xf32> to vector<4x64xbf16>
    %cst_47 = arith.constant dense<0.000000e+00> : vector<4x32xf32>
    %130 = tpu.matmul %129, %128, %cst_47 {dimension_numbers = #tpu.dot_dimension_numbers<[1], [0], [0], [1], [0, 0, 1, 1], [], []>} : vector<4x64xbf16>, vector<64x32xbf16>, vector<4x32xf32> -> vector<4x32xf32>
    %c0_48 = arith.constant 0 : index
    %c2048 = arith.constant 2048 : index
    %131 = vector.load %arg4[%c0_48, %c2048] : memref<1x4736xf32, #tpu.memory_space<vmem>>, vector<1x32xf32>
    %132 = vector.broadcast %131 : vector<1x32xf32> to vector<4x32xf32>
    %133 = arith.addf %130, %132 : vector<4x32xf32>
    %134 = vector.extract_strided_slice %133 {offsets = [0, 0], sizes = [4, 16], strides = [1, 1]} : vector<4x32xf32> to vector<4x16xf32>
    %135 = vector.extract_strided_slice %133 {offsets = [0, 16], sizes = [4, 16], strides = [1, 1]} : vector<4x32xf32> to vector<4x16xf32>
    %c0_49 = arith.constant 0 : index
    %c0_50 = arith.constant 0 : index
    %136 = vector.load %arg1[%c0_49, %c0_50] : memref<4x16xf32, #tpu.memory_space<vmem>>, vector<4x16xf32>
    %cst_51 = arith.constant 5.000000e-01 : f32
    %137 = vector.broadcast %cst_51 : f32 to vector<4x16xf32>
    %138 = arith.mulf %137, %135 : vector<4x16xf32>
    %139 = math.exp %138 : vector<4x16xf32>
    %140 = arith.mulf %136, %139 : vector<4x16xf32>
    %141 = arith.addf %134, %140 : vector<4x16xf32>
    %cst_52 = arith.constant 0.000000e+00 : f32
    %142 = vector.broadcast %cst_52 : f32 to vector<4x80xf32>
    %143 = tpu.concatenate %133, %141, %142 in 1 : vector<4x32xf32>, vector<4x16xf32>, vector<4x80xf32> -> vector<4x128xf32>
    %c0_53 = arith.constant 0 : index
    %c0_54 = arith.constant 0 : index
    %144 = vector.load %arg5[%c0_53, %c0_54] : memref<4x128xf32, #tpu.memory_space<vmem>>, vector<4x128xf32>
    tpu.vector_store %arg5[%c0_53, %c0_54], %143 {strides = array<i32>} : memref<4x128xf32, #tpu.memory_space<vmem>>, vector<4x128xf32>,
    %c1568 = arith.constant 1568 : index
    %c0_55 = arith.constant 0 : index
    %145 = vector.load %arg2[%c1568, %c0_55] : memref<2032x512xbf16, #tpu.memory_space<vmem>>, vector<16x64xbf16>
    %146 = arith.truncf %141 : vector<4x16xf32> to vector<4x16xbf16>
    %cst_56 = arith.constant dense<0.000000e+00> : vector<4x64xf32>
    %147 = tpu.matmul %146, %145, %cst_56 {dimension_numbers = #tpu.dot_dimension_numbers<[1], [0], [0], [1], [0, 0, 1, 1], [], []>} : vector<4x16xbf16>, vector<16x64xbf16>, vector<4x64xf32> -> vector<4x64xf32>
    %c0_57 = arith.constant 0 : index
    %c2176 = arith.constant 2176 : index
    %148 = vector.load %arg4[%c0_57, %c2176] : memref<1x4736xf32, #tpu.memory_space<vmem>>, vector<1x64xf32>
    %149 = vector.broadcast %148 : vector<1x64xf32> to vector<4x64xf32>
    %150 = arith.addf %147, %149 : vector<4x64xf32>
    %cst_58 = arith.constant 0.000000e+00 : f32
    %151 = vector.broadcast %cst_58 : f32 to vector<4x64xf32>
    %152 = arith.cmpf oge, %150, %151 : vector<4x64xf32>
    %cst_59 = arith.constant 0.00999999977 : f32
    %153 = vector.broadcast %cst_59 : f32 to vector<4x64xf32>
    %154 = arith.mulf %153, %150 : vector<4x64xf32>
    %155 = arith.select %152, %150, %154 : vector<4x64xi1>, vector<4x64xf32>
    %c1584 = arith.constant 1584 : index
    %c0_60 = arith.constant 0 : index
    %156 = vector.load %arg2[%c1584, %c0_60] : memref<2032x512xbf16, #tpu.memory_space<vmem>>, vector<64x128xbf16>
    %157 = arith.truncf %155 : vector<4x64xf32> to vector<4x64xbf16>
    %cst_61 = arith.constant dense<0.000000e+00> : vector<4x128xf32>
    %158 = tpu.matmul %157, %156, %cst_61 {dimension_numbers = #tpu.dot_dimension_numbers<[1], [0], [0], [1], [0, 0, 1, 1], [], []>} : vector<4x64xbf16>, vector<64x128xbf16>, vector<4x128xf32> -> vector<4x128xf32>
    %cst_62 = arith.constant dense<0.000000e+00> : vector<128xf32>
    %159 = vector.multi_reduction <add>, %158, %cst_62 [0] : vector<4x128xf32> to vector<128xf32>
    %160 = vector.shape_cast %159 : vector<128xf32> to vector<1x128xf32>
    %cst_63 = arith.constant 4.000000e+00 : f32
    %161 = vector.broadcast %cst_63 : f32 to vector<1x128xf32>
    %162 = arith.divf %160, %161 : vector<1x128xf32>
    %163 = vector.broadcast %162 : vector<1x128xf32> to vector<4x128xf32>
    %164 = arith.subf %158, %163 : vector<4x128xf32>
    %165 = arith.mulf %164, %164 : vector<4x128xf32>
    %cst_64 = arith.constant dense<0.000000e+00> : vector<128xf32>
    %166 = vector.multi_reduction <add>, %165, %cst_64 [0] : vector<4x128xf32> to vector<128xf32>
    %167 = vector.shape_cast %166 : vector<128xf32> to vector<1x128xf32>
    %cst_65 = arith.constant 4.000000e+00 : f32
    %168 = vector.broadcast %cst_65 : f32 to vector<1x128xf32>
    %169 = arith.divf %167, %168 : vector<1x128xf32>
    %170 = vector.broadcast %162 : vector<1x128xf32> to vector<4x128xf32>
    %171 = arith.subf %158, %170 : vector<4x128xf32>
    %cst_66 = arith.constant 9.99999974E-6 : f32
    %172 = vector.broadcast %cst_66 : f32 to vector<1x128xf32>
    %173 = arith.addf %169, %172 : vector<1x128xf32>
    %174 = math.rsqrt %173 : vector<1x128xf32>
    %175 = vector.broadcast %174 : vector<1x128xf32> to vector<4x128xf32>
    %176 = arith.mulf %171, %175 : vector<4x128xf32>
    %c0_67 = arith.constant 0 : index
    %c2304 = arith.constant 2304 : index
    %177 = vector.load %arg4[%c0_67, %c2304] : memref<1x4736xf32, #tpu.memory_space<vmem>>, vector<1x128xf32>
    %178 = vector.broadcast %177 : vector<1x128xf32> to vector<4x128xf32>
    %179 = arith.mulf %176, %178 : vector<4x128xf32>
    %c0_68 = arith.constant 0 : index
    %c2432 = arith.constant 2432 : index
    %180 = vector.load %arg4[%c0_68, %c2432] : memref<1x4736xf32, #tpu.memory_space<vmem>>, vector<1x128xf32>
    %181 = vector.broadcast %180 : vector<1x128xf32> to vector<4x128xf32>
    %182 = arith.addf %179, %181 : vector<4x128xf32>
    %cst_69 = arith.constant 0.000000e+00 : f32
    %183 = vector.broadcast %cst_69 : f32 to vector<4x128xf32>
    %184 = arith.cmpf oge, %182, %183 : vector<4x128xf32>
    %cst_70 = arith.constant 0.00999999977 : f32
    %185 = vector.broadcast %cst_70 : f32 to vector<4x128xf32>
    %186 = arith.mulf %185, %182 : vector<4x128xf32>
    %187 = arith.select %184, %182, %186 : vector<4x128xi1>, vector<4x128xf32>
    %c1648 = arith.constant 1648 : index
    %c0_71 = arith.constant 0 : index
    %188 = vector.load %arg2[%c1648, %c0_71] : memref<2032x512xbf16, #tpu.memory_space<vmem>>, vector<128x256xbf16>
    %189 = arith.truncf %187 : vector<4x128xf32> to vector<4x128xbf16>
    %cst_72 = arith.constant dense<0.000000e+00> : vector<4x256xf32>
    %190 = tpu.matmul %189, %188, %cst_72 {dimension_numbers = #tpu.dot_dimension_numbers<[1], [0], [0], [1], [0, 0, 1, 1], [], []>} : vector<4x128xbf16>, vector<128x256xbf16>, vector<4x256xf32> -> vector<4x256xf32>
    %cst_73 = arith.constant dense<0.000000e+00> : vector<256xf32>
    %191 = vector.multi_reduction <add>, %190, %cst_73 [0] : vector<4x256xf32> to vector<256xf32>
    %192 = vector.shape_cast %191 : vector<256xf32> to vector<1x256xf32>
    %cst_74 = arith.constant 4.000000e+00 : f32
    %193 = vector.broadcast %cst_74 : f32 to vector<1x256xf32>
    %194 = arith.divf %192, %193 : vector<1x256xf32>
    %195 = vector.broadcast %194 : vector<1x256xf32> to vector<4x256xf32>
    %196 = arith.subf %190, %195 : vector<4x256xf32>
    %197 = arith.mulf %196, %196 : vector<4x256xf32>
    %cst_75 = arith.constant dense<0.000000e+00> : vector<256xf32>
    %198 = vector.multi_reduction <add>, %197, %cst_75 [0] : vector<4x256xf32> to vector<256xf32>
    %199 = vector.shape_cast %198 : vector<256xf32> to vector<1x256xf32>
    %cst_76 = arith.constant 4.000000e+00 : f32
    %200 = vector.broadcast %cst_76 : f32 to vector<1x256xf32>
    %201 = arith.divf %199, %200 : vector<1x256xf32>
    %202 = vector.broadcast %194 : vector<1x256xf32> to vector<4x256xf32>
    %203 = arith.subf %190, %202 : vector<4x256xf32>
    %cst_77 = arith.constant 9.99999974E-6 : f32
    %204 = vector.broadcast %cst_77 : f32 to vector<1x256xf32>
    %205 = arith.addf %201, %204 : vector<1x256xf32>
    %206 = math.rsqrt %205 : vector<1x256xf32>
    %207 = vector.broadcast %206 : vector<1x256xf32> to vector<4x256xf32>
    %208 = arith.mulf %203, %207 : vector<4x256xf32>
    %c0_78 = arith.constant 0 : index
    %c2560 = arith.constant 2560 : index
    %209 = vector.load %arg4[%c0_78, %c2560] : memref<1x4736xf32, #tpu.memory_space<vmem>>, vector<1x256xf32>
    %210 = vector.broadcast %209 : vector<1x256xf32> to vector<4x256xf32>
    %211 = arith.mulf %208, %210 : vector<4x256xf32>
    %c0_79 = arith.constant 0 : index
    %c2816 = arith.constant 2816 : index
    %212 = vector.load %arg4[%c0_79, %c2816] : memref<1x4736xf32, #tpu.memory_space<vmem>>, vector<1x256xf32>
    %213 = vector.broadcast %212 : vector<1x256xf32> to vector<4x256xf32>
    %214 = arith.addf %211, %213 : vector<4x256xf32>
    %cst_80 = arith.constant 0.000000e+00 : f32
    %215 = vector.broadcast %cst_80 : f32 to vector<4x256xf32>
    %216 = arith.cmpf oge, %214, %215 : vector<4x256xf32>
    %cst_81 = arith.constant 0.00999999977 : f32
    %217 = vector.broadcast %cst_81 : f32 to vector<4x256xf32>
    %218 = arith.mulf %217, %214 : vector<4x256xf32>
    %219 = arith.select %216, %214, %218 : vector<4x256xi1>, vector<4x256xf32>
    %c1776 = arith.constant 1776 : index
    %c0_82 = arith.constant 0 : index
    %220 = vector.load %arg2[%c1776, %c0_82] : memref<2032x512xbf16, #tpu.memory_space<vmem>>, vector<256x512xbf16>
    %221 = arith.truncf %219 : vector<4x256xf32> to vector<4x256xbf16>
    %cst_83 = arith.constant dense<0.000000e+00> : vector<4x512xf32>
    %222 = tpu.matmul %221, %220, %cst_83 {dimension_numbers = #tpu.dot_dimension_numbers<[1], [0], [0], [1], [0, 0, 1, 1], [], []>} : vector<4x256xbf16>, vector<256x512xbf16>, vector<4x512xf32> -> vector<4x512xf32>
    %cst_84 = arith.constant dense<0.000000e+00> : vector<512xf32>
    %223 = vector.multi_reduction <add>, %222, %cst_84 [0] : vector<4x512xf32> to vector<512xf32>
    %224 = vector.shape_cast %223 : vector<512xf32> to vector<1x512xf32>
    %cst_85 = arith.constant 4.000000e+00 : f32
    %225 = vector.broadcast %cst_85 : f32 to vector<1x512xf32>
    %226 = arith.divf %224, %225 : vector<1x512xf32>
    %227 = vector.broadcast %226 : vector<1x512xf32> to vector<4x512xf32>
    %228 = arith.subf %222, %227 : vector<4x512xf32>
    %229 = arith.mulf %228, %228 : vector<4x512xf32>
    %cst_86 = arith.constant dense<0.000000e+00> : vector<512xf32>
    %230 = vector.multi_reduction <add>, %229, %cst_86 [0] : vector<4x512xf32> to vector<512xf32>
    %231 = vector.shape_cast %230 : vector<512xf32> to vector<1x512xf32>
    %cst_87 = arith.constant 4.000000e+00 : f32
    %232 = vector.broadcast %cst_87 : f32 to vector<1x512xf32>
    %233 = arith.divf %231, %232 : vector<1x512xf32>
    %234 = vector.broadcast %226 : vector<1x512xf32> to vector<4x512xf32>
    %235 = arith.subf %222, %234 : vector<4x512xf32>
    %cst_88 = arith.constant 9.99999974E-6 : f32
    %236 = vector.broadcast %cst_88 : f32 to vector<1x512xf32>
    %237 = arith.addf %233, %236 : vector<1x512xf32>
    %238 = math.rsqrt %237 : vector<1x512xf32>
    %239 = vector.broadcast %238 : vector<1x512xf32> to vector<4x512xf32>
    %240 = arith.mulf %235, %239 : vector<4x512xf32>
    %c0_89 = arith.constant 0 : index
    %c3072 = arith.constant 3072 : index
    %241 = vector.load %arg4[%c0_89, %c3072] : memref<1x4736xf32, #tpu.memory_space<vmem>>, vector<1x512xf32>
    %242 = vector.broadcast %241 : vector<1x512xf32> to vector<4x512xf32>
    %243 = arith.mulf %240, %242 : vector<4x512xf32>
    %c0_90 = arith.constant 0 : index
    %c3584 = arith.constant 3584 : index
    %244 = vector.load %arg4[%c0_90, %c3584] : memref<1x4736xf32, #tpu.memory_space<vmem>>, vector<1x512xf32>
    %245 = vector.broadcast %244 : vector<1x512xf32> to vector<4x512xf32>
    %246 = arith.addf %243, %245 : vector<4x512xf32>
    %cst_91 = arith.constant 0.000000e+00 : f32
    %247 = vector.broadcast %cst_91 : f32 to vector<4x512xf32>
    %248 = arith.cmpf oge, %246, %247 : vector<4x512xf32>
    %cst_92 = arith.constant 0.00999999977 : f32
    %249 = vector.broadcast %cst_92 : f32 to vector<4x512xf32>
    %250 = arith.mulf %249, %246 : vector<4x512xf32>
    %251 = arith.select %248, %246, %250 : vector<4x512xi1>, vector<4x512xf32>
    %c0_93 = arith.constant 0 : index
    %c0_94 = arith.constant 0 : index
    %252 = vector.load %arg3[%c0_93, %c0_94] : memref<512x640xbf16, #tpu.memory_space<vmem>>, vector<512x640xbf16>
    %253 = arith.truncf %251 : vector<4x512xf32> to vector<4x512xbf16>
    %cst_95 = arith.constant dense<0.000000e+00> : vector<4x640xf32>
    %254 = tpu.matmul %253, %252, %cst_95 {dimension_numbers = #tpu.dot_dimension_numbers<[1], [0], [0], [1], [0, 0, 1, 1], [], []>} : vector<4x512xbf16>, vector<512x640xbf16>, vector<4x640xf32> -> vector<4x640xf32>
    %c0_96 = arith.constant 0 : index
    %c4096 = arith.constant 4096 : index
    %255 = vector.load %arg4[%c0_96, %c4096] : memref<1x4736xf32, #tpu.memory_space<vmem>>, vector<1x640xf32>
    %256 = vector.broadcast %255 : vector<1x640xf32> to vector<4x640xf32>
    %257 = arith.addf %254, %256 : vector<4x640xf32>
    %258 = math.tanh %257 : vector<4x640xf32>
    %c0_97 = arith.constant 0 : index
    %c0_98 = arith.constant 0 : index
    %259 = vector.load %arg6[%c0_97, %c0_98] : memref<4x640xf32, #tpu.memory_space<vmem>>, vector<4x640xf32>
    tpu.vector_store %arg6[%c0_97, %c0_98], %258 {strides = array<i32>} : memref<4x640xf32, #tpu.memory_space<vmem>>, vector<4x640xf32>,
    return
  }
}

</mosaic_0001>

<llo_original>
// kernel: vae_forward.1
$region0: #{vae_forward.1}
  #allocation0 [shape = 'u32[]', space=smem, size = 0x4, offset = 0x4, fixed_abs, tag = 'smem constant byte address 0x4 - core index']
  #allocation1 [shape = 'u32[72,128]{1,0:T(1,128)}', space=vmem, size = 0x9000, scoped, tag = 'internal scratch']
  %s0 = inlined_call_operand.vmem [shape: bf16[4,608], index: 0, kind: input, shape index: {}]
  %s1 = inlined_call_operand.hbm [shape: f32[4,16], index: 1, kind: input, shape index: {}]
  %s2 = inlined_call_operand.hbm [shape: bf16[2032,512], index: 2, kind: input, shape index: {}]
  %s3 = inlined_call_operand.hbm [shape: bf16[512,640], index: 3, kind: input, shape index: {}]
  %s4 = inlined_call_operand.hbm [shape: f32[1,4736], index: 4, kind: input, shape index: {}]
  %s5 = inlined_call_operand.vmem [shape: f32[4,128], index: 5, kind: output, shape index: {0}]
  %s6 = inlined_call_operand.vmem [shape: f32[4,640], index: 6, kind: output, shape index: {1}]
  %7 = xla_tuple %s5, %s6
  %s8 = sld [smem:[#allocation0]]
  $region54: #{vae_forward.1} parent=0
    _
  %s10 = ssub.s32 1, %s8
  %s11 = scalar_select 0, %s10, %s8
  $region1: #{vae_forward.1} parent=0
    #allocation2 [shape = 'u8[2048]{0}', space=vmem, size = 0x800, scoped, tag = 'input window, operand 1, single buffered']
    #allocation3 [shape = 's32[1]{0}', space=sflag, size = 0x4, scoped, tag = 'scoped memory for vae_forward.1']
    #allocation4 [shape = 'u8[2080768]{0}', space=vmem, size = 0x1fc000, scoped, tag = 'input window, operand 2, single buffered']
    #allocation5 [shape = 's32[1]{0}', space=sflag, size = 0x4, scoped, tag = 'scoped memory for vae_forward.1']
    #allocation6 [shape = 'u8[655360]{0}', space=vmem, size = 0xa0000, scoped, tag = 'input window, operand 3, single buffered']
    #allocation7 [shape = 'u8[18944]{0}', space=vmem, size = 0x4c00, scoped, tag = 'input window, operand 4, single buffered']
    #allocation8 [shape = 's32[1]{0}', space=sflag, size = 0x4, scoped, tag = 'scoped memory for vae_forward.1']
    %12 = vsyncpa [#allocation3], 0
    %13 = vsyncpa [#allocation5], 0
    %14 = vsyncpa [#allocation8], 0
    // Predicated region
    $region2: #{vae_forward.1} parent=1 // pred_check
      _
    $region3: #{vae_forward.1} parent=1 // pred_check_branch
      %16 = sbr.rel (0) target = $region5
    $region4: #{vae_forward.1} parent=1 // pred_region
      _
    $region5: #{vae_forward.1} parent=1 // pred_fallthru
      _
    // Predicated region
    $region6: #{vae_forward.1} parent=1 // pred_check
      _
    $region7: #{vae_forward.1} parent=1 // pred_check_branch
      %18 = sbr.rel (0) target = $region9
    $region8: #{vae_forward.1} parent=1 // pred_region
      %20 = vsyncadd [#allocation3], 0
      %s22 = sshll.u32 %s1, 4
      %s23 = int_to_ptr.hbm [resolvable:$true] %s22
      %s24 = sshll.u32 [#allocation2], 4
      %s25 = int_to_ptr.vmem [resolvable:$true] %s24
      %27 = dma.hbm_to_vmem [thread:$0]  %s23, 64, %s25, [#allocation3]
    $region9: #{vae_forward.1} parent=1 // pred_fallthru
      _
    // Predicated region
    $region10: #{vae_forward.1} parent=1 // pred_check
      _
    $region11: #{vae_forward.1} parent=1 // pred_check_branch
      %29 = sbr.rel (0) target = $region13
    $region12: #{vae_forward.1} parent=1 // pred_region
      %31 = vsyncadd [#allocation5], 0
      %s32 = sshll.u32 %s2, 4
      %s33 = int_to_ptr.hbm [resolvable:$true] %s32
      %s34 = sshll.u32 [#allocation4], 4
      %s35 = int_to_ptr.vmem [resolvable:$true] %s34
      %40 = dma.hbm_to_vmem [thread:$0]  %s33, 65024, %s35, [#allocation5], 256, 256, 16
    $region13: #{vae_forward.1} parent=1 // pred_fallthru
      _
    // Predicated region
    $region14: #{vae_forward.1} parent=1 // pred_check
      _
    $region15: #{vae_forward.1} parent=1 // pred_check_branch
      %42 = sbr.rel (0) target = $region17
    $region16: #{vae_forward.1} parent=1 // pred_region
      %44 = vsyncadd [#allocation5], 0
      %s45 = sshll.u32 %s3, 4
      %s46 = int_to_ptr.hbm [resolvable:$true] %s45
      %s47 = sshll.u32 [#allocation6], 4
      %s48 = int_to_ptr.vmem [resolvable:$true] %s47
      %53 = dma.hbm_to_vmem [thread:$0]  %s46, 20480, %s48, [#allocation5], 320, 320, 20
    $region17: #{vae_forward.1} parent=1 // pred_fallthru
      _
    // Predicated region
    $region18: #{vae_forward.1} parent=1 // pred_check
      _
    $region19: #{vae_forward.1} parent=1 // pred_check_branch
      %55 = sbr.rel (0) target = $region21
    $region20: #{vae_forward.1} parent=1 // pred_region
      %57 = vsyncadd [#allocation8], 0
      %s59 = sshll.u32 %s4, 4
      %s60 = int_to_ptr.hbm [resolvable:$true] %s59
      %s61 = sshll.u32 [#allocation7], 4
      %s62 = int_to_ptr.vmem [resolvable:$true] %s61
      %64 = dma.hbm_to_vmem [thread:$0]  %s60, 592, %s62, [#allocation8]
    $region21: #{vae_forward.1} parent=1 // pred_fallthru
      _
    // Predicated region
    $region22: #{vae_forward.1} parent=1 // pred_check
      _
    $region23: #{vae_forward.1} parent=1 // pred_check_branch
      %66 = sbr.rel (0) target = $region25
    $region24: #{vae_forward.1} parent=1 // pred_region
      %68 = dma.done [#allocation3], 64
    $region25: #{vae_forward.1} parent=1 // pred_fallthru
      _
    // Predicated region
    $region26: #{vae_forward.1} parent=1 // pred_check
      _
    $region27: #{vae_forward.1} parent=1 // pred_check_branch
      %70 = sbr.rel (0) target = $region29
    $region28: #{vae_forward.1} parent=1 // pred_region
      %72 = dma.done [#allocation5], 65024
    $region29: #{vae_forward.1} parent=1 // pred_fallthru
      _
    // Predicated region
    $region30: #{vae_forward.1} parent=1 // pred_check
      _
    $region31: #{vae_forward.1} parent=1 // pred_check_branch
      %74 = sbr.rel (0) target = $region33
    $region32: #{vae_forward.1} parent=1 // pred_region
      %76 = dma.done [#allocation5], 20480
    $region33: #{vae_forward.1} parent=1 // pred_fallthru
      _
    // Predicated region
    $region34: #{vae_forward.1} parent=1 // pred_check
      _
    $region35: #{vae_forward.1} parent=1 // pred_check_branch
      %78 = sbr.rel (0) target = $region37
    $region36: #{vae_forward.1} parent=1 // pred_region
      %80 = dma.done [#allocation8], 592
    $region37: #{vae_forward.1} parent=1 // pred_fallthru
      _
    %v82 = vld [vmem:[%s0] sm:$0xff]
    %v83 = vld [vmem:[%s0 + $0x8] sm:$0x3]
    %v84 = vld [vmem:[#allocation4] sm:$0xff]
    %v85 = vld [vmem:[#allocation4 + $0x8] sm:$0xff]
    %v86 = vld [vmem:[#allocation4 + $0x10] sm:$0xff]
    %v87 = vld [vmem:[#allocation4 + $0x18] sm:$0xff]
    %v88 = vld [vmem:[#allocation4 + $0x20] sm:$0xff]
    %v89 = vld [vmem:[#allocation4 + $0x28] sm:$0xff]
    %v90 = vld [vmem:[#allocation4 + $0x30] sm:$0xff]
    %v91 = vld [vmem:[#allocation4 + $0x38] sm:$0xff]
    %v92 = vld [vmem:[#allocation4 + $0x40] sm:$0xff]
    %v93 = vld [vmem:[#allocation4 + $0x48] sm:$0xff]
    %v94 = vld [vmem:[#allocation4 + $0x50] sm:$0xff]
    %v95 = vld [vmem:[#allocation4 + $0x58] sm:$0xff]
    %v96 = vld [vmem:[#allocation4 + $0x60] sm:$0xff]
    %v97 = vld [vmem:[#allocation4 + $0x68] sm:$0xff]
    %v98 = vld [vmem:[#allocation4 + $0x70] sm:$0xff]
    %v99 = vld [vmem:[#allocation4 + $0x78] sm:$0xff]
    %v100 = vld [vmem:[#allocation4 + $0x80] sm:$0xff]
    %v101 = vld [vmem:[#allocation4 + $0x88] sm:$0xff]
    %v102 = vld [vmem:[#allocation4 + $0x90] sm:$0xff]
    %v103 = vld [vmem:[#allocation4 + $0x98] sm:$0xff]
    %v104 = vld [vmem:[#allocation4 + $0xa0] sm:$0xff]
    %v105 = vld [vmem:[#allocation4 + $0xa8] sm:$0xff]
    %v106 = vld [vmem:[#allocation4 + $0xb0] sm:$0xff]
    %v107 = vld [vmem:[#allocation4 + $0xb8] sm:$0xff]
    %v108 = vld [vmem:[#allocation4 + $0xc0] sm:$0xff]
    %v109 = vld [vmem:[#allocation4 + $0xc8] sm:$0xff]
    %v110 = vld [vmem:[#allocation4 + $0xd0] sm:$0xff]
    %v111 = vld [vmem:[#allocation4 + $0xd8] sm:$0xff]
    %v112 = vld [vmem:[#allocation4 + $0xe0] sm:$0xff]
    %v113 = vld [vmem:[#allocation4 + $0xe8] sm:$0xff]
    %v114 = vld [vmem:[#allocation4 + $0xf0] sm:$0xff]
    %v115 = vld [vmem:[#allocation4 + $0xf8] sm:$0xff]
    %v116 = vld [vmem:[#allocation4 + $0x100] sm:$0xff]
    %v117 = vld [vmem:[#allocation4 + $0x108] sm:$0xff]
    %v118 = vld [vmem:[#allocation4 + $0x110] sm:$0xff]
    %v119 = vld [vmem:[#allocation4 + $0x118] sm:$0xff]
    %v120 = vld [vmem:[#allocation4 + $0x120] sm:$0xff]
    %v121 = vld [vmem:[#allocation4 + $0x128] sm:$0xff]
    %v122 = vld [vmem:[#allocation4 + $0x130] sm:$0xff]
    %v123 = vld [vmem:[#allocation4 + $0x138] sm:$0xff]
    %v124 = vld [vmem:[#allocation4 + $0x140] sm:$0xff]
    %v125 = vld [vmem:[#allocation4 + $0x148] sm:$0xff]
    %v126 = vld [vmem:[#allocation4 + $0x150] sm:$0xff]
    %v127 = vld [vmem:[#allocation4 + $0x158] sm:$0xff]
    %v128 = vld [vmem:[#allocation4 + $0x160] sm:$0xff]
    %v129 = vld [vmem:[#allocation4 + $0x168] sm:$0xff]
    %v130 = vld [vmem:[#allocation4 + $0x170] sm:$0xff]
    %v131 = vld [vmem:[#allocation4 + $0x178] sm:$0xff]
    %v132 = vld [vmem:[#allocation4 + $0x180] sm:$0xff]
    %v133 = vld [vmem:[#allocation4 + $0x188] sm:$0xff]
    %v134 = vld [vmem:[#allocation4 + $0x190] sm:$0xff]
    %v135 = vld [vmem:[#allocation4 + $0x198] sm:$0xff]
    %v136 = vld [vmem:[#allocation4 + $0x1a0] sm:$0xff]
    %v137 = vld [vmem:[#allocation4 + $0x1a8] sm:$0xff]
    %v138 = vld [vmem:[#allocation4 + $0x1b0] sm:$0xff]
    %v139 = vld [vmem:[#allocation4 + $0x1b8] sm:$0xff]
    %v140 = vld [vmem:[#allocation4 + $0x1c0] sm:$0xff]
    %v141 = vld [vmem:[#allocation4 + $0x1c8] sm:$0xff]
    %v142 = vld [vmem:[#allocation4 + $0x1d0] sm:$0xff]
    %v143 = vld [vmem:[#allocation4 + $0x1d8] sm:$0xff]
    %v144 = vld [vmem:[#allocation4 + $0x1e0] sm:$0xff]
    %v145 = vld [vmem:[#allocation4 + $0x1e8] sm:$0xff]
    %v146 = vld [vmem:[#allocation4 + $0x1f0] sm:$0xff]
    %v147 = vld [vmem:[#allocation4 + $0x1f8] sm:$0xff]
    %v148 = vld [vmem:[#allocation4 + $0x200] sm:$0xff]
    %v149 = vld [vmem:[#allocation4 + $0x208] sm:$0xff]
    %v150 = vld [vmem:[#allocation4 + $0x210] sm:$0xff]
    %v151 = vld [vmem:[#allocation4 + $0x218] sm:$0xff]
    %v152 = vld [vmem:[#allocation4 + $0x220] sm:$0xff]
    %v153 = vld [vmem:[#allocation4 + $0x228] sm:$0xff]
    %v154 = vld [vmem:[#allocation4 + $0x230] sm:$0xff]
    %v155 = vld [vmem:[#allocation4 + $0x238] sm:$0xff]
    %v156 = vld [vmem:[#allocation4 + $0x240] sm:$0xff]
    %v157 = vld [vmem:[#allocation4 + $0x248] sm:$0xff]
    %v158 = vld [vmem:[#allocation4 + $0x250] sm:$0xff]
    %v159 = vld [vmem:[#allocation4 + $0x258] sm:$0xff]
    %v160 = vld [vmem:[#allocation4 + $0x260] sm:$0xff]
    %v161 = vld [vmem:[#allocation4 + $0x268] sm:$0xff]
    %v162 = vld [vmem:[#allocation4 + $0x270] sm:$0xff]
    %v163 = vld [vmem:[#allocation4 + $0x278] sm:$0xff]
    %v164 = vld [vmem:[#allocation4 + $0x280] sm:$0xff]
    %v165 = vld [vmem:[#allocation4 + $0x288] sm:$0xff]
    %v166 = vld [vmem:[#allocation4 + $0x290] sm:$0xff]
    %v167 = vld [vmem:[#allocation4 + $0x298] sm:$0xff]
    %v168 = vld [vmem:[#allocation4 + $0x2a0] sm:$0xff]
    %v169 = vld [vmem:[#allocation4 + $0x2a8] sm:$0xff]
    %v170 = vld [vmem:[#allocation4 + $0x2b0] sm:$0xff]
    %v171 = vld [vmem:[#allocation4 + $0x2b8] sm:$0xff]
    %v172 = vld [vmem:[#allocation4 + $0x2c0] sm:$0xff]
    %v173 = vld [vmem:[#allocation4 + $0x2c8] sm:$0xff]
    %v174 = vld [vmem:[#allocation4 + $0x2d0] sm:$0xff]
    %v175 = vld [vmem:[#allocation4 + $0x2d8] sm:$0xff]
    %v176 = vld [vmem:[#allocation4 + $0x2e0] sm:$0xff]
    %v177 = vld [vmem:[#allocation4 + $0x2e8] sm:$0xff]
    %v178 = vld [vmem:[#allocation4 + $0x2f0] sm:$0xff]
    %v179 = vld [vmem:[#allocation4 + $0x2f8] sm:$0xff]
    %v180 = vld [vmem:[#allocation4 + $0x300] sm:$0xff]
    %v181 = vld [vmem:[#allocation4 + $0x308] sm:$0xff]
    %v182 = vld [vmem:[#allocation4 + $0x310] sm:$0xff]
    %v183 = vld [vmem:[#allocation4 + $0x318] sm:$0xff]
    %v184 = vld [vmem:[#allocation4 + $0x320] sm:$0xff]
    %v185 = vld [vmem:[#allocation4 + $0x328] sm:$0xff]
    %v186 = vld [vmem:[#allocation4 + $0x330] sm:$0xff]
    %v187 = vld [vmem:[#allocation4 + $0x338] sm:$0xff]
    %v188 = vld [vmem:[#allocation4 + $0x340] sm:$0xff]
    %v189 = vld [vmem:[#allocation4 + $0x348] sm:$0xff]
    %v190 = vld [vmem:[#allocation4 + $0x350] sm:$0xff]
    %v191 = vld [vmem:[#allocation4 + $0x358] sm:$0xff]
    %v192 = vld [vmem:[#allocation4 + $0x360] sm:$0xff]
    %v193 = vld [vmem:[#allocation4 + $0x368] sm:$0xff]
    %v194 = vld [vmem:[#allocation4 + $0x370] sm:$0xff]
    %v195 = vld [vmem:[#allocation4 + $0x378] sm:$0xff]
    %v196 = vld [vmem:[#allocation4 + $0x380] sm:$0xff]
    %v197 = vld [vmem:[#allocation4 + $0x388] sm:$0xff]
    %v198 = vld [vmem:[#allocation4 + $0x390] sm:$0xff]
    %v199 = vld [vmem:[#allocation4 + $0x398] sm:$0xff]
    %v200 = vld [vmem:[#allocation4 + $0x3a0] sm:$0xff]
    %v201 = vld [vmem:[#allocation4 + $0x3a8] sm:$0xff]
    %v202 = vld [vmem:[#allocation4 + $0x3b0] sm:$0xff]
    %v203 = vld [vmem:[#allocation4 + $0x3b8] sm:$0xff]
    %v204 = vld [vmem:[#allocation4 + $0x3c0] sm:$0xff]
    %v205 = vld [vmem:[#allocation4 + $0x3c8] sm:$0xff]
    %v206 = vld [vmem:[#allocation4 + $0x3d0] sm:$0xff]
    %v207 = vld [vmem:[#allocation4 + $0x3d8] sm:$0xff]
    %v208 = vld [vmem:[#allocation4 + $0x3e0] sm:$0xff]
    %v209 = vld [vmem:[#allocation4 + $0x3e8] sm:$0xff]
    %v210 = vld [vmem:[#allocation4 + $0x3f0] sm:$0xff]
    %v211 = vld [vmem:[#allocation4 + $0x3f8] sm:$0xff]
    %v212 = vld [vmem:[#allocation4 + $0x400] sm:$0xff]
    %v213 = vld [vmem:[#allocation4 + $0x408] sm:$0xff]
    %v214 = vld [vmem:[#allocation4 + $0x410] sm:$0xff]
    %v215 = vld [vmem:[#allocation4 + $0x418] sm:$0xff]
    %v216 = vld [vmem:[#allocation4 + $0x420] sm:$0xff]
    %v217 = vld [vmem:[#allocation4 + $0x428] sm:$0xff]
    %v218 = vld [vmem:[#allocation4 + $0x430] sm:$0xff]
    %v219 = vld [vmem:[#allocation4 + $0x438] sm:$0xff]
    %v220 = vld [vmem:[#allocation4 + $0x440] sm:$0xff]
    %v221 = vld [vmem:[#allocation4 + $0x448] sm:$0xff]
    %v222 = vld [vmem:[#allocation4 + $0x450] sm:$0xff]
    %v223 = vld [vmem:[#allocation4 + $0x458] sm:$0xff]
    %v224 = vld [vmem:[#allocation4 + $0x460] sm:$0xff]
    %v225 = vld [vmem:[#allocation4 + $0x468] sm:$0xff]
    %v226 = vld [vmem:[#allocation4 + $0x470] sm:$0xff]
    %v227 = vld [vmem:[#allocation4 + $0x478] sm:$0xff]
    %v228 = vld [vmem:[#allocation4 + $0x480] sm:$0xff]
    %v229 = vld [vmem:[#allocation4 + $0x488] sm:$0xff]
    %v230 = vld [vmem:[#allocation4 + $0x490] sm:$0xff]
    %v231 = vld [vmem:[#allocation4 + $0x498] sm:$0xff]
    %v232 = vld [vmem:[#allocation4 + $0x4a0] sm:$0xff]
    %v233 = vld [vmem:[#allocation4 + $0x4a8] sm:$0xff]
    %v234 = vld [vmem:[#allocation4 + $0x4b0] sm:$0xff]
    %v235 = vld [vmem:[#allocation4 + $0x4b8] sm:$0xff]
    %237 = vst [vmem:[#allocation1] ss:$4 sm:$0xff] %v82
    %s239 = scalar_lea.vmem [#allocation1], 32
    %240 = vst [vmem:[%s239] ss:$4 sm:$0xff] %v83
    %v241 = vld.sshfl [vmem:[#allocation1] sm:$0xff pattern:$0x73625140]
    %v242 = vld.sshfl [vmem:[#allocation1 + $0x8] sm:$0xff pattern:$0x73625140]
    %v243 = vld.sshfl [vmem:[#allocation1 + $0x10] sm:$0xff pattern:$0x73625140]
    %v244 = vld.sshfl [vmem:[#allocation1 + $0x18] sm:$0xff pattern:$0x73625140]
    %v245 = vld.sshfl [vmem:[#allocation1 + $0x20] sm:$0xff pattern:$0x73625140]
    %v402 = vunpack.c.l.b16 %v84
    %v403 = vunpack.c.h.b16 %v84
    %v404 = vunpack.c.l.b16 %v85
    %v405 = vunpack.c.h.b16 %v85
    %v406 = vunpack.c.l.b16 %v86
    %v407 = vunpack.c.h.b16 %v86
    %v408 = vunpack.c.l.b16 %v87
    %v409 = vunpack.c.h.b16 %v87
    %v410 = vunpack.c.l.b16 %v88
    %v411 = vunpack.c.h.b16 %v88
    %v412 = vunpack.c.l.b16 %v89
    %v413 = vunpack.c.h.b16 %v89
    %v414 = vunpack.c.l.b16 %v90
    %v415 = vunpack.c.h.b16 %v90
    %v416 = vunpack.c.l.b16 %v91
    %v417 = vunpack.c.h.b16 %v91
    %v418 = vunpack.c.l.b16 %v92
    %v419 = vunpack.c.h.b16 %v92
    %v420 = vunpack.c.l.b16 %v93
    %v421 = vunpack.c.h.b16 %v93
    %v422 = vunpack.c.l.b16 %v94
    %v423 = vunpack.c.h.b16 %v94
    %v424 = vunpack.c.l.b16 %v95
    %v425 = vunpack.c.h.b16 %v95
    %v426 = vunpack.c.l.b16 %v96
    %v427 = vunpack.c.h.b16 %v96
    %v428 = vunpack.c.l.b16 %v97
    %v429 = vunpack.c.h.b16 %v97
    %v430 = vunpack.c.l.b16 %v98
    %v431 = vunpack.c.h.b16 %v98
    %v432 = vunpack.c.l.b16 %v99
    %v433 = vunpack.c.h.b16 %v99
    %v434 = vunpack.c.l.b16 %v100
    %v435 = vunpack.c.h.b16 %v100
    %v436 = vunpack.c.l.b16 %v101
    %v437 = vunpack.c.h.b16 %v101
    %v438 = vunpack.c.l.b16 %v102
    %v439 = vunpack.c.h.b16 %v102
    %v440 = vunpack.c.l.b16 %v103
    %v441 = vunpack.c.h.b16 %v103
    %v442 = vunpack.c.l.b16 %v104
    %v443 = vunpack.c.h.b16 %v104
    %v444 = vunpack.c.l.b16 %v105
    %v445 = vunpack.c.h.b16 %v105
    %v446 = vunpack.c.l.b16 %v106
    %v447 = vunpack.c.h.b16 %v106
    %v448 = vunpack.c.l.b16 %v107
    %v449 = vunpack.c.h.b16 %v107
    %v450 = vunpack.c.l.b16 %v108
    %v451 = vunpack.c.h.b16 %v108
    %v452 = vunpack.c.l.b16 %v109
    %v453 = vunpack.c.h.b16 %v109
    %v454 = vunpack.c.l.b16 %v110
    %v455 = vunpack.c.h.b16 %v110
    %v456 = vunpack.c.l.b16 %v111
    %v457 = vunpack.c.h.b16 %v111
    %v458 = vunpack.c.l.b16 %v112
    %v459 = vunpack.c.h.b16 %v112
    %v460 = vunpack.c.l.b16 %v113
    %v461 = vunpack.c.h.b16 %v113
    %v462 = vunpack.c.l.b16 %v114
    %v463 = vunpack.c.h.b16 %v114
    %v464 = vunpack.c.l.b16 %v115
    %v465 = vunpack.c.h.b16 %v115
    %v466 = vunpack.c.l.b16 %v116
    %v467 = vunpack.c.h.b16 %v116
    %v468 = vunpack.c.l.b16 %v117
    %v469 = vunpack.c.h.b16 %v117
    %v470 = vunpack.c.l.b16 %v118
    %v471 = vunpack.c.h.b16 %v118
    %v472 = vunpack.c.l.b16 %v119
    %v473 = vunpack.c.h.b16 %v119
    %v474 = vunpack.c.l.b16 %v120
    %v475 = vunpack.c.h.b16 %v120
    %v476 = vunpack.c.l.b16 %v121
    %v477 = vunpack.c.h.b16 %v121
    %v478 = vunpack.c.l.b16 %v122
    %v479 = vunpack.c.h.b16 %v122
    %v480 = vunpack.c.l.b16 %v123
    %v481 = vunpack.c.h.b16 %v123
    %v482 = vunpack.c.l.b16 %v124
    %v483 = vunpack.c.h.b16 %v124
    %v484 = vunpack.c.l.b16 %v125
    %v485 = vunpack.c.h.b16 %v125
    %v486 = vunpack.c.l.b16 %v126
    %v487 = vunpack.c.h.b16 %v126
    %v488 = vunpack.c.l.b16 %v127
    %v489 = vunpack.c.h.b16 %v127
    %v490 = vunpack.c.l.b16 %v128
    %v491 = vunpack.c.h.b16 %v128
    %v492 = vunpack.c.l.b16 %v129
    %v493 = vunpack.c.h.b16 %v129
    %v494 = vunpack.c.l.b16 %v130
    %v495 = vunpack.c.h.b16 %v130
    %v496 = vunpack.c.l.b16 %v131
    %v497 = vunpack.c.h.b16 %v131
    %v498 = vunpack.c.l.b16 %v132
    %v499 = vunpack.c.h.b16 %v132
    %v500 = vunpack.c.l.b16 %v133
    %v501 = vunpack.c.h.b16 %v133
    %v502 = vunpack.c.l.b16 %v134
    %v503 = vunpack.c.h.b16 %v134
    %v504 = vunpack.c.l.b16 %v135
    %v505 = vunpack.c.h.b16 %v135
    %v506 = vunpack.c.l.b16 %v136
    %v507 = vunpack.c.h.b16 %v136
    %v508 = vunpack.c.l.b16 %v137
    %v509 = vunpack.c.h.b16 %v137
    %v510 = vunpack.c.l.b16 %v138
    %v511 = vunpack.c.h.b16 %v138
    %v512 = vunpack.c.l.b16 %v139
    %v513 = vunpack.c.h.b16 %v139
    %v514 = vunpack.c.l.b16 %v140
    %v515 = vunpack.c.h.b16 %v140
    %v516 = vunpack.c.l.b16 %v141
    %v517 = vunpack.c.h.b16 %v141
    %v518 = vunpack.c.l.b16 %v142
    %v519 = vunpack.c.h.b16 %v142
    %v520 = vunpack.c.l.b16 %v143
    %v521 = vunpack.c.h.b16 %v143
    %v522 = vunpack.c.l.b16 %v144
    %v523 = vunpack.c.h.b16 %v144
    %v524 = vunpack.c.l.b16 %v145
    %v525 = vunpack.c.h.b16 %v145
    %v526 = vunpack.c.l.b16 %v146
    %v527 = vunpack.c.h.b16 %v146
    %v528 = vunpack.c.l.b16 %v147
    %v529 = vunpack.c.h.b16 %v147
    %v530 = vunpack.c.l.b16 %v148
    %v531 = vunpack.c.h.b16 %v148
    %v532 = vunpack.c.l.b16 %v149
    %v533 = vunpack.c.h.b16 %v149
    %v534 = vunpack.c.l.b16 %v150
    %v535 = vunpack.c.h.b16 %v150
    %v536 = vunpack.c.l.b16 %v151
    %v537 = vunpack.c.h.b16 %v151
    %v538 = vunpack.c.l.b16 %v152
    %v539 = vunpack.c.h.b16 %v152
    %v540 = vunpack.c.l.b16 %v153
    %v541 = vunpack.c.h.b16 %v153
    %v542 = vunpack.c.l.b16 %v154
    %v543 = vunpack.c.h.b16 %v154
    %v544 = vunpack.c.l.b16 %v155
    %v545 = vunpack.c.h.b16 %v155
    %v546 = vunpack.c.l.b16 %v156
    %v547 = vunpack.c.h.b16 %v156
    %v548 = vunpack.c.l.b16 %v157
    %v549 = vunpack.c.h.b16 %v157
    %v550 = vunpack.c.l.b16 %v158
    %v551 = vunpack.c.h.b16 %v158
    %v552 = vunpack.c.l.b16 %v159
    %v553 = vunpack.c.h.b16 %v159
    %v554 = vunpack.c.l.b16 %v160
    %v555 = vunpack.c.h.b16 %v160
    %v556 = vunpack.c.l.b16 %v161
    %v557 = vunpack.c.h.b16 %v161
    %v558 = vunpack.c.l.b16 %v162
    %v559 = vunpack.c.h.b16 %v162
    %v560 = vunpack.c.l.b16 %v163
    %v561 = vunpack.c.h.b16 %v163
    %v562 = vunpack.c.l.b16 %v164
    %v563 = vunpack.c.h.b16 %v164
    %v564 = vunpack.c.l.b16 %v165
    %v565 = vunpack.c.h.b16 %v165
    %v566 = vunpack.c.l.b16 %v166
    %v567 = vunpack.c.h.b16 %v166
    %v568 = vunpack.c.l.b16 %v167
    %v569 = vunpack.c.h.b16 %v167
    %v570 = vunpack.c.l.b16 %v168
    %v571 = vunpack.c.h.b16 %v168
    %v572 = vunpack.c.l.b16 %v169
    %v573 = vunpack.c.h.b16 %v169
    %v574 = vunpack.c.l.b16 %v170
    %v575 = vunpack.c.h.b16 %v170
    %v576 = vunpack.c.l.b16 %v171
    %v577 = vunpack.c.h.b16 %v171
    %v578 = vunpack.c.l.b16 %v172
    %v579 = vunpack.c.h.b16 %v172
    %v580 = vunpack.c.l.b16 %v173
    %v581 = vunpack.c.h.b16 %v173
    %v582 = vunpack.c.l.b16 %v174
    %v583 = vunpack.c.h.b16 %v174
    %v584 = vunpack.c.l.b16 %v175
    %v585 = vunpack.c.h.b16 %v175
    %v586 = vunpack.c.l.b16 %v176
    %v587 = vunpack.c.h.b16 %v176
    %v588 = vunpack.c.l.b16 %v177
    %v589 = vunpack.c.h.b16 %v177
    %v590 = vunpack.c.l.b16 %v178
    %v591 = vunpack.c.h.b16 %v178
    %v592 = vunpack.c.l.b16 %v179
    %v593 = vunpack.c.h.b16 %v179
    %v594 = vunpack.c.l.b16 %v180
    %v595 = vunpack.c.h.b16 %v180
    %v596 = vunpack.c.l.b16 %v181
    %v597 = vunpack.c.h.b16 %v181
    %v598 = vunpack.c.l.b16 %v182
    %v599 = vunpack.c.h.b16 %v182
    %v600 = vunpack.c.l.b16 %v183
    %v601 = vunpack.c.h.b16 %v183
    %v602 = vunpack.c.l.b16 %v184
    %v603 = vunpack.c.h.b16 %v184
    %v604 = vunpack.c.l.b16 %v185
    %v605 = vunpack.c.h.b16 %v185
    %v606 = vunpack.c.l.b16 %v186
    %v607 = vunpack.c.h.b16 %v186
    %v608 = vunpack.c.l.b16 %v187
    %v609 = vunpack.c.h.b16 %v187
    %v610 = vunpack.c.l.b16 %v188
    %v611 = vunpack.c.h.b16 %v188
    %v612 = vunpack.c.l.b16 %v189
    %v613 = vunpack.c.h.b16 %v189
    %v614 = vunpack.c.l.b16 %v190
    %v615 = vunpack.c.h.b16 %v190
    %v616 = vunpack.c.l.b16 %v191
    %v617 = vunpack.c.h.b16 %v191
    %v618 = vunpack.c.l.b16 %v192
    %v619 = vunpack.c.h.b16 %v192
    %v620 = vunpack.c.l.b16 %v193
    %v621 = vunpack.c.h.b16 %v193
    %v622 = vunpack.c.l.b16 %v194
    %v623 = vunpack.c.h.b16 %v194
    %v624 = vunpack.c.l.b16 %v195
    %v625 = vunpack.c.h.b16 %v195
    %v626 = vunpack.c.l.b16 %v196
    %v627 = vunpack.c.h.b16 %v196
    %v628 = vunpack.c.l.b16 %v197
    %v629 = vunpack.c.h.b16 %v197
    %v630 = vunpack.c.l.b16 %v198
    %v631 = vunpack.c.h.b16 %v198
    %v632 = vunpack.c.l.b16 %v199
    %v633 = vunpack.c.h.b16 %v199
    %v634 = vunpack.c.l.b16 %v200
    %v635 = vunpack.c.h.b16 %v200
    %v636 = vunpack.c.l.b16 %v201
    %v637 = vunpack.c.h.b16 %v201
    %v638 = vunpack.c.l.b16 %v202
    %v639 = vunpack.c.h.b16 %v202
    %v640 = vunpack.c.l.b16 %v203
    %v641 = vunpack.c.h.b16 %v203
    %v642 = vunpack.c.l.b16 %v204
    %v643 = vunpack.c.h.b16 %v204
    %v644 = vunpack.c.l.b16 %v205
    %v645 = vunpack.c.h.b16 %v205
    %v646 = vunpack.c.l.b16 %v206
    %v647 = vunpack.c.h.b16 %v206
    %v648 = vunpack.c.l.b16 %v207
    %v649 = vunpack.c.h.b16 %v207
    %v650 = vunpack.c.l.b16 %v208
    %v651 = vunpack.c.h.b16 %v208
    %v652 = vunpack.c.l.b16 %v209
    %v653 = vunpack.c.h.b16 %v209
    %v654 = vunpack.c.l.b16 %v210
    %v655 = vunpack.c.h.b16 %v210
    %v656 = vunpack.c.l.b16 %v211
    %v657 = vunpack.c.h.b16 %v211
    %v658 = vunpack.c.l.b16 %v212
    %v659 = vunpack.c.h.b16 %v212
    %v660 = vunpack.c.l.b16 %v213
    %v661 = vunpack.c.h.b16 %v213
    %v662 = vunpack.c.l.b16 %v214
    %v663 = vunpack.c.h.b16 %v214
    %v664 = vunpack.c.l.b16 %v215
    %v665 = vunpack.c.h.b16 %v215
    %v666 = vunpack.c.l.b16 %v216
    %v667 = vunpack.c.h.b16 %v216
    %v668 = vunpack.c.l.b16 %v217
    %v669 = vunpack.c.h.b16 %v217
    %v670 = vunpack.c.l.b16 %v218
    %v671 = vunpack.c.h.b16 %v218
    %v672 = vunpack.c.l.b16 %v219
    %v673 = vunpack.c.h.b16 %v219
    %v674 = vunpack.c.l.b16 %v220
    %v675 = vunpack.c.h.b16 %v220
    %v676 = vunpack.c.l.b16 %v221
    %v677 = vunpack.c.h.b16 %v221
    %v678 = vunpack.c.l.b16 %v222
    %v679 = vunpack.c.h.b16 %v222
    %v680 = vunpack.c.l.b16 %v223
    %v681 = vunpack.c.h.b16 %v223
    %v682 = vunpack.c.l.b16 %v224
    %v683 = vunpack.c.h.b16 %v224
    %v684 = vunpack.c.l.b16 %v225
    %v685 = vunpack.c.h.b16 %v225
    %v686 = vunpack.c.l.b16 %v226
    %v687 = vunpack.c.h.b16 %v226
    %v688 = vunpack.c.l.b16 %v227
    %v689 = vunpack.c.h.b16 %v227
    %v690 = vunpack.c.l.b16 %v228
    %v691 = vunpack.c.h.b16 %v228
    %v692 = vunpack.c.l.b16 %v229
    %v693 = vunpack.c.h.b16 %v229
    %v694 = vunpack.c.l.b16 %v230
    %v695 = vunpack.c.h.b16 %v230
    %v696 = vunpack.c.l.b16 %v231
    %v697 = vunpack.c.h.b16 %v231
    %v698 = vunpack.c.l.b16 %v232
    %v699 = vunpack.c.h.b16 %v232
    %v700 = vunpack.c.l.b16 %v233
    %v701 = vunpack.c.h.b16 %v233
    %v702 = vunpack.c.l.b16 %v234
    %v703 = vunpack.c.h.b16 %v234
    %v704 = vunpack.c.l.b16 %v235
    %v705 = vunpack.c.h.b16 %v235
    %v706 = vpack.c.b16 %v406, %v402
    %v707 = vpack.c.b16 %v407, %v403
    %v708 = vpack.c.b16 %v408, %v404
    %v709 = vpack.c.b16 %v409, %v405
    %v710 = vpack.c.b16 %v414, %v410
    %v711 = vpack.c.b16 %v415, %v411
    %v712 = vpack.c.b16 %v416, %v412
    %v713 = vpack.c.b16 %v417, %v413
    %v714 = vpack.c.b16 %v422, %v418
    %v715 = vpack.c.b16 %v423, %v419
    %v716 = vpack.c.b16 %v424, %v420
    %v717 = vpack.c.b16 %v425, %v421
    %v718 = vpack.c.b16 %v430, %v426
    %v719 = vpack.c.b16 %v431, %v427
    %v720 = vpack.c.b16 %v432, %v428
    %v721 = vpack.c.b16 %v433, %v429
    %v722 = vpack.c.b16 %v438, %v434
    %v723 = vpack.c.b16 %v439, %v435
    %v724 = vpack.c.b16 %v440, %v436
    %v725 = vpack.c.b16 %v441, %v437
    %v726 = vpack.c.b16 %v446, %v442
    %v727 = vpack.c.b16 %v447, %v443
    %v728 = vpack.c.b16 %v448, %v444
    %v729 = vpack.c.b16 %v449, %v445
    %v730 = vpack.c.b16 %v454, %v450
    %v731 = vpack.c.b16 %v455, %v451
    %v732 = vpack.c.b16 %v456, %v452
    %v733 = vpack.c.b16 %v457, %v453
    %v734 = vpack.c.b16 %v462, %v458
    %v735 = vpack.c.b16 %v463, %v459
    %v736 = vpack.c.b16 %v464, %v460
    %v737 = vpack.c.b16 %v465, %v461
    %v738 = vpack.c.b16 %v470, %v466
    %v739 = vpack.c.b16 %v471, %v467
    %v740 = vpack.c.b16 %v472, %v468
    %v741 = vpack.c.b16 %v473, %v469
    %v742 = vpack.c.b16 %v478, %v474
    %v743 = vpack.c.b16 %v479, %v475
    %v744 = vpack.c.b16 %v480, %v476
    %v745 = vpack.c.b16 %v481, %v477
    %v746 = vpack.c.b16 %v486, %v482
    %v747 = vpack.c.b16 %v487, %v483
    %v748 = vpack.c.b16 %v488, %v484
    %v749 = vpack.c.b16 %v489, %v485
    %v750 = vpack.c.b16 %v494, %v490
    %v751 = vpack.c.b16 %v495, %v491
    %v752 = vpack.c.b16 %v496, %v492
    %v753 = vpack.c.b16 %v497, %v493
    %v754 = vpack.c.b16 %v502, %v498
    %v755 = vpack.c.b16 %v503, %v499
    %v756 = vpack.c.b16 %v504, %v500
    %v757 = vpack.c.b16 %v505, %v501
    %v758 = vpack.c.b16 %v510, %v506
    %v759 = vpack.c.b16 %v511, %v507
    %v760 = vpack.c.b16 %v512, %v508
    %v761 = vpack.c.b16 %v513, %v509
    %v762 = vpack.c.b16 %v518, %v514
    %v763 = vpack.c.b16 %v519, %v515
    %v764 = vpack.c.b16 %v520, %v516
    %v765 = vpack.c.b16 %v521, %v517
    %v766 = vpack.c.b16 %v526, %v522
    %v767 = vpack.c.b16 %v527, %v523
    %v768 = vpack.c.b16 %v528, %v524
    %v769 = vpack.c.b16 %v529, %v525
    %v770 = vpack.c.b16 %v534, %v530
    %v771 = vpack.c.b16 %v535, %v531
    %v772 = vpack.c.b16 %v536, %v532
    %v773 = vpack.c.b16 %v537, %v533
    %v774 = vpack.c.b16 %v542, %v538
    %v775 = vpack.c.b16 %v543, %v539
    %v776 = vpack.c.b16 %v544, %v540
    %v777 = vpack.c.b16 %v545, %v541
    %v778 = vpack.c.b16 %v550, %v546
    %v779 = vpack.c.b16 %v551, %v547
    %v780 = vpack.c.b16 %v552, %v548
    %v781 = vpack.c.b16 %v553, %v549
    %v782 = vpack.c.b16 %v558, %v554
    %v783 = vpack.c.b16 %v559, %v555
    %v784 = vpack.c.b16 %v560, %v556
    %v785 = vpack.c.b16 %v561, %v557
    %v786 = vpack.c.b16 %v566, %v562
    %v787 = vpack.c.b16 %v567, %v563
    %v788 = vpack.c.b16 %v568, %v564
    %v789 = vpack.c.b16 %v569, %v565
    %v790 = vpack.c.b16 %v574, %v570
    %v791 = vpack.c.b16 %v575, %v571
    %v792 = vpack.c.b16 %v576, %v572
    %v793 = vpack.c.b16 %v577, %v573
    %v794 = vpack.c.b16 %v582, %v578
    %v795 = vpack.c.b16 %v583, %v579
    %v796 = vpack.c.b16 %v584, %v580
    %v797 = vpack.c.b16 %v585, %v581
    %v798 = vpack.c.b16 %v590, %v586
    %v799 = vpack.c.b16 %v591, %v587
    %v800 = vpack.c.b16 %v592, %v588
    %v801 = vpack.c.b16 %v593, %v589
    %v802 = vpack.c.b16 %v598, %v594
    %v803 = vpack.c.b16 %v599, %v595
    %v804 = vpack.c.b16 %v600, %v596
    %v805 = vpack.c.b16 %v601, %v597
    %v806 = vpack.c.b16 %v606, %v602
    %v807 = vpack.c.b16 %v607, %v603
    %v808 = vpack.c.b16 %v608, %v604
    %v809 = vpack.c.b16 %v609, %v605
    %v810 = vpack.c.b16 %v614, %v610
    %v811 = vpack.c.b16 %v615, %v611
    %v812 = vpack.c.b16 %v616, %v612
    %v813 = vpack.c.b16 %v617, %v613
    %v814 = vpack.c.b16 %v622, %v618
    %v815 = vpack.c.b16 %v623, %v619
    %v816 = vpack.c.b16 %v624, %v620
    %v817 = vpack.c.b16 %v625, %v621
    %v818 = vpack.c.b16 %v630, %v626
    %v819 = vpack.c.b16 %v631, %v627
    %v820 = vpack.c.b16 %v632, %v628
    %v821 = vpack.c.b16 %v633, %v629
    %v822 = vpack.c.b16 %v638, %v634
    %v823 = vpack.c.b16 %v639, %v635
    %v824 = vpack.c.b16 %v640, %v636
    %v825 = vpack.c.b16 %v641, %v637
    %v826 = vpack.c.b16 %v646, %v642
    %v827 = vpack.c.b16 %v647, %v643
    %v828 = vpack.c.b16 %v648, %v644
    %v829 = vpack.c.b16 %v649, %v645
    %v830 = vpack.c.b16 %v654, %v650
    %v831 = vpack.c.b16 %v655, %v651
    %v832 = vpack.c.b16 %v656, %v652
    %v833 = vpack.c.b16 %v657, %v653
    %v834 = vpack.c.b16 %v662, %v658
    %v835 = vpack.c.b16 %v663, %v659
    %v836 = vpack.c.b16 %v664, %v660
    %v837 = vpack.c.b16 %v665, %v661
    %v838 = vpack.c.b16 %v670, %v666
    %v839 = vpack.c.b16 %v671, %v667
    %v840 = vpack.c.b16 %v672, %v668
    %v841 = vpack.c.b16 %v673, %v669
    %v842 = vpack.c.b16 %v678, %v674
    %v843 = vpack.c.b16 %v679, %v675
    %v844 = vpack.c.b16 %v680, %v676
    %v845 = vpack.c.b16 %v681, %v677
    %v846 = vpack.c.b16 %v686, %v682
    %v847 = vpack.c.b16 %v687, %v683
    %v848 = vpack.c.b16 %v688, %v684
    %v849 = vpack.c.b16 %v689, %v685
    %v850 = vpack.c.b16 %v694, %v690
    %v851 = vpack.c.b16 %v695, %v691
    %v852 = vpack.c.b16 %v696, %v692
    %v853 = vpack.c.b16 %v697, %v693
    %v854 = vpack.c.b16 %v702, %v698
    %v855 = vpack.c.b16 %v703, %v699
    %v856 = vpack.c.b16 %v704, %v700
    %v857 = vpack.c.b16 %v705, %v701
    %vm1010 = vcmask 785408
    %v1011 = vsel %vm1010, %v245, 0
    %1013 = vmatpush.bf16.msra.mxu0 %v734
    %1014 = vmatpush.bf16.msra.mxu0 %v730
    %1015 = vmatpush.bf16.msra.mxu0 %v726
    %1016 = vmatpush.bf16.msra.mxu0 %v722
    %1017 = vmatpush.bf16.msra.mxu0 %v718
    %1018 = vmatpush.bf16.msra.mxu0 %v714
    %1019 = vmatpush.bf16.msra.mxu0 %v710
    %1020 = vmatpush.bf16.msra.mxu0 %v706
    %1021 = vmatmul.bf16.gmra.mxu0 %v241
    %v1022 = vpop.f32.mrf.mxu0
    %v1023 = vadd.f32 0.0, %v1022
    %v1024 = vpop.f32.mrf.mxu0
    %1025 = vdwg.mxu0
    %1026 = vmatpush.bf16.msra.mxu0 %v766
    %1027 = vmatpush.bf16.msra.mxu0 %v762
    %1028 = vmatpush.bf16.msra.mxu0 %v758
    %1029 = vmatpush.bf16.msra.mxu0 %v754
    %1030 = vmatpush.bf16.msra.mxu0 %v750
    %1031 = vmatpush.bf16.msra.mxu0 %v746
    %1032 = vmatpush.bf16.msra.mxu0 %v742
    %1033 = vmatpush.bf16.msra.mxu0 %v738
    %1034 = vmatmul.bf16.gmra.mxu0 %v242
    %v1035 = vpop.f32.mrf.mxu0
    %v1036 = vadd.f32 %v1023, %v1035
    %v1037 = vpop.f32.mrf.mxu0
    %1038 = vdwg.mxu0
    %1039 = vmatpush.bf16.msra.mxu0 %v798
    %1040 = vmatpush.bf16.msra.mxu0 %v794
    %1041 = vmatpush.bf16.msra.mxu0 %v790
    %1042 = vmatpush.bf16.msra.mxu0 %v786
    %1043 = vmatpush.bf16.msra.mxu0 %v782
    %1044 = vmatpush.bf16.msra.mxu0 %v778
    %1045 = vmatpush.bf16.msra.mxu0 %v774
    %1046 = vmatpush.bf16.msra.mxu0 %v770
    %1047 = vmatmul.bf16.gmra.mxu0 %v243
    %v1048 = vpop.f32.mrf.mxu0
    %v1049 = vadd.f32 %v1036, %v1048
    %v1050 = vpop.f32.mrf.mxu0
    %1051 = vdwg.mxu0
    %1052 = vmatpush.bf16.msra.mxu0 %v830
    %1053 = vmatpush.bf16.msra.mxu0 %v826
    %1054 = vmatpush.bf16.msra.mxu0 %v822
    %1055 = vmatpush.bf16.msra.mxu0 %v818
    %1056 = vmatpush.bf16.msra.mxu0 %v814
    %1057 = vmatpush.bf16.msra.mxu0 %v810
    %1058 = vmatpush.bf16.msra.mxu0 %v806
    %1059 = vmatpush.bf16.msra.mxu0 %v802
    %1060 = vmatmul.bf16.gmra.mxu0 %v244
    %v1061 = vpop.f32.mrf.mxu0
    %v1062 = vadd.f32 %v1049, %v1061
    %v1063 = vpop.f32.mrf.mxu0
    %1064 = vdwg.mxu0
    %1065 = vmatpush.bf16.msra.mxu0 0
    %1066 = vmatpush.bf16.msra.mxu0 0
    %1067 = vmatpush.bf16.msra.mxu0 %v854
    %1068 = vmatpush.bf16.msra.mxu0 %v850
    %1069 = vmatpush.bf16.msra.mxu0 %v846
    %1070 = vmatpush.bf16.msra.mxu0 %v842
    %1071 = vmatpush.bf16.msra.mxu0 %v838
    %1072 = vmatpush.bf16.msra.mxu0 %v834
    %1073 = vmatmul.bf16.gmra.mxu0 %v1011
    %v1074 = vpop.f32.mrf.mxu0
    %v1075 = vadd.f32 %v1062, %v1074
    %v1076 = vpop.f32.mrf.mxu0
    %1077 = vdwg.mxu0
    %1078 = vmatpush.bf16.msra.mxu0 %v735
    %1079 = vmatpush.bf16.msra.mxu0 %v731
    %1080 = vmatpush.bf16.msra.mxu0 %v727
    %1081 = vmatpush.bf16.msra.mxu0 %v723
    %1082 = vmatpush.bf16.msra.mxu0 %v719
    %1083 = vmatpush.bf16.msra.mxu0 %v715
    %1084 = vmatpush.bf16.msra.mxu0 %v711
    %1085 = vmatpush.bf16.msra.mxu0 %v707
    %1086 = vmatmul.bf16.gmra.mxu0 %v241
    %v1087 = vpop.f32.mrf.mxu0
    %v1088 = vadd.f32 0.0, %v1087
    %v1089 = vpop.f32.mrf.mxu0
    %1090 = vdwg.mxu0
    %1091 = vmatpush.bf16.msra.mxu0 %v767
    %1092 = vmatpush.bf16.msra.mxu0 %v763
    %1093 = vmatpush.bf16.msra.mxu0 %v759
    %1094 = vmatpush.bf16.msra.mxu0 %v755
    %1095 = vmatpush.bf16.msra.mxu0 %v751
    %1096 = vmatpush.bf16.msra.mxu0 %v747
    %1097 = vmatpush.bf16.msra.mxu0 %v743
    %1098 = vmatpush.bf16.msra.mxu0 %v739
    %1099 = vmatmul.bf16.gmra.mxu0 %v242
    %v1100 = vpop.f32.mrf.mxu0
    %v1101 = vadd.f32 %v1088, %v1100
    %v1102 = vpop.f32.mrf.mxu0
    %1103 = vdwg.mxu0
    %1104 = vmatpush.bf16.msra.mxu0 %v799
    %1105 = vmatpush.bf16.msra.mxu0 %v795
    %1106 = vmatpush.bf16.msra.mxu0 %v791
    %1107 = vmatpush.bf16.msra.mxu0 %v787
    %1108 = vmatpush.bf16.msra.mxu0 %v783
    %1109 = vmatpush.bf16.msra.mxu0 %v779
    %1110 = vmatpush.bf16.msra.mxu0 %v775
    %1111 = vmatpush.bf16.msra.mxu0 %v771
    %1112 = vmatmul.bf16.gmra.mxu0 %v243
    %v1113 = vpop.f32.mrf.mxu0
    %v1114 = vadd.f32 %v1101, %v1113
    %v1115 = vpop.f32.mrf.mxu0
    %1116 = vdwg.mxu0
    %1117 = vmatpush.bf16.msra.mxu0 %v831
    %1118 = vmatpush.bf16.msra.mxu0 %v827
    %1119 = vmatpush.bf16.msra.mxu0 %v823
    %1120 = vmatpush.bf16.msra.mxu0 %v819
    %1121 = vmatpush.bf16.msra.mxu0 %v815
    %1122 = vmatpush.bf16.msra.mxu0 %v811
    %1123 = vmatpush.bf16.msra.mxu0 %v807
    %1124 = vmatpush.bf16.msra.mxu0 %v803
    %1125 = vmatmul.bf16.gmra.mxu0 %v244
    %v1126 = vpop.f32.mrf.mxu0
    %v1127 = vadd.f32 %v1114, %v1126
    %v1128 = vpop.f32.mrf.mxu0
    %1129 = vdwg.mxu0
    %1130 = vmatpush.bf16.msra.mxu0 0
    %1131 = vmatpush.bf16.msra.mxu0 0
    %1132 = vmatpush.bf16.msra.mxu0 %v855
    %1133 = vmatpush.bf16.msra.mxu0 %v851
    %1134 = vmatpush.bf16.msra.mxu0 %v847
    %1135 = vmatpush.bf16.msra.mxu0 %v843
    %1136 = vmatpush.bf16.msra.mxu0 %v839
    %1137 = vmatpush.bf16.msra.mxu0 %v835
    %1138 = vmatmul.bf16.gmra.mxu0 %v1011
    %v1139 = vpop.f32.mrf.mxu0
    %v1140 = vadd.f32 %v1127, %v1139
    %v1141 = vpop.f32.mrf.mxu0
    %1142 = vdwg.mxu0
    %1143 = vmatpush.bf16.msra.mxu0 %v736
    %1144 = vmatpush.bf16.msra.mxu0 %v732
    %1145 = vmatpush.bf16.msra.mxu0 %v728
    %1146 = vmatpush.bf16.msra.mxu0 %v724
    %1147 = vmatpush.bf16.msra.mxu0 %v720
    %1148 = vmatpush.bf16.msra.mxu0 %v716
    %1149 = vmatpush.bf16.msra.mxu0 %v712
    %1150 = vmatpush.bf16.msra.mxu0 %v708
    %1151 = vmatmul.bf16.gmra.mxu0 %v241
    %v1152 = vpop.f32.mrf.mxu0
    %v1153 = vadd.f32 0.0, %v1152
    %v1154 = vpop.f32.mrf.mxu0
    %1155 = vdwg.mxu0
    %1156 = vmatpush.bf16.msra.mxu0 %v768
    %1157 = vmatpush.bf16.msra.mxu0 %v764
    %1158 = vmatpush.bf16.msra.mxu0 %v760
    %1159 = vmatpush.bf16.msra.mxu0 %v756
    %1160 = vmatpush.bf16.msra.mxu0 %v752
    %1161 = vmatpush.bf16.msra.mxu0 %v748
    %1162 = vmatpush.bf16.msra.mxu0 %v744
    %1163 = vmatpush.bf16.msra.mxu0 %v740
    %1164 = vmatmul.bf16.gmra.mxu0 %v242
    %v1165 = vpop.f32.mrf.mxu0
    %v1166 = vadd.f32 %v1153, %v1165
    %v1167 = vpop.f32.mrf.mxu0
    %1168 = vdwg.mxu0
    %1169 = vmatpush.bf16.msra.mxu0 %v800
    %1170 = vmatpush.bf16.msra.mxu0 %v796
    %1171 = vmatpush.bf16.msra.mxu0 %v792
    %1172 = vmatpush.bf16.msra.mxu0 %v788
    %1173 = vmatpush.bf16.msra.mxu0 %v784
    %1174 = vmatpush.bf16.msra.mxu0 %v780
    %1175 = vmatpush.bf16.msra.mxu0 %v776
    %1176 = vmatpush.bf16.msra.mxu0 %v772
    %1177 = vmatmul.bf16.gmra.mxu0 %v243
    %v1178 = vpop.f32.mrf.mxu0
    %v1179 = vadd.f32 %v1166, %v1178
    %v1180 = vpop.f32.mrf.mxu0
    %1181 = vdwg.mxu0
    %1182 = vmatpush.bf16.msra.mxu0 %v832
    %1183 = vmatpush.bf16.msra.mxu0 %v828
    %1184 = vmatpush.bf16.msra.mxu0 %v824
    %1185 = vmatpush.bf16.msra.mxu0 %v820
    %1186 = vmatpush.bf16.msra.mxu0 %v816
    %1187 = vmatpush.bf16.msra.mxu0 %v812
    %1188 = vmatpush.bf16.msra.mxu0 %v808
    %1189 = vmatpush.bf16.msra.mxu0 %v804
    %1190 = vmatmul.bf16.gmra.mxu0 %v244
    %v1191 = vpop.f32.mrf.mxu0
    %v1192 = vadd.f32 %v1179, %v1191
    %v1193 = vpop.f32.mrf.mxu0
    %1194 = vdwg.mxu0
    %1195 = vmatpush.bf16.msra.mxu0 0
    %1196 = vmatpush.bf16.msra.mxu0 0
    %1197 = vmatpush.bf16.msra.mxu0 %v856
    %1198 = vmatpush.bf16.msra.mxu0 %v852
    %1199 = vmatpush.bf16.msra.mxu0 %v848
    %1200 = vmatpush.bf16.msra.mxu0 %v844
    %1201 = vmatpush.bf16.msra.mxu0 %v840
    %1202 = vmatpush.bf16.msra.mxu0 %v836
    %1203 = vmatmul.bf16.gmra.mxu0 %v1011
    %v1204 = vpop.f32.mrf.mxu0
    %v1205 = vadd.f32 %v1192, %v1204
    %v1206 = vpop.f32.mrf.mxu0
    %1207 = vdwg.mxu0
    %1208 = vmatpush.bf16.msra.mxu0 %v737
    %1209 = vmatpush.bf16.msra.mxu0 %v733
    %1210 = vmatpush.bf16.msra.mxu0 %v729
    %1211 = vmatpush.bf16.msra.mxu0 %v725
    %1212 = vmatpush.bf16.msra.mxu0 %v721
    %1213 = vmatpush.bf16.msra.mxu0 %v717
    %1214 = vmatpush.bf16.msra.mxu0 %v713
    %1215 = vmatpush.bf16.msra.mxu0 %v709
    %1216 = vmatmul.bf16.gmra.mxu0 %v241
    %v1217 = vpop.f32.mrf.mxu0
    %v1218 = vadd.f32 0.0, %v1217
    %v1219 = vpop.f32.mrf.mxu0
    %1220 = vdwg.mxu0
    %1221 = vmatpush.bf16.msra.mxu0 %v769
    %1222 = vmatpush.bf16.msra.mxu0 %v765
    %1223 = vmatpush.bf16.msra.mxu0 %v761
    %1224 = vmatpush.bf16.msra.mxu0 %v757
    %1225 = vmatpush.bf16.msra.mxu0 %v753
    %1226 = vmatpush.bf16.msra.mxu0 %v749
    %1227 = vmatpush.bf16.msra.mxu0 %v745
    %1228 = vmatpush.bf16.msra.mxu0 %v741
    %1229 = vmatmul.bf16.gmra.mxu0 %v242
    %v1230 = vpop.f32.mrf.mxu0
    %v1231 = vadd.f32 %v1218, %v1230
    %v1232 = vpop.f32.mrf.mxu0
    %1233 = vdwg.mxu0
    %1234 = vmatpush.bf16.msra.mxu0 %v801
    %1235 = vmatpush.bf16.msra.mxu0 %v797
    %1236 = vmatpush.bf16.msra.mxu0 %v793
    %1237 = vmatpush.bf16.msra.mxu0 %v789
    %1238 = vmatpush.bf16.msra.mxu0 %v785
    %1239 = vmatpush.bf16.msra.mxu0 %v781
    %1240 = vmatpush.bf16.msra.mxu0 %v777
    %1241 = vmatpush.bf16.msra.mxu0 %v773
    %1242 = vmatmul.bf16.gmra.mxu0 %v243
    %v1243 = vpop.f32.mrf.mxu0
    %v1244 = vadd.f32 %v1231, %v1243
    %v1245 = vpop.f32.mrf.mxu0
    %1246 = vdwg.mxu0
    %1247 = vmatpush.bf16.msra.mxu0 %v833
    %1248 = vmatpush.bf16.msra.mxu0 %v829
    %1249 = vmatpush.bf16.msra.mxu0 %v825
    %1250 = vmatpush.bf16.msra.mxu0 %v821
    %1251 = vmatpush.bf16.msra.mxu0 %v817
    %1252 = vmatpush.bf16.msra.mxu0 %v813
    %1253 = vmatpush.bf16.msra.mxu0 %v809
    %1254 = vmatpush.bf16.msra.mxu0 %v805
    %1255 = vmatmul.bf16.gmra.mxu0 %v244
    %v1256 = vpop.f32.mrf.mxu0
    %v1257 = vadd.f32 %v1244, %v1256
    %v1258 = vpop.f32.mrf.mxu0
    %1259 = vdwg.mxu0
    %1260 = vmatpush.bf16.msra.mxu0 0
    %1261 = vmatpush.bf16.msra.mxu0 0
    %1262 = vmatpush.bf16.msra.mxu0 %v857
    %1263 = vmatpush.bf16.msra.mxu0 %v853
    %1264 = vmatpush.bf16.msra.mxu0 %v849
    %1265 = vmatpush.bf16.msra.mxu0 %v845
    %1266 = vmatpush.bf16.msra.mxu0 %v841
    %1267 = vmatpush.bf16.msra.mxu0 %v837
    %1268 = vmatmul.bf16.gmra.mxu0 %v1011
    %v1269 = vpop.f32.mrf.mxu0
    %v1270 = vadd.f32 %v1257, %v1269
    %v1271 = vpop.f32.mrf.mxu0
    %1272 = vdwg.mxu0
    %vm1273 = vcmask 1043456
    %v1274 = vsel %vm1273, %v1075, 0.0
    %v1275 = vrot.slane %v1274, 4
    %v1276 = vadd.f32 %v1274, %v1275
    %v1277 = vrot.slane %v1276, 2
    %v1278 = vadd.f32 %v1276, %v1277
    %v1279 = vrot.slane %v1278, 1
    %v1280 = vadd.f32 %v1278, %v1279
    %v1281 = vsel %vm1273, %v1140, 0.0
    %v1282 = vrot.slane %v1281, 4
    %v1283 = vadd.f32 %v1281, %v1282
    %v1284 = vrot.slane %v1283, 2
    %v1285 = vadd.f32 %v1283, %v1284
    %v1286 = vrot.slane %v1285, 1
    %v1287 = vadd.f32 %v1285, %v1286
    %v1288 = vsel %vm1273, %v1205, 0.0
    %v1289 = vrot.slane %v1288, 4
    %v1290 = vadd.f32 %v1288, %v1289
    %v1291 = vrot.slane %v1290, 2
    %v1292 = vadd.f32 %v1290, %v1291
    %v1293 = vrot.slane %v1292, 1
    %v1294 = vadd.f32 %v1292, %v1293
    %v1295 = vsel %vm1273, %v1270, 0.0
    %v1296 = vrot.slane %v1295, 4
    %v1297 = vadd.f32 %v1295, %v1296
    %v1298 = vrot.slane %v1297, 2
    %v1299 = vadd.f32 %v1297, %v1298
    %v1300 = vrot.slane %v1299, 1
    %v1301 = vadd.f32 %v1299, %v1300
    %v1302 = vrcp.pop 4.0
    %v1303 = vmul.f32 4.0, %v1302
    %v1304 = vsub.f32 1.0, %v1303
    %v1305 = vmul.f32 %v1302, %v1304
    %v1306 = vadd.f32 %v1302, %v1305
    %vm1307 = vweird.f32 %v1302
    %v1308 = vsel %vm1307, %v1302, %v1306
    %v1309 = vmul.f32 %v1280, %v1308
    %v1310 = vmul.f32 %v1287, %v1308
    %v1311 = vmul.f32 %v1294, %v1308
    %v1312 = vmul.f32 %v1301, %v1308
    %v1313 = vsub.f32 %v1075, %v1309
    %v1314 = vsub.f32 %v1140, %v1310
    %v1315 = vsub.f32 %v1205, %v1311
    %v1316 = vsub.f32 %v1270, %v1312
    %v1317 = vmul.f32 %v1313, %v1313
    %v1318 = vmul.f32 %v1314, %v1314
    %v1319 = vmul.f32 %v1315, %v1315
    %v1320 = vmul.f32 %v1316, %v1316
    %v1321 = vsel %vm1273, %v1317, 0.0
    %v1322 = vrot.slane %v1321, 4
    %v1323 = vadd.f32 %v1321, %v1322
    %v1324 = vrot.slane %v1323, 2
    %v1325 = vadd.f32 %v1323, %v1324
    %v1326 = vrot.slane %v1325, 1
    %v1327 = vadd.f32 %v1325, %v1326
    %v1328 = vsel %vm1273, %v1318, 0.0
    %v1329 = vrot.slane %v1328, 4
    %v1330 = vadd.f32 %v1328, %v1329
    %v1331 = vrot.slane %v1330, 2
    %v1332 = vadd.f32 %v1330, %v1331
    %v1333 = vrot.slane %v1332, 1
    %v1334 = vadd.f32 %v1332, %v1333
    %v1335 = vsel %vm1273, %v1319, 0.0
    %v1336 = vrot.slane %v1335, 4
    %v1337 = vadd.f32 %v1335, %v1336
    %v1338 = vrot.slane %v1337, 2
    %v1339 = vadd.f32 %v1337, %v1338
    %v1340 = vrot.slane %v1339, 1
    %v1341 = vadd.f32 %v1339, %v1340
    %v1342 = vsel %vm1273, %v1320, 0.0
    %v1343 = vrot.slane %v1342, 4
    %v1344 = vadd.f32 %v1342, %v1343
    %v1345 = vrot.slane %v1344, 2
    %v1346 = vadd.f32 %v1344, %v1345
    %v1347 = vrot.slane %v1346, 1
    %v1348 = vadd.f32 %v1346, %v1347
    %v1349 = vmul.f32 %v1327, %v1308
    %v1350 = vmul.f32 %v1334, %v1308
    %v1351 = vmul.f32 %v1341, %v1308
    %v1352 = vmul.f32 %v1348, %v1308
    %v1353 = vadd.f32 %v1349, 1e-05
    %v1354 = vadd.f32 %v1350, 1e-05
    %v1355 = vadd.f32 %v1351, 1e-05
    %v1356 = vadd.f32 %v1352, 1e-05
    %v1357 = vrsqrt.pop %v1353
    %v1358 = vmul.f32 %v1357, %v1353
    %v1359 = vmul.f32 %v1358, %v1357
    %v1360 = vmul.f32 0.5, %v1359
    %v1361 = vsub.f32 1.5, %v1360
    %v1362 = vmul.f32 %v1357, %v1361
    %vm1363 = vweird.f32 %v1353
    %vm1364 = vweird.f32 %v1357
    %vm1365 = vmor %vm1363, %vm1364
    %v1366 = vsel %vm1365, %v1357, %v1362
    %v1367 = vrsqrt.pop %v1354
    %v1368 = vmul.f32 %v1367, %v1354
    %v1369 = vmul.f32 %v1368, %v1367
    %v1370 = vmul.f32 0.5, %v1369
    %v1371 = vsub.f32 1.5, %v1370
    %v1372 = vmul.f32 %v1367, %v1371
    %vm1373 = vweird.f32 %v1354
    %vm1374 = vweird.f32 %v1367
    %vm1375 = vmor %vm1373, %vm1374
    %v1376 = vsel %vm1375, %v1367, %v1372
    %v1377 = vrsqrt.pop %v1355
    %v1378 = vmul.f32 %v1377, %v1355
    %v1379 = vmul.f32 %v1378, %v1377
    %v1380 = vmul.f32 0.5, %v1379
    %v1381 = vsub.f32 1.5, %v1380
    %v1382 = vmul.f32 %v1377, %v1381
    %vm1383 = vweird.f32 %v1355
    %vm1384 = vweird.f32 %v1377
    %vm1385 = vmor %vm1383, %vm1384
    %v1386 = vsel %vm1385, %v1377, %v1382
    %v1387 = vrsqrt.pop %v1356
    %v1388 = vmul.f32 %v1387, %v1356
    %v1389 = vmul.f32 %v1388, %v1387
    %v1390 = vmul.f32 0.5, %v1389
    %v1391 = vsub.f32 1.5, %v1390
    %v1392 = vmul.f32 %v1387, %v1391
    %vm1393 = vweird.f32 %v1356
    %vm1394 = vweird.f32 %v1387
    %vm1395 = vmor %vm1393, %vm1394
    %v1396 = vsel %vm1395, %v1387, %v1392
    %v1397 = vmul.f32 %v1313, %v1366
    %v1398 = vmul.f32 %v1314, %v1376
    %v1399 = vmul.f32 %v1315, %v1386
    %v1400 = vmul.f32 %v1316, %v1396
    %v1401 = vld [vmem:[#allocation7] sm:$0xf]
    %v1403 = vperm.slane %v1401, 0
    %v1404 = vperm.slane %v1401, 1
    %v1405 = vperm.slane %v1401, 2
    %v1406 = vperm.slane %v1401, 3
    %v1411 = vmul.f32 %v1397, %v1403
    %v1412 = vmul.f32 %v1398, %v1404
    %v1413 = vmul.f32 %v1399, %v1405
    %v1414 = vmul.f32 %v1400, %v1406
    %v1415 = vld [vmem:[#allocation7 + $0x4] sm:$0xf]
    %v1417 = vperm.slane %v1415, 0
    %v1418 = vperm.slane %v1415, 1
    %v1419 = vperm.slane %v1415, 2
    %v1420 = vperm.slane %v1415, 3
    %v1425 = vadd.f32 %v1411, %v1417
    %v1426 = vadd.f32 %v1412, %v1418
    %v1427 = vadd.f32 %v1413, %v1419
    %v1428 = vadd.f32 %v1414, %v1420
    %vm1429 = vcmp.ge.f32.partialorder %v1425, 0.0
    %vm1430 = vcmp.ge.f32.partialorder %v1426, 0.0
    %vm1431 = vcmp.ge.f32.partialorder %v1427, 0.0
    %vm1432 = vcmp.ge.f32.partialorder %v1428, 0.0
    %v1433 = vmul.f32 %v1425, 0.01
    %v1434 = vmul.f32 %v1426, 0.01
    %v1435 = vmul.f32 %v1427, 0.01
    %v1436 = vmul.f32 %v1428, 0.01
    %v1437 = vsel %vm1429, %v1425, %v1433
    %v1438 = vsel %vm1430, %v1426, %v1434
    %v1439 = vsel %vm1431, %v1427, %v1435
    %v1440 = vsel %vm1432, %v1428, %v1436
    %v1441 = vld [vmem:[#allocation4 + $0x4c0] sm:$0xff]
    %v1442 = vld [vmem:[#allocation4 + $0x4d0] sm:$0xff]
    %v1443 = vld [vmem:[#allocation4 + $0x4e0] sm:$0xff]
    %v1444 = vld [vmem:[#allocation4 + $0x4f0] sm:$0xff]
    %v1445 = vld [vmem:[#allocation4 + $0x500] sm:$0xff]
    %v1446 = vld [vmem:[#allocation4 + $0x510] sm:$0xff]
    %v1447 = vld [vmem:[#allocation4 + $0x520] sm:$0xff]
    %v1448 = vld [vmem:[#allocation4 + $0x530] sm:$0xff]
    %v1449 = vld [vmem:[#allocation4 + $0x540] sm:$0xff]
    %v1450 = vld [vmem:[#allocation4 + $0x550] sm:$0xff]
    %v1451 = vld [vmem:[#allocation4 + $0x560] sm:$0xff]
    %v1452 = vld [vmem:[#allocation4 + $0x570] sm:$0xff]
    %v1453 = vld [vmem:[#allocation4 + $0x580] sm:$0xff]
    %v1454 = vld [vmem:[#allocation4 + $0x590] sm:$0xff]
    %v1455 = vld [vmem:[#allocation4 + $0x5a0] sm:$0xff]
    %v1456 = vld [vmem:[#allocation4 + $0x5b0] sm:$0xff]
    %v1457 = vld [vmem:[#allocation4 + $0x5c0] sm:$0xff]
    %v1458 = vld [vmem:[#allocation4 + $0x5d0] sm:$0xff]
    %v1459 = vld [vmem:[#allocation4 + $0x5e0] sm:$0xff]
    %v1460 = vld [vmem:[#allocation4 + $0x5f0] sm:$0xff]
    %v1461 = vld [vmem:[#allocation4 + $0x600] sm:$0xff]
    %v1462 = vld [vmem:[#allocation4 + $0x610] sm:$0xff]
    %v1463 = vld [vmem:[#allocation4 + $0x620] sm:$0xff]
    %v1464 = vld [vmem:[#allocation4 + $0x630] sm:$0xff]
    %v1465 = vld [vmem:[#allocation4 + $0x640] sm:$0xff]
    %v1466 = vld [vmem:[#allocation4 + $0x650] sm:$0xff]
    %v1467 = vld [vmem:[#allocation4 + $0x660] sm:$0xff]
    %v1468 = vld [vmem:[#allocation4 + $0x670] sm:$0xff]
    %v1469 = vld [vmem:[#allocation4 + $0x680] sm:$0xff]
    %v1470 = vld [vmem:[#allocation4 + $0x690] sm:$0xff]
    %v1471 = vld [vmem:[#allocation4 + $0x6a0] sm:$0xff]
    %v1472 = vld [vmem:[#allocation4 + $0x6b0] sm:$0xff]
    %v1473 = vld [vmem:[#allocation4 + $0x6c0] sm:$0xff]
    %v1474 = vld [vmem:[#allocation4 + $0x6d0] sm:$0xff]
    %v1475 = vld [vmem:[#allocation4 + $0x6e0] sm:$0xff]
    %v1476 = vld [vmem:[#allocation4 + $0x6f0] sm:$0xff]
    %v1477 = vld [vmem:[#allocation4 + $0x700] sm:$0xff]
    %v1478 = vld [vmem:[#allocation4 + $0x710] sm:$0xff]
    %v1479 = vld [vmem:[#allocation4 + $0x720] sm:$0xff]
    %v1480 = vld [vmem:[#allocation4 + $0x730] sm:$0xff]
    %v1481 = vld [vmem:[#allocation4 + $0x740] sm:$0xff]
    %v1482 = vld [vmem:[#allocation4 + $0x750] sm:$0xff]
    %v1483 = vld [vmem:[#allocation4 + $0x760] sm:$0xff]
    %v1484 = vld [vmem:[#allocation4 + $0x770] sm:$0xff]
    %v1485 = vld [vmem:[#allocation4 + $0x780] sm:$0xff]
    %v1486 = vld [vmem:[#allocation4 + $0x790] sm:$0xff]
    %v1487 = vld [vmem:[#allocation4 + $0x7a0] sm:$0xff]
    %v1488 = vld [vmem:[#allocation4 + $0x7b0] sm:$0xff]
    %v1489 = vld [vmem:[#allocation4 + $0x7c0] sm:$0xff]
    %v1490 = vld [vmem:[#allocation4 + $0x7d0] sm:$0xff]
    %v1491 = vld [vmem:[#allocation4 + $0x7e0] sm:$0xff]
    %v1492 = vld [vmem:[#allocation4 + $0x7f0] sm:$0xff]
    %v1493 = vld [vmem:[#allocation4 + $0x800] sm:$0xff]
    %v1494 = vld [vmem:[#allocation4 + $0x810] sm:$0xff]
    %v1495 = vld [vmem:[#allocation4 + $0x820] sm:$0xff]
    %v1496 = vld [vmem:[#allocation4 + $0x830] sm:$0xff]
    %v1497 = vld [vmem:[#allocation4 + $0x840] sm:$0xff]
    %v1498 = vld [vmem:[#allocation4 + $0x850] sm:$0xff]
    %v1499 = vld [vmem:[#allocation4 + $0x860] sm:$0xff]
    %v1500 = vld [vmem:[#allocation4 + $0x870] sm:$0xff]
    %v1501 = vld [vmem:[#allocation4 + $0x880] sm:$0xff]
    %v1502 = vld [vmem:[#allocation4 + $0x890] sm:$0xff]
    %v1503 = vld [vmem:[#allocation4 + $0x8a0] sm:$0xff]
    %v1504 = vld [vmem:[#allocation4 + $0x8b0] sm:$0xff]
    %v1505 = vpack.c.bf16 %v1437, %v1437
    %v1506 = vpack.c.bf16 %v1438, %v1438
    %v1507 = vpack.c.bf16 %v1439, %v1439
    %v1508 = vpack.c.bf16 %v1440, %v1440
    %v1573 = vunpack.c.l.b16 %v1441
    %v1574 = vunpack.c.h.b16 %v1441
    %v1575 = vunpack.c.l.b16 %v1442
    %v1576 = vunpack.c.h.b16 %v1442
    %v1577 = vunpack.c.l.b16 %v1443
    %v1578 = vunpack.c.h.b16 %v1443
    %v1579 = vunpack.c.l.b16 %v1444
    %v1580 = vunpack.c.h.b16 %v1444
    %v1581 = vunpack.c.l.b16 %v1445
    %v1582 = vunpack.c.h.b16 %v1445
    %v1583 = vunpack.c.l.b16 %v1446
    %v1584 = vunpack.c.h.b16 %v1446
    %v1585 = vunpack.c.l.b16 %v1447
    %v1586 = vunpack.c.h.b16 %v1447
    %v1587 = vunpack.c.l.b16 %v1448
    %v1588 = vunpack.c.h.b16 %v1448
    %v1589 = vunpack.c.l.b16 %v1449
    %v1590 = vunpack.c.h.b16 %v1449
    %v1591 = vunpack.c.l.b16 %v1450
    %v1592 = vunpack.c.h.b16 %v1450
    %v1593 = vunpack.c.l.b16 %v1451
    %v1594 = vunpack.c.h.b16 %v1451
    %v1595 = vunpack.c.l.b16 %v1452
    %v1596 = vunpack.c.h.b16 %v1452
    %v1597 = vunpack.c.l.b16 %v1453
    %v1598 = vunpack.c.h.b16 %v1453
    %v1599 = vunpack.c.l.b16 %v1454
    %v1600 = vunpack.c.h.b16 %v1454
    %v1601 = vunpack.c.l.b16 %v1455
    %v1602 = vunpack.c.h.b16 %v1455
    %v1603 = vunpack.c.l.b16 %v1456
    %v1604 = vunpack.c.h.b16 %v1456
    %v1605 = vunpack.c.l.b16 %v1457
    %v1606 = vunpack.c.h.b16 %v1457
    %v1607 = vunpack.c.l.b16 %v1458
    %v1608 = vunpack.c.h.b16 %v1458
    %v1609 = vunpack.c.l.b16 %v1459
    %v1610 = vunpack.c.h.b16 %v1459
    %v1611 = vunpack.c.l.b16 %v1460
    %v1612 = vunpack.c.h.b16 %v1460
    %v1613 = vunpack.c.l.b16 %v1461
    %v1614 = vunpack.c.h.b16 %v1461
    %v1615 = vunpack.c.l.b16 %v1462
    %v1616 = vunpack.c.h.b16 %v1462
    %v1617 = vunpack.c.l.b16 %v1463
    %v1618 = vunpack.c.h.b16 %v1463
    %v1619 = vunpack.c.l.b16 %v1464
    %v1620 = vunpack.c.h.b16 %v1464
    %v1621 = vunpack.c.l.b16 %v1465
    %v1622 = vunpack.c.h.b16 %v1465
    %v1623 = vunpack.c.l.b16 %v1466
    %v1624 = vunpack.c.h.b16 %v1466
    %v1625 = vunpack.c.l.b16 %v1467
    %v1626 = vunpack.c.h.b16 %v1467
    %v1627 = vunpack.c.l.b16 %v1468
    %v1628 = vunpack.c.h.b16 %v1468
    %v1629 = vunpack.c.l.b16 %v1469
    %v1630 = vunpack.c.h.b16 %v1469
    %v1631 = vunpack.c.l.b16 %v1470
    %v1632 = vunpack.c.h.b16 %v1470
    %v1633 = vunpack.c.l.b16 %v1471
    %v1634 = vunpack.c.h.b16 %v1471
    %v1635 = vunpack.c.l.b16 %v1472
    %v1636 = vunpack.c.h.b16 %v1472
    %v1637 = vunpack.c.l.b16 %v1473
    %v1638 = vunpack.c.h.b16 %v1473
    %v1639 = vunpack.c.l.b16 %v1474
    %v1640 = vunpack.c.h.b16 %v1474
    %v1641 = vunpack.c.l.b16 %v1475
    %v1642 = vunpack.c.h.b16 %v1475
    %v1643 = vunpack.c.l.b16 %v1476
    %v1644 = vunpack.c.h.b16 %v1476
    %v1645 = vunpack.c.l.b16 %v1477
    %v1646 = vunpack.c.h.b16 %v1477
    %v1647 = vunpack.c.l.b16 %v1478
    %v1648 = vunpack.c.h.b16 %v1478
    %v1649 = vunpack.c.l.b16 %v1479
    %v1650 = vunpack.c.h.b16 %v1479
    %v1651 = vunpack.c.l.b16 %v1480
    %v1652 = vunpack.c.h.b16 %v1480
    %v1653 = vunpack.c.l.b16 %v1481
    %v1654 = vunpack.c.h.b16 %v1481
    %v1655 = vunpack.c.l.b16 %v1482
    %v1656 = vunpack.c.h.b16 %v1482
    %v1657 = vunpack.c.l.b16 %v1483
    %v1658 = vunpack.c.h.b16 %v1483
    %v1659 = vunpack.c.l.b16 %v1484
    %v1660 = vunpack.c.h.b16 %v1484
    %v1661 = vunpack.c.l.b16 %v1485
    %v1662 = vunpack.c.h.b16 %v1485
    %v1663 = vunpack.c.l.b16 %v1486
    %v1664 = vunpack.c.h.b16 %v1486
    %v1665 = vunpack.c.l.b16 %v1487
    %v1666 = vunpack.c.h.b16 %v1487
    %v1667 = vunpack.c.l.b16 %v1488
    %v1668 = vunpack.c.h.b16 %v1488
    %v1669 = vunpack.c.l.b16 %v1489
    %v1670 = vunpack.c.h.b16 %v1489
    %v1671 = vunpack.c.l.b16 %v1490
    %v1672 = vunpack.c.h.b16 %v1490
    %v1673 = vunpack.c.l.b16 %v1491
    %v1674 = vunpack.c.h.b16 %v1491
    %v1675 = vunpack.c.l.b16 %v1492
    %v1676 = vunpack.c.h.b16 %v1492
    %v1677 = vunpack.c.l.b16 %v1493
    %v1678 = vunpack.c.h.b16 %v1493
    %v1679 = vunpack.c.l.b16 %v1494
    %v1680 = vunpack.c.h.b16 %v1494
    %v1681 = vunpack.c.l.b16 %v1495
    %v1682 = vunpack.c.h.b16 %v1495
    %v1683 = vunpack.c.l.b16 %v1496
    %v1684 = vunpack.c.h.b16 %v1496
    %v1685 = vunpack.c.l.b16 %v1497
    %v1686 = vunpack.c.h.b16 %v1497
    %v1687 = vunpack.c.l.b16 %v1498
    %v1688 = vunpack.c.h.b16 %v1498
    %v1689 = vunpack.c.l.b16 %v1499
    %v1690 = vunpack.c.h.b16 %v1499
    %v1691 = vunpack.c.l.b16 %v1500
    %v1692 = vunpack.c.h.b16 %v1500
    %v1693 = vunpack.c.l.b16 %v1501
    %v1694 = vunpack.c.h.b16 %v1501
    %v1695 = vunpack.c.l.b16 %v1502
    %v1696 = vunpack.c.h.b16 %v1502
    %v1697 = vunpack.c.l.b16 %v1503
    %v1698 = vunpack.c.h.b16 %v1503
    %v1699 = vunpack.c.l.b16 %v1504
    %v1700 = vunpack.c.h.b16 %v1504
    %v1701 = vpack.c.b16 %v1575, %v1573
    %v1702 = vpack.c.b16 %v1576, %v1574
    %v1703 = vpack.c.b16 %v1579, %v1577
    %v1704 = vpack.c.b16 %v1580, %v1578
    %v1705 = vpack.c.b16 %v1583, %v1581
    %v1706 = vpack.c.b16 %v1584, %v1582
    %v1707 = vpack.c.b16 %v1587, %v1585
    %v1708 = vpack.c.b16 %v1588, %v1586
    %v1709 = vpack.c.b16 %v1591, %v1589
    %v1710 = vpack.c.b16 %v1592, %v1590
    %v1711 = vpack.c.b16 %v1595, %v1593
    %v1712 = vpack.c.b16 %v1596, %v1594
    %v1713 = vpack.c.b16 %v1599, %v1597
    %v1714 = vpack.c.b16 %v1600, %v1598
    %v1715 = vpack.c.b16 %v1603, %v1601
    %v1716 = vpack.c.b16 %v1604, %v1602
    %v1717 = vpack.c.b16 %v1607, %v1605
    %v1718 = vpack.c.b16 %v1608, %v1606
    %v1719 = vpack.c.b16 %v1611, %v1609
    %v1720 = vpack.c.b16 %v1612, %v1610
    %v1721 = vpack.c.b16 %v1615, %v1613
    %v1722 = vpack.c.b16 %v1616, %v1614
    %v1723 = vpack.c.b16 %v1619, %v1617
    %v1724 = vpack.c.b16 %v1620, %v1618
    %v1725 = vpack.c.b16 %v1623, %v1621
    %v1726 = vpack.c.b16 %v1624, %v1622
    %v1727 = vpack.c.b16 %v1627, %v1625
    %v1728 = vpack.c.b16 %v1628, %v1626
    %v1729 = vpack.c.b16 %v1631, %v1629
    %v1730 = vpack.c.b16 %v1632, %v1630
    %v1731 = vpack.c.b16 %v1635, %v1633
    %v1732 = vpack.c.b16 %v1636, %v1634
    %v1733 = vpack.c.b16 %v1639, %v1637
    %v1734 = vpack.c.b16 %v1640, %v1638
    %v1735 = vpack.c.b16 %v1643, %v1641
    %v1736 = vpack.c.b16 %v1644, %v1642
    %v1737 = vpack.c.b16 %v1647, %v1645
    %v1738 = vpack.c.b16 %v1648, %v1646
    %v1739 = vpack.c.b16 %v1651, %v1649
    %v1740 = vpack.c.b16 %v1652, %v1650
    %v1741 = vpack.c.b16 %v1655, %v1653
    %v1742 = vpack.c.b16 %v1656, %v1654
    %v1743 = vpack.c.b16 %v1659, %v1657
    %v1744 = vpack.c.b16 %v1660, %v1658
    %v1745 = vpack.c.b16 %v1663, %v1661
    %v1746 = vpack.c.b16 %v1664, %v1662
    %v1747 = vpack.c.b16 %v1667, %v1665
    %v1748 = vpack.c.b16 %v1668, %v1666
    %v1749 = vpack.c.b16 %v1671, %v1669
    %v1750 = vpack.c.b16 %v1672, %v1670
    %v1751 = vpack.c.b16 %v1675, %v1673
    %v1752 = vpack.c.b16 %v1676, %v1674
    %v1753 = vpack.c.b16 %v1679, %v1677
    %v1754 = vpack.c.b16 %v1680, %v1678
    %v1755 = vpack.c.b16 %v1683, %v1681
    %v1756 = vpack.c.b16 %v1684, %v1682
    %v1757 = vpack.c.b16 %v1687, %v1685
    %v1758 = vpack.c.b16 %v1688, %v1686
    %v1759 = vpack.c.b16 %v1691, %v1689
    %v1760 = vpack.c.b16 %v1692, %v1690
    %v1761 = vpack.c.b16 %v1695, %v1693
    %v1762 = vpack.c.b16 %v1696, %v1694
    %v1763 = vpack.c.b16 %v1699, %v1697
    %v1764 = vpack.c.b16 %v1700, %v1698
    %1829 = vmatpush.bf16.msra.mxu0 %v1715
    %1830 = vmatpush.bf16.msra.mxu0 %v1713
    %1831 = vmatpush.bf16.msra.mxu0 %v1711
    %1832 = vmatpush.bf16.msra.mxu0 %v1709
    %1833 = vmatpush.bf16.msra.mxu0 %v1707
    %1834 = vmatpush.bf16.msra.mxu0 %v1705
    %1835 = vmatpush.bf16.msra.mxu0 %v1703
    %1836 = vmatpush.bf16.msra.mxu0 %v1701
    %1837 = vmatmul.bf16.gmra.mxu0 %v1505
    %v1838 = vpop.f32.mrf.mxu0
    %v1839 = vadd.f32 0.0, %v1838
    %v1840 = vpop.f32.mrf.mxu0
    %1841 = vdwg.mxu0
    %1842 = vmatpush.bf16.msra.mxu0 %v1731
    %1843 = vmatpush.bf16.msra.mxu0 %v1729
    %1844 = vmatpush.bf16.msra.mxu0 %v1727
    %1845 = vmatpush.bf16.msra.mxu0 %v1725
    %1846 = vmatpush.bf16.msra.mxu0 %v1723
    %1847 = vmatpush.bf16.msra.mxu0 %v1721
    %1848 = vmatpush.bf16.msra.mxu0 %v1719
    %1849 = vmatpush.bf16.msra.mxu0 %v1717
    %1850 = vmatmul.bf16.gmra.mxu0 %v1506
    %v1851 = vpop.f32.mrf.mxu0
    %v1852 = vadd.f32 %v1839, %v1851
    %v1853 = vpop.f32.mrf.mxu0
    %1854 = vdwg.mxu0
    %1855 = vmatpush.bf16.msra.mxu0 %v1747
    %1856 = vmatpush.bf16.msra.mxu0 %v1745
    %1857 = vmatpush.bf16.msra.mxu0 %v1743
    %1858 = vmatpush.bf16.msra.mxu0 %v1741
    %1859 = vmatpush.bf16.msra.mxu0 %v1739
    %1860 = vmatpush.bf16.msra.mxu0 %v1737
    %1861 = vmatpush.bf16.msra.mxu0 %v1735
    %1862 = vmatpush.bf16.msra.mxu0 %v1733
    %1863 = vmatmul.bf16.gmra.mxu0 %v1507
    %v1864 = vpop.f32.mrf.mxu0
    %v1865 = vadd.f32 %v1852, %v1864
    %v1866 = vpop.f32.mrf.mxu0
    %1867 = vdwg.mxu0
    %1868 = vmatpush.bf16.msra.mxu0 %v1763
    %1869 = vmatpush.bf16.msra.mxu0 %v1761
    %1870 = vmatpush.bf16.msra.mxu0 %v1759
    %1871 = vmatpush.bf16.msra.mxu0 %v1757
    %1872 = vmatpush.bf16.msra.mxu0 %v1755
    %1873 = vmatpush.bf16.msra.mxu0 %v1753
    %1874 = vmatpush.bf16.msra.mxu0 %v1751
    %1875 = vmatpush.bf16.msra.mxu0 %v1749
    %1876 = vmatmul.bf16.gmra.mxu0 %v1508
    %v1877 = vpop.f32.mrf.mxu0
    %v1878 = vadd.f32 %v1865, %v1877
    %v1879 = vpop.f32.mrf.mxu0
    %1880 = vdwg.mxu0
    %1881 = vmatpush.bf16.msra.mxu0 %v1716
    %1882 = vmatpush.bf16.msra.mxu0 %v1714
    %1883 = vmatpush.bf16.msra.mxu0 %v1712
    %1884 = vmatpush.bf16.msra.mxu0 %v1710
    %1885 = vmatpush.bf16.msra.mxu0 %v1708
    %1886 = vmatpush.bf16.msra.mxu0 %v1706
    %1887 = vmatpush.bf16.msra.mxu0 %v1704
    %1888 = vmatpush.bf16.msra.mxu0 %v1702
    %1889 = vmatmul.bf16.gmra.mxu0 %v1505
    %v1890 = vpop.f32.mrf.mxu0
    %v1891 = vadd.f32 0.0, %v1890
    %v1892 = vpop.f32.mrf.mxu0
    %1893 = vdwg.mxu0
    %1894 = vmatpush.bf16.msra.mxu0 %v1732
    %1895 = vmatpush.bf16.msra.mxu0 %v1730
    %1896 = vmatpush.bf16.msra.mxu0 %v1728
    %1897 = vmatpush.bf16.msra.mxu0 %v1726
    %1898 = vmatpush.bf16.msra.mxu0 %v1724
    %1899 = vmatpush.bf16.msra.mxu0 %v1722
    %1900 = vmatpush.bf16.msra.mxu0 %v1720
    %1901 = vmatpush.bf16.msra.mxu0 %v1718
    %1902 = vmatmul.bf16.gmra.mxu0 %v1506
    %v1903 = vpop.f32.mrf.mxu0
    %v1904 = vadd.f32 %v1891, %v1903
    %v1905 = vpop.f32.mrf.mxu0
    %1906 = vdwg.mxu0
    %1907 = vmatpush.bf16.msra.mxu0 %v1748
    %1908 = vmatpush.bf16.msra.mxu0 %v1746
    %1909 = vmatpush.bf16.msra.mxu0 %v1744
    %1910 = vmatpush.bf16.msra.mxu0 %v1742
    %1911 = vmatpush.bf16.msra.mxu0 %v1740
    %1912 = vmatpush.bf16.msra.mxu0 %v1738
    %1913 = vmatpush.bf16.msra.mxu0 %v1736
    %1914 = vmatpush.bf16.msra.mxu0 %v1734
    %1915 = vmatmul.bf16.gmra.mxu0 %v1507
    %v1916 = vpop.f32.mrf.mxu0
    %v1917 = vadd.f32 %v1904, %v1916
    %v1918 = vpop.f32.mrf.mxu0
    %1919 = vdwg.mxu0
    %1920 = vmatpush.bf16.msra.mxu0 %v1764
    %1921 = vmatpush.bf16.msra.mxu0 %v1762
    %1922 = vmatpush.bf16.msra.mxu0 %v1760
    %1923 = vmatpush.bf16.msra.mxu0 %v1758
    %1924 = vmatpush.bf16.msra.mxu0 %v1756
    %1925 = vmatpush.bf16.msra.mxu0 %v1754
    %1926 = vmatpush.bf16.msra.mxu0 %v1752
    %1927 = vmatpush.bf16.msra.mxu0 %v1750
    %1928 = vmatmul.bf16.gmra.mxu0 %v1508
    %v1929 = vpop.f32.mrf.mxu0
    %v1930 = vadd.f32 %v1917, %v1929
    %v1931 = vpop.f32.mrf.mxu0
    %1932 = vdwg.mxu0
    %v1933 = vsel %vm1273, %v1878, 0.0
    %v1934 = vrot.slane %v1933, 4
    %v1935 = vadd.f32 %v1933, %v1934
    %v1936 = vrot.slane %v1935, 2
    %v1937 = vadd.f32 %v1935, %v1936
    %v1938 = vrot.slane %v1937, 1
    %v1939 = vadd.f32 %v1937, %v1938
    %v1940 = vsel %vm1273, %v1930, 0.0
    %v1941 = vrot.slane %v1940, 4
    %v1942 = vadd.f32 %v1940, %v1941
    %v1943 = vrot.slane %v1942, 2
    %v1944 = vadd.f32 %v1942, %v1943
    %v1945 = vrot.slane %v1944, 1
    %v1946 = vadd.f32 %v1944, %v1945
    %v1947 = vmul.f32 %v1939, %v1308
    %v1948 = vmul.f32 %v1946, %v1308
    %v1949 = vsub.f32 %v1878, %v1947
    %v1950 = vsub.f32 %v1930, %v1948
    %v1951 = vmul.f32 %v1949, %v1949
    %v1952 = vmul.f32 %v1950, %v1950
    %v1953 = vsel %vm1273, %v1951, 0.0
    %v1954 = vrot.slane %v1953, 4
    %v1955 = vadd.f32 %v1953, %v1954
    %v1956 = vrot.slane %v1955, 2
    %v1957 = vadd.f32 %v1955, %v1956
    %v1958 = vrot.slane %v1957, 1
    %v1959 = vadd.f32 %v1957, %v1958
    %v1960 = vsel %vm1273, %v1952, 0.0
    %v1961 = vrot.slane %v1960, 4
    %v1962 = vadd.f32 %v1960, %v1961
    %v1963 = vrot.slane %v1962, 2
    %v1964 = vadd.f32 %v1962, %v1963
    %v1965 = vrot.slane %v1964, 1
    %v1966 = vadd.f32 %v1964, %v1965
    %v1967 = vmul.f32 %v1959, %v1308
    %v1968 = vmul.f32 %v1966, %v1308
    %v1969 = vadd.f32 %v1967, 1e-05
    %v1970 = vadd.f32 %v1968, 1e-05
    %v1971 = vrsqrt.pop %v1969
    %v1972 = vmul.f32 %v1971, %v1969
    %v1973 = vmul.f32 %v1972, %v1971
    %v1974 = vmul.f32 0.5, %v1973
    %v1975 = vsub.f32 1.5, %v1974
    %v1976 = vmul.f32 %v1971, %v1975
    %vm1977 = vweird.f32 %v1969
    %vm1978 = vweird.f32 %v1971
    %vm1979 = vmor %vm1977, %vm1978
    %v1980 = vsel %vm1979, %v1971, %v1976
    %v1981 = vrsqrt.pop %v1970
    %v1982 = vmul.f32 %v1981, %v1970
    %v1983 = vmul.f32 %v1982, %v1981
    %v1984 = vmul.f32 0.5, %v1983
    %v1985 = vsub.f32 1.5, %v1984
    %v1986 = vmul.f32 %v1981, %v1985
    %vm1987 = vweird.f32 %v1970
    %vm1988 = vweird.f32 %v1981
    %vm1989 = vmor %vm1987, %vm1988
    %v1990 = vsel %vm1989, %v1981, %v1986
    %v1991 = vmul.f32 %v1949, %v1980
    %v1992 = vmul.f32 %v1950, %v1990
    %v1993 = vld [vmem:[#allocation7 + $0x8] sm:$0x3]
    %v1995 = vperm.slane %v1993, 0
    %v1996 = vperm.slane %v1993, 1
    %v1999 = vmul.f32 %v1991, %v1995
    %v2000 = vmul.f32 %v1992, %v1996
    %v2001 = vld [vmem:[#allocation7 + $0xa] sm:$0x3]
    %v2003 = vperm.slane %v2001, 0
    %v2004 = vperm.slane %v2001, 1
    %v2007 = vadd.f32 %v1999, %v2003
    %v2008 = vadd.f32 %v2000, %v2004
    %vm2009 = vcmp.ge.f32.partialorder %v2007, 0.0
    %vm2010 = vcmp.ge.f32.partialorder %v2008, 0.0
    %v2011 = vmul.f32 %v2007, 0.01
    %v2012 = vmul.f32 %v2008, 0.01
    %v2013 = vsel %vm2009, %v2007, %v2011
    %v2014 = vsel %vm2010, %v2008, %v2012
    %v2015 = vld [vmem:[#allocation4 + $0x8c0] sm:$0xf]
    %v2016 = vld [vmem:[#allocation4 + $0x8d0] sm:$0xf]
    %v2017 = vld [vmem:[#allocation4 + $0x8e0] sm:$0xf]
    %v2018 = vld [vmem:[#allocation4 + $0x8f0] sm:$0xf]
    %v2019 = vld [vmem:[#allocation4 + $0x900] sm:$0xf]
    %v2020 = vld [vmem:[#allocation4 + $0x910] sm:$0xf]
    %v2021 = vld [vmem:[#allocation4 + $0x920] sm:$0xf]
    %v2022 = vld [vmem:[#allocation4 + $0x930] sm:$0xf]
    %v2023 = vld [vmem:[#allocation4 + $0x940] sm:$0xf]
    %v2024 = vld [vmem:[#allocation4 + $0x950] sm:$0xf]
    %v2025 = vld [vmem:[#allocation4 + $0x960] sm:$0xf]
    %v2026 = vld [vmem:[#allocation4 + $0x970] sm:$0xf]
    %v2027 = vld [vmem:[#allocation4 + $0x980] sm:$0xf]
    %v2028 = vld [vmem:[#allocation4 + $0x990] sm:$0xf]
    %v2029 = vld [vmem:[#allocation4 + $0x9a0] sm:$0xf]
    %v2030 = vld [vmem:[#allocation4 + $0x9b0] sm:$0xf]
    %v2031 = vld [vmem:[#allocation4 + $0x9c0] sm:$0xf]
    %v2032 = vld [vmem:[#allocation4 + $0x9d0] sm:$0xf]
    %v2033 = vld [vmem:[#allocation4 + $0x9e0] sm:$0xf]
    %v2034 = vld [vmem:[#allocation4 + $0x9f0] sm:$0xf]
    %v2035 = vld [vmem:[#allocation4 + $0xa00] sm:$0xf]
    %v2036 = vld [vmem:[#allocation4 + $0xa10] sm:$0xf]
    %v2037 = vld [vmem:[#allocation4 + $0xa20] sm:$0xf]
    %v2038 = vld [vmem:[#allocation4 + $0xa30] sm:$0xf]
    %v2039 = vld [vmem:[#allocation4 + $0xa40] sm:$0xf]
    %v2040 = vld [vmem:[#allocation4 + $0xa50] sm:$0xf]
    %v2041 = vld [vmem:[#allocation4 + $0xa60] sm:$0xf]
    %v2042 = vld [vmem:[#allocation4 + $0xa70] sm:$0xf]
    %v2043 = vld [vmem:[#allocation4 + $0xa80] sm:$0xf]
    %v2044 = vld [vmem:[#allocation4 + $0xa90] sm:$0xf]
    %v2045 = vld [vmem:[#allocation4 + $0xaa0] sm:$0xf]
    %v2046 = vld [vmem:[#allocation4 + $0xab0] sm:$0xf]
    %v2047 = vpack.c.bf16 %v2013, %v2013
    %v2048 = vpack.c.bf16 %v2014, %v2014
    %v2081 = vunpack.c.l.b16 %v2015
    %v2082 = vunpack.c.l.b16 %v2016
    %v2083 = vunpack.c.l.b16 %v2017
    %v2084 = vunpack.c.l.b16 %v2018
    %v2085 = vunpack.c.l.b16 %v2019
    %v2086 = vunpack.c.l.b16 %v2020
    %v2087 = vunpack.c.l.b16 %v2021
    %v2088 = vunpack.c.l.b16 %v2022
    %v2089 = vunpack.c.l.b16 %v2023
    %v2090 = vunpack.c.l.b16 %v2024
    %v2091 = vunpack.c.l.b16 %v2025
    %v2092 = vunpack.c.l.b16 %v2026
    %v2093 = vunpack.c.l.b16 %v2027
    %v2094 = vunpack.c.l.b16 %v2028
    %v2095 = vunpack.c.l.b16 %v2029
    %v2096 = vunpack.c.l.b16 %v2030
    %v2097 = vunpack.c.l.b16 %v2031
    %v2098 = vunpack.c.l.b16 %v2032
    %v2099 = vunpack.c.l.b16 %v2033
    %v2100 = vunpack.c.l.b16 %v2034
    %v2101 = vunpack.c.l.b16 %v2035
    %v2102 = vunpack.c.l.b16 %v2036
    %v2103 = vunpack.c.l.b16 %v2037
    %v2104 = vunpack.c.l.b16 %v2038
    %v2105 = vunpack.c.l.b16 %v2039
    %v2106 = vunpack.c.l.b16 %v2040
    %v2107 = vunpack.c.l.b16 %v2041
    %v2108 = vunpack.c.l.b16 %v2042
    %v2109 = vunpack.c.l.b16 %v2043
    %v2110 = vunpack.c.l.b16 %v2044
    %v2111 = vunpack.c.l.b16 %v2045
    %v2112 = vunpack.c.l.b16 %v2046
    %v2113 = vpack.c.b16 %v2082, %v2081
    %v2114 = vpack.c.b16 %v2084, %v2083
    %v2115 = vpack.c.b16 %v2086, %v2085
    %v2116 = vpack.c.b16 %v2088, %v2087
    %v2117 = vpack.c.b16 %v2090, %v2089
    %v2118 = vpack.c.b16 %v2092, %v2091
    %v2119 = vpack.c.b16 %v2094, %v2093
    %v2120 = vpack.c.b16 %v2096, %v2095
    %v2121 = vpack.c.b16 %v2098, %v2097
    %v2122 = vpack.c.b16 %v2100, %v2099
    %v2123 = vpack.c.b16 %v2102, %v2101
    %v2124 = vpack.c.b16 %v2104, %v2103
    %v2125 = vpack.c.b16 %v2106, %v2105
    %v2126 = vpack.c.b16 %v2108, %v2107
    %v2127 = vpack.c.b16 %v2110, %v2109
    %v2128 = vpack.c.b16 %v2112, %v2111
    %2145 = vmatpush.bf16.msra.mxu0 %v2120
    %2146 = vmatpush.bf16.msra.mxu0 %v2119
    %2147 = vmatpush.bf16.msra.mxu0 %v2118
    %2148 = vmatpush.bf16.msra.mxu0 %v2117
    %2149 = vmatpush.bf16.msra.mxu0 %v2116
    %2150 = vmatpush.bf16.msra.mxu0 %v2115
    %2151 = vmatpush.bf16.msra.mxu0 %v2114
    %2152 = vmatpush.bf16.msra.mxu0 %v2113
    %2153 = vmatmul.bf16.gmra.mxu0 %v2047
    %v2154 = vpop.f32.mrf.mxu0
    %v2155 = vadd.f32 0.0, %v2154
    %v2156 = vpop.f32.mrf.mxu0
    %2157 = vdwg.mxu0
    %2158 = vmatpush.bf16.msra.mxu0 %v2128
    %2159 = vmatpush.bf16.msra.mxu0 %v2127
    %2160 = vmatpush.bf16.msra.mxu0 %v2126
    %2161 = vmatpush.bf16.msra.mxu0 %v2125
    %2162 = vmatpush.bf16.msra.mxu0 %v2124
    %2163 = vmatpush.bf16.msra.mxu0 %v2123
    %2164 = vmatpush.bf16.msra.mxu0 %v2122
    %2165 = vmatpush.bf16.msra.mxu0 %v2121
    %2166 = vmatmul.bf16.gmra.mxu0 %v2048
    %v2167 = vpop.f32.mrf.mxu0
    %v2168 = vadd.f32 %v2155, %v2167
    %v2169 = vpop.f32.mrf.mxu0
    %2170 = vdwg.mxu0
    %v2171 = vsel %vm1273, %v2168, 0.0
    %v2172 = vrot.slane %v2171, 4
    %v2173 = vadd.f32 %v2171, %v2172
    %v2174 = vrot.slane %v2173, 2
    %v2175 = vadd.f32 %v2173, %v2174
    %v2176 = vrot.slane %v2175, 1
    %v2177 = vadd.f32 %v2175, %v2176
    %v2178 = vmul.f32 %v2177, %v1308
    %v2179 = vsub.f32 %v2168, %v2178
    %v2180 = vmul.f32 %v2179, %v2179
    %v2181 = vsel %vm1273, %v2180, 0.0
    %v2182 = vrot.slane %v2181, 4
    %v2183 = vadd.f32 %v2181, %v2182
    %v2184 = vrot.slane %v2183, 2
    %v2185 = vadd.f32 %v2183, %v2184
    %v2186 = vrot.slane %v2185, 1
    %v2187 = vadd.f32 %v2185, %v2186
    %v2188 = vmul.f32 %v2187, %v1308
    %v2189 = vadd.f32 %v2188, 1e-05
    %v2190 = vrsqrt.pop %v2189
    %v2191 = vmul.f32 %v2190, %v2189
    %v2192 = vmul.f32 %v2191, %v2190
    %v2193 = vmul.f32 0.5, %v2192
    %v2194 = vsub.f32 1.5, %v2193
    %v2195 = vmul.f32 %v2190, %v2194
    %vm2196 = vweird.f32 %v2189
    %vm2197 = vweird.f32 %v2190
    %vm2198 = vmor %vm2196, %vm2197
    %v2199 = vsel %vm2198, %v2190, %v2195
    %v2200 = vmul.f32 %v2179, %v2199
    %v2201 = vld [vmem:[#allocation7 + $0xc] sm:$0x1]
    %v2203 = vperm.slane %v2201, 0
    %v2205 = vmul.f32 %v2200, %v2203
    %v2206 = vld [vmem:[#allocation7 + $0xd] sm:$0x1]
    %v2208 = vperm.slane %v2206, 0
    %v2210 = vadd.f32 %v2205, %v2208
    %vm2211 = vcmp.ge.f32.partialorder %v2210, 0.0
    %v2212 = vmul.f32 %v2210, 0.01
    %v2213 = vsel %vm2211, %v2210, %v2212
    %v2214 = vld [vmem:[#allocation4 + $0xac0] sm:$0xf]
    %v2215 = vld [vmem:[#allocation4 + $0xad0] sm:$0xf]
    %v2216 = vld [vmem:[#allocation4 + $0xae0] sm:$0xf]
    %v2217 = vld [vmem:[#allocation4 + $0xaf0] sm:$0xf]
    %v2218 = vld [vmem:[#allocation4 + $0xb00] sm:$0xf]
    %v2219 = vld [vmem:[#allocation4 + $0xb10] sm:$0xf]
    %v2220 = vld [vmem:[#allocation4 + $0xb20] sm:$0xf]
    %v2221 = vld [vmem:[#allocation4 + $0xb30] sm:$0xf]
    %v2222 = vld [vmem:[#allocation4 + $0xb40] sm:$0xf]
    %v2223 = vld [vmem:[#allocation4 + $0xb50] sm:$0xf]
    %v2224 = vld [vmem:[#allocation4 + $0xb60] sm:$0xf]
    %v2225 = vld [vmem:[#allocation4 + $0xb70] sm:$0xf]
    %v2226 = vld [vmem:[#allocation4 + $0xb80] sm:$0xf]
    %v2227 = vld [vmem:[#allocation4 + $0xb90] sm:$0xf]
    %v2228 = vld [vmem:[#allocation4 + $0xba0] sm:$0xf]
    %v2229 = vld [vmem:[#allocation4 + $0xbb0] sm:$0xf]
    %v2230 = vpack.c.bf16 %v2213, %v2213
    %v2247 = vunpack.c.l.b16 %v2214
    %v2248 = vunpack.c.l.b16 %v2215
    %v2249 = vunpack.c.l.b16 %v2216
    %v2250 = vunpack.c.l.b16 %v2217
    %v2251 = vunpack.c.l.b16 %v2218
    %v2252 = vunpack.c.l.b16 %v2219
    %v2253 = vunpack.c.l.b16 %v2220
    %v2254 = vunpack.c.l.b16 %v2221
    %v2255 = vunpack.c.l.b16 %v2222
    %v2256 = vunpack.c.l.b16 %v2223
    %v2257 = vunpack.c.l.b16 %v2224
    %v2258 = vunpack.c.l.b16 %v2225
    %v2259 = vunpack.c.l.b16 %v2226
    %v2260 = vunpack.c.l.b16 %v2227
    %v2261 = vunpack.c.l.b16 %v2228
    %v2262 = vunpack.c.l.b16 %v2229
    %v2263 = vpack.c.b16 %v2248, %v2247
    %v2264 = vpack.c.b16 %v2250, %v2249
    %v2265 = vpack.c.b16 %v2252, %v2251
    %v2266 = vpack.c.b16 %v2254, %v2253
    %v2267 = vpack.c.b16 %v2256, %v2255
    %v2268 = vpack.c.b16 %v2258, %v2257
    %v2269 = vpack.c.b16 %v2260, %v2259
    %v2270 = vpack.c.b16 %v2262, %v2261
    %2279 = vmatpush.bf16.msra.mxu0 %v2270
    %2280 = vmatpush.bf16.msra.mxu0 %v2269
    %2281 = vmatpush.bf16.msra.mxu0 %v2268
    %2282 = vmatpush.bf16.msra.mxu0 %v2267
    %2283 = vmatpush.bf16.msra.mxu0 %v2266
    %2284 = vmatpush.bf16.msra.mxu0 %v2265
    %2285 = vmatpush.bf16.msra.mxu0 %v2264
    %2286 = vmatpush.bf16.msra.mxu0 %v2263
    %2287 = vmatmul.bf16.gmra.mxu0 %v2230
    %v2288 = vpop.f32.mrf.mxu0
    %v2289 = vadd.f32 0.0, %v2288
    %v2290 = vpop.f32.mrf.mxu0
    %2291 = vdwg.mxu0
    %vm2292 = vcmask 519168
    %v2293 = vsel %vm2292, %v2289, 0.0
    %v2294 = vrot.slane %v2293, 4
    %v2295 = vadd.f32 %v2293, %v2294
    %v2296 = vrot.slane %v2295, 2
    %v2297 = vadd.f32 %v2295, %v2296
    %v2298 = vrot.slane %v2297, 1
    %v2299 = vadd.f32 %v2297, %v2298
    %v2300 = vmul.f32 %v2299, %v1308
    %v2301 = vsub.f32 %v2289, %v2300
    %v2302 = vmul.f32 %v2301, %v2301
    %v2303 = vsel %vm2292, %v2302, 0.0
    %v2304 = vrot.slane %v2303, 4
    %v2305 = vadd.f32 %v2303, %v2304
    %v2306 = vrot.slane %v2305, 2
    %v2307 = vadd.f32 %v2305, %v2306
    %v2308 = vrot.slane %v2307, 1
    %v2309 = vadd.f32 %v2307, %v2308
    %v2310 = vmul.f32 %v2309, %v1308
    %v2311 = vadd.f32 %v2310, 1e-05
    %v2312 = vrsqrt.pop %v2311
    %v2313 = vmul.f32 %v2312, %v2311
    %v2314 = vmul.f32 %v2313, %v2312
    %v2315 = vmul.f32 0.5, %v2314
    %v2316 = vsub.f32 1.5, %v2315
    %v2317 = vmul.f32 %v2312, %v2316
    %vm2318 = vweird.f32 %v2311
    %vm2319 = vweird.f32 %v2312
    %vm2320 = vmor %vm2318, %vm2319
    %v2321 = vsel %vm2320, %v2312, %v2317
    %v2322 = vmul.f32 %v2301, %v2321
    %v2323 = vld [vmem:[#allocation7 + $0xe] sm:$0x1]
    %v2325 = vperm.slane %v2323, 0
    %v2327 = vmul.f32 %v2322, %v2325
    %v2328 = vld [vmem:[#allocation7 + $0xf] sm:$0x1]
    %v2330 = vperm.slane %v2328, 0
    %v2332 = vadd.f32 %v2327, %v2330
    %vm2333 = vcmp.ge.f32.partialorder %v2332, 0.0
    %v2334 = vmul.f32 %v2332, 0.01
    %v2335 = vsel %vm2333, %v2332, %v2334
    %v2336 = vld [vmem:[#allocation4 + $0xbc0] sm:$0xf]
    %v2337 = vld [vmem:[#allocation4 + $0xbd0] sm:$0xf]
    %v2338 = vld [vmem:[#allocation4 + $0xbe0] sm:$0xf]
    %v2339 = vld [vmem:[#allocation4 + $0xbf0] sm:$0xf]
    %v2340 = vld [vmem:[#allocation4 + $0xc00] sm:$0xf]
    %v2341 = vld [vmem:[#allocation4 + $0xc10] sm:$0xf]
    %v2342 = vld [vmem:[#allocation4 + $0xc20] sm:$0xf]
    %v2343 = vld [vmem:[#allocation4 + $0xc30] sm:$0xf]
    %v2344 = vpack.c.bf16 %v2335, %v2335
    %v2345 = vld [vmem:[#allocation7 + $0x10] sm:$0x1]
    %v2347 = vperm.slane %v2345, 0
    %v2357 = vunpack.c.l.b16 %v2336
    %v2358 = vunpack.c.l.b16 %v2337
    %v2359 = vunpack.c.l.b16 %v2338
    %v2360 = vunpack.c.l.b16 %v2339
    %v2361 = vunpack.c.l.b16 %v2340
    %v2362 = vunpack.c.l.b16 %v2341
    %v2363 = vunpack.c.l.b16 %v2342
    %v2364 = vunpack.c.l.b16 %v2343
    %v2365 = vpack.c.b16 %v2358, %v2357
    %v2366 = vpack.c.b16 %v2360, %v2359
    %v2367 = vpack.c.b16 %v2362, %v2361
    %v2368 = vpack.c.b16 %v2364, %v2363
    %vm2373 = vcmask 523264
    %v2375 = vsel %vm2373, %v2344, 0
    %2377 = vmatpush.bf16.msra.mxu0 0
    %2378 = vmatpush.bf16.msra.mxu0 0
    %2379 = vmatpush.bf16.msra.mxu0 0
    %2380 = vmatpush.bf16.msra.mxu0 0
    %2381 = vmatpush.bf16.msra.mxu0 %v2368
    %2382 = vmatpush.bf16.msra.mxu0 %v2367
    %2383 = vmatpush.bf16.msra.mxu0 %v2366
    %2384 = vmatpush.bf16.msra.mxu0 %v2365
    %2385 = vmatmul.bf16.gmra.mxu0 %v2375
    %v2386 = vpop.f32.mrf.mxu0
    %v2387 = vadd.f32 %v2347, %v2386
    %v2388 = vpop.f32.mrf.mxu0
    %2389 = vdwg.mxu0
    %v2390 = vld [vmem:[#allocation2] sm:$0xf]
    %v2391 = vmul.f32 %v2387, 0.5
    %v2392 = vmul.f32 %v2391, 1.442695
    %v2393 = vpow.pop %v2392
    %2395 = vrot.lane.b32.xlu0 %v2393, 112
    %v2396 = vpop.permute.xlu0 %2395
    %v2398 = vmul.f32 %v2390, %v2396
    %v2399 = vadd.f32 %v2387, %v2398
    %2401 = vrot.lane.b32.xlu0 %v2399, 32
    %v2402 = vpop.permute.xlu0 %2401
    %vm2404 = vcmask 261120
    %v2405 = vsel %vm2404, %v2387, %v2402
    %vm2406 = vcmask 392192
    %v2407 = vsel %vm2406, %v2405, 0.0
    %2408 = vst [vmem:[%s5] sm:$0xf] %v2407
    %v2409 = vld [vmem:[#allocation4 + $0xc40] sm:$0xf]
    %v2410 = vld [vmem:[#allocation4 + $0xc50] sm:$0xf]
    %v2411 = vpack.c.bf16 %v2399, %v2399
    %v2412 = vld [vmem:[#allocation7 + $0x11] sm:$0x1]
    %v2414 = vperm.slane %v2412, 0
    %v2418 = vunpack.c.l.b16 %v2409
    %v2419 = vunpack.c.l.b16 %v2410
    %v2420 = vpack.c.b16 %v2419, %v2418
    %vm2422 = vcmask 130048
    %v2424 = vsel %vm2422, %v2411, 0
    %2426 = vmatpush.bf16.msra.mxu0 0
    %2427 = vmatpush.bf16.msra.mxu0 0
    %2428 = vmatpush.bf16.msra.mxu0 0
    %2429 = vmatpush.bf16.msra.mxu0 0
    %2430 = vmatpush.bf16.msra.mxu0 0
    %2431 = vmatpush.bf16.msra.mxu0 0
    %2432 = vmatpush.bf16.msra.mxu0 0
    %2433 = vmatpush.bf16.msra.mxu0 %v2420
    %2434 = vmatmul.bf16.gmra.mxu0 %v2424
    %v2435 = vpop.f32.mrf.mxu0
    %v2436 = vadd.f32 %v2414, %v2435
    %v2437 = vpop.f32.mrf.mxu0
    %2438 = vdwg.mxu0
    %vm2439 = vcmp.ge.f32.partialorder %v2436, 0.0
    %v2440 = vmul.f32 %v2436, 0.01
    %v2441 = vsel %vm2439, %v2436, %v2440
    %v2442 = vld [vmem:[#allocation4 + $0xc60] sm:$0xf]
    %v2443 = vld [vmem:[#allocation4 + $0xc70] sm:$0xf]
    %v2444 = vld [vmem:[#allocation4 + $0xc80] sm:$0xf]
    %v2445 = vld [vmem:[#allocation4 + $0xc90] sm:$0xf]
    %v2446 = vld [vmem:[#allocation4 + $0xca0] sm:$0xf]
    %v2447 = vld [vmem:[#allocation4 + $0xcb0] sm:$0xf]
    %v2448 = vld [vmem:[#allocation4 + $0xcc0] sm:$0xf]
    %v2449 = vld [vmem:[#allocation4 + $0xcd0] sm:$0xf]
    %v2450 = vpack.c.bf16 %v2441, %v2441
    %v2459 = vunpack.c.l.b16 %v2442
    %v2460 = vunpack.c.l.b16 %v2443
    %v2461 = vunpack.c.l.b16 %v2444
    %v2462 = vunpack.c.l.b16 %v2445
    %v2463 = vunpack.c.l.b16 %v2446
    %v2464 = vunpack.c.l.b16 %v2447
    %v2465 = vunpack.c.l.b16 %v2448
    %v2466 = vunpack.c.l.b16 %v2449
    %v2467 = vpack.c.b16 %v2460, %v2459
    %v2468 = vpack.c.b16 %v2462, %v2461
    %v2469 = vpack.c.b16 %v2464, %v2463
    %v2470 = vpack.c.b16 %v2466, %v2465
    %v2476 = vsel %vm2373, %v2450, 0
    %2478 = vmatpush.bf16.msra.mxu0 0
    %2479 = vmatpush.bf16.msra.mxu0 0
    %2480 = vmatpush.bf16.msra.mxu0 0
    %2481 = vmatpush.bf16.msra.mxu0 0
    %2482 = vmatpush.bf16.msra.mxu0 %v2470
    %2483 = vmatpush.bf16.msra.mxu0 %v2469
    %2484 = vmatpush.bf16.msra.mxu0 %v2468
    %2485 = vmatpush.bf16.msra.mxu0 %v2467
    %2486 = vmatmul.bf16.gmra.mxu0 %v2476
    %v2487 = vpop.f32.mrf.mxu0
    %v2488 = vadd.f32 0.0, %v2487
    %v2489 = vpop.f32.mrf.mxu0
    %2490 = vdwg.mxu0
    %v2491 = vsel %vm1273, %v2488, 0.0
    %v2492 = vrot.slane %v2491, 4
    %v2493 = vadd.f32 %v2491, %v2492
    %v2494 = vrot.slane %v2493, 2
    %v2495 = vadd.f32 %v2493, %v2494
    %v2496 = vrot.slane %v2495, 1
    %v2497 = vadd.f32 %v2495, %v2496
    %v2498 = vmul.f32 %v2497, %v1308
    %v2499 = vsub.f32 %v2488, %v2498
    %v2500 = vmul.f32 %v2499, %v2499
    %v2501 = vsel %vm1273, %v2500, 0.0
    %v2502 = vrot.slane %v2501, 4
    %v2503 = vadd.f32 %v2501, %v2502
    %v2504 = vrot.slane %v2503, 2
    %v2505 = vadd.f32 %v2503, %v2504
    %v2506 = vrot.slane %v2505, 1
    %v2507 = vadd.f32 %v2505, %v2506
    %v2508 = vmul.f32 %v2507, %v1308
    %v2509 = vadd.f32 %v2508, 1e-05
    %v2510 = vrsqrt.pop %v2509
    %v2511 = vmul.f32 %v2510, %v2509
    %v2512 = vmul.f32 %v2511, %v2510
    %v2513 = vmul.f32 0.5, %v2512
    %v2514 = vsub.f32 1.5, %v2513
    %v2515 = vmul.f32 %v2510, %v2514
    %vm2516 = vweird.f32 %v2509
    %vm2517 = vweird.f32 %v2510
    %vm2518 = vmor %vm2516, %vm2517
    %v2519 = vsel %vm2518, %v2510, %v2515
    %v2520 = vmul.f32 %v2499, %v2519
    %v2521 = vld [vmem:[#allocation7 + $0x12] sm:$0x1]
    %v2523 = vperm.slane %v2521, 0
    %v2525 = vmul.f32 %v2520, %v2523
    %v2526 = vld [vmem:[#allocation7 + $0x13] sm:$0x1]
    %v2528 = vperm.slane %v2526, 0
    %v2530 = vadd.f32 %v2525, %v2528
    %vm2531 = vcmp.ge.f32.partialorder %v2530, 0.0
    %v2532 = vmul.f32 %v2530, 0.01
    %v2533 = vsel %vm2531, %v2530, %v2532
    %v2534 = vld [vmem:[#allocation4 + $0xce0] sm:$0xff]
    %v2535 = vld [vmem:[#allocation4 + $0xcf0] sm:$0xff]
    %v2536 = vld [vmem:[#allocation4 + $0xd00] sm:$0xff]
    %v2537 = vld [vmem:[#allocation4 + $0xd10] sm:$0xff]
    %v2538 = vld [vmem:[#allocation4 + $0xd20] sm:$0xff]
    %v2539 = vld [vmem:[#allocation4 + $0xd30] sm:$0xff]
    %v2540 = vld [vmem:[#allocation4 + $0xd40] sm:$0xff]
    %v2541 = vld [vmem:[#allocation4 + $0xd50] sm:$0xff]
    %v2542 = vld [vmem:[#allocation4 + $0xd60] sm:$0xff]
    %v2543 = vld [vmem:[#allocation4 + $0xd70] sm:$0xff]
    %v2544 = vld [vmem:[#allocation4 + $0xd80] sm:$0xff]
    %v2545 = vld [vmem:[#allocation4 + $0xd90] sm:$0xff]
    %v2546 = vld [vmem:[#allocation4 + $0xda0] sm:$0xff]
    %v2547 = vld [vmem:[#allocation4 + $0xdb0] sm:$0xff]
    %v2548 = vld [vmem:[#allocation4 + $0xdc0] sm:$0xff]
    %v2549 = vld [vmem:[#allocation4 + $0xdd0] sm:$0xff]
    %v2550 = vpack.c.bf16 %v2533, %v2533
    %v2567 = vunpack.c.l.b16 %v2534
    %v2568 = vunpack.c.h.b16 %v2534
    %v2569 = vunpack.c.l.b16 %v2535
    %v2570 = vunpack.c.h.b16 %v2535
    %v2571 = vunpack.c.l.b16 %v2536
    %v2572 = vunpack.c.h.b16 %v2536
    %v2573 = vunpack.c.l.b16 %v2537
    %v2574 = vunpack.c.h.b16 %v2537
    %v2575 = vunpack.c.l.b16 %v2538
    %v2576 = vunpack.c.h.b16 %v2538
    %v2577 = vunpack.c.l.b16 %v2539
    %v2578 = vunpack.c.h.b16 %v2539
    %v2579 = vunpack.c.l.b16 %v2540
    %v2580 = vunpack.c.h.b16 %v2540
    %v2581 = vunpack.c.l.b16 %v2541
    %v2582 = vunpack.c.h.b16 %v2541
    %v2583 = vunpack.c.l.b16 %v2542
    %v2584 = vunpack.c.h.b16 %v2542
    %v2585 = vunpack.c.l.b16 %v2543
    %v2586 = vunpack.c.h.b16 %v2543
    %v2587 = vunpack.c.l.b16 %v2544
    %v2588 = vunpack.c.h.b16 %v2544
    %v2589 = vunpack.c.l.b16 %v2545
    %v2590 = vunpack.c.h.b16 %v2545
    %v2591 = vunpack.c.l.b16 %v2546
    %v2592 = vunpack.c.h.b16 %v2546
    %v2593 = vunpack.c.l.b16 %v2547
    %v2594 = vunpack.c.h.b16 %v2547
    %v2595 = vunpack.c.l.b16 %v2548
    %v2596 = vunpack.c.h.b16 %v2548
    %v2597 = vunpack.c.l.b16 %v2549
    %v2598 = vunpack.c.h.b16 %v2549
    %v2599 = vpack.c.b16 %v2569, %v2567
    %v2600 = vpack.c.b16 %v2570, %v2568
    %v2601 = vpack.c.b16 %v2573, %v2571
    %v2602 = vpack.c.b16 %v2574, %v2572
    %v2603 = vpack.c.b16 %v2577, %v2575
    %v2604 = vpack.c.b16 %v2578, %v2576
    %v2605 = vpack.c.b16 %v2581, %v2579
    %v2606 = vpack.c.b16 %v2582, %v2580
    %v2607 = vpack.c.b16 %v2585, %v2583
    %v2608 = vpack.c.b16 %v2586, %v2584
    %v2609 = vpack.c.b16 %v2589, %v2587
    %v2610 = vpack.c.b16 %v2590, %v2588
    %v2611 = vpack.c.b16 %v2593, %v2591
    %v2612 = vpack.c.b16 %v2594, %v2592
    %v2613 = vpack.c.b16 %v2597, %v2595
    %v2614 = vpack.c.b16 %v2598, %v2596
    %2631 = vmatpush.bf16.msra.mxu0 %v2613
    %2632 = vmatpush.bf16.msra.mxu0 %v2611
    %2633 = vmatpush.bf16.msra.mxu0 %v2609
    %2634 = vmatpush.bf16.msra.mxu0 %v2607
    %2635 = vmatpush.bf16.msra.mxu0 %v2605
    %2636 = vmatpush.bf16.msra.mxu0 %v2603
    %2637 = vmatpush.bf16.msra.mxu0 %v2601
    %2638 = vmatpush.bf16.msra.mxu0 %v2599
    %2639 = vmatmul.bf16.gmra.mxu0 %v2550
    %v2640 = vpop.f32.mrf.mxu0
    %v2641 = vadd.f32 0.0, %v2640
    %v2642 = vpop.f32.mrf.mxu0
    %2643 = vdwg.mxu0
    %2644 = vmatpush.bf16.msra.mxu0 %v2614
    %2645 = vmatpush.bf16.msra.mxu0 %v2612
    %2646 = vmatpush.bf16.msra.mxu0 %v2610
    %2647 = vmatpush.bf16.msra.mxu0 %v2608
    %2648 = vmatpush.bf16.msra.mxu0 %v2606
    %2649 = vmatpush.bf16.msra.mxu0 %v2604
    %2650 = vmatpush.bf16.msra.mxu0 %v2602
    %2651 = vmatpush.bf16.msra.mxu0 %v2600
    %2652 = vmatmul.bf16.gmra.mxu0 %v2550
    %v2653 = vpop.f32.mrf.mxu0
    %v2654 = vadd.f32 0.0, %v2653
    %v2655 = vpop.f32.mrf.mxu0
    %2656 = vdwg.mxu0
    %v2657 = vsel %vm1273, %v2641, 0.0
    %v2658 = vrot.slane %v2657, 4
    %v2659 = vadd.f32 %v2657, %v2658
    %v2660 = vrot.slane %v2659, 2
    %v2661 = vadd.f32 %v2659, %v2660
    %v2662 = vrot.slane %v2661, 1
    %v2663 = vadd.f32 %v2661, %v2662
    %v2664 = vsel %vm1273, %v2654, 0.0
    %v2665 = vrot.slane %v2664, 4
    %v2666 = vadd.f32 %v2664, %v2665
    %v2667 = vrot.slane %v2666, 2
    %v2668 = vadd.f32 %v2666, %v2667
    %v2669 = vrot.slane %v2668, 1
    %v2670 = vadd.f32 %v2668, %v2669
    %v2671 = vmul.f32 %v2663, %v1308
    %v2672 = vmul.f32 %v2670, %v1308
    %v2673 = vsub.f32 %v2641, %v2671
    %v2674 = vsub.f32 %v2654, %v2672
    %v2675 = vmul.f32 %v2673, %v2673
    %v2676 = vmul.f32 %v2674, %v2674
    %v2677 = vsel %vm1273, %v2675, 0.0
    %v2678 = vrot.slane %v2677, 4
    %v2679 = vadd.f32 %v2677, %v2678
    %v2680 = vrot.slane %v2679, 2
    %v2681 = vadd.f32 %v2679, %v2680
    %v2682 = vrot.slane %v2681, 1
    %v2683 = vadd.f32 %v2681, %v2682
    %v2684 = vsel %vm1273, %v2676, 0.0
    %v2685 = vrot.slane %v2684, 4
    %v2686 = vadd.f32 %v2684, %v2685
    %v2687 = vrot.slane %v2686, 2
    %v2688 = vadd.f32 %v2686, %v2687
    %v2689 = vrot.slane %v2688, 1
    %v2690 = vadd.f32 %v2688, %v2689
    %v2691 = vmul.f32 %v2683, %v1308
    %v2692 = vmul.f32 %v2690, %v1308
    %v2693 = vadd.f32 %v2691, 1e-05
    %v2694 = vadd.f32 %v2692, 1e-05
    %v2695 = vrsqrt.pop %v2693
    %v2696 = vmul.f32 %v2695, %v2693
    %v2697 = vmul.f32 %v2696, %v2695
    %v2698 = vmul.f32 0.5, %v2697
    %v2699 = vsub.f32 1.5, %v2698
    %v2700 = vmul.f32 %v2695, %v2699
    %vm2701 = vweird.f32 %v2693
    %vm2702 = vweird.f32 %v2695
    %vm2703 = vmor %vm2701, %vm2702
    %v2704 = vsel %vm2703, %v2695, %v2700
    %v2705 = vrsqrt.pop %v2694
    %v2706 = vmul.f32 %v2705, %v2694
    %v2707 = vmul.f32 %v2706, %v2705
    %v2708 = vmul.f32 0.5, %v2707
    %v2709 = vsub.f32 1.5, %v2708
    %v2710 = vmul.f32 %v2705, %v2709
    %vm2711 = vweird.f32 %v2694
    %vm2712 = vweird.f32 %v2705
    %vm2713 = vmor %vm2711, %vm2712
    %v2714 = vsel %vm2713, %v2705, %v2710
    %v2715 = vmul.f32 %v2673, %v2704
    %v2716 = vmul.f32 %v2674, %v2714
    %v2717 = vld [vmem:[#allocation7 + $0x14] sm:$0x3]
    %v2719 = vperm.slane %v2717, 0
    %v2720 = vperm.slane %v2717, 1
    %v2723 = vmul.f32 %v2715, %v2719
    %v2724 = vmul.f32 %v2716, %v2720
    %v2725 = vld [vmem:[#allocation7 + $0x16] sm:$0x3]
    %v2727 = vperm.slane %v2725, 0
    %v2728 = vperm.slane %v2725, 1
    %v2731 = vadd.f32 %v2723, %v2727
    %v2732 = vadd.f32 %v2724, %v2728
    %vm2733 = vcmp.ge.f32.partialorder %v2731, 0.0
    %vm2734 = vcmp.ge.f32.partialorder %v2732, 0.0
    %v2735 = vmul.f32 %v2731, 0.01
    %v2736 = vmul.f32 %v2732, 0.01
    %v2737 = vsel %vm2733, %v2731, %v2735
    %v2738 = vsel %vm2734, %v2732, %v2736
    %v2739 = vld [vmem:[#allocation4 + $0xde0] sm:$0xff]
    %v2740 = vld [vmem:[#allocation4 + $0xde8] sm:$0xff]
    %v2741 = vld [vmem:[#allocation4 + $0xdf0] sm:$0xff]
    %v2742 = vld [vmem:[#allocation4 + $0xdf8] sm:$0xff]
    %v2743 = vld [vmem:[#allocation4 + $0xe00] sm:$0xff]
    %v2744 = vld [vmem:[#allocation4 + $0xe08] sm:$0xff]
    %v2745 = vld [vmem:[#allocation4 + $0xe10] sm:$0xff]
    %v2746 = vld [vmem:[#allocation4 + $0xe18] sm:$0xff]
    %v2747 = vld [vmem:[#allocation4 + $0xe20] sm:$0xff]
    %v2748 = vld [vmem:[#allocation4 + $0xe28] sm:$0xff]
    %v2749 = vld [vmem:[#allocation4 + $0xe30] sm:$0xff]
    %v2750 = vld [vmem:[#allocation4 + $0xe38] sm:$0xff]
    %v2751 = vld [vmem:[#allocation4 + $0xe40] sm:$0xff]
    %v2752 = vld [vmem:[#allocation4 + $0xe48] sm:$0xff]
    %v2753 = vld [vmem:[#allocation4 + $0xe50] sm:$0xff]
    %v2754 = vld [vmem:[#allocation4 + $0xe58] sm:$0xff]
    %v2755 = vld [vmem:[#allocation4 + $0xe60] sm:$0xff]
    %v2756 = vld [vmem:[#allocation4 + $0xe68] sm:$0xff]
    %v2757 = vld [vmem:[#allocation4 + $0xe70] sm:$0xff]
    %v2758 = vld [vmem:[#allocation4 + $0xe78] sm:$0xff]
    %v2759 = vld [vmem:[#allocation4 + $0xe80] sm:$0xff]
    %v2760 = vld [vmem:[#allocation4 + $0xe88] sm:$0xff]
    %v2761 = vld [vmem:[#allocation4 + $0xe90] sm:$0xff]
    %v2762 = vld [vmem:[#allocation4 + $0xe98] sm:$0xff]
    %v2763 = vld [vmem:[#allocation4 + $0xea0] sm:$0xff]
    %v2764 = vld [vmem:[#allocation4 + $0xea8] sm:$0xff]
    %v2765 = vld [vmem:[#allocation4 + $0xeb0] sm:$0xff]
    %v2766 = vld [vmem:[#allocation4 + $0xeb8] sm:$0xff]
    %v2767 = vld [vmem:[#allocation4 + $0xec0] sm:$0xff]
    %v2768 = vld [vmem:[#allocation4 + $0xec8] sm:$0xff]
    %v2769 = vld [vmem:[#allocation4 + $0xed0] sm:$0xff]
    %v2770 = vld [vmem:[#allocation4 + $0xed8] sm:$0xff]
    %v2771 = vld [vmem:[#allocation4 + $0xee0] sm:$0xff]
    %v2772 = vld [vmem:[#allocation4 + $0xee8] sm:$0xff]
    %v2773 = vld [vmem:[#allocation4 + $0xef0] sm:$0xff]
    %v2774 = vld [vmem:[#allocation4 + $0xef8] sm:$0xff]
    %v2775 = vld [vmem:[#allocation4 + $0xf00] sm:$0xff]
    %v2776 = vld [vmem:[#allocation4 + $0xf08] sm:$0xff]
    %v2777 = vld [vmem:[#allocation4 + $0xf10] sm:$0xff]
    %v2778 = vld [vmem:[#allocation4 + $0xf18] sm:$0xff]
    %v2779 = vld [vmem:[#allocation4 + $0xf20] sm:$0xff]
    %v2780 = vld [vmem:[#allocation4 + $0xf28] sm:$0xff]
    %v2781 = vld [vmem:[#allocation4 + $0xf30] sm:$0xff]
    %v2782 = vld [vmem:[#allocation4 + $0xf38] sm:$0xff]
    %v2783 = vld [vmem:[#allocation4 + $0xf40] sm:$0xff]
    %v2784 = vld [vmem:[#allocation4 + $0xf48] sm:$0xff]
    %v2785 = vld [vmem:[#allocation4 + $0xf50] sm:$0xff]
    %v2786 = vld [vmem:[#allocation4 + $0xf58] sm:$0xff]
    %v2787 = vld [vmem:[#allocation4 + $0xf60] sm:$0xff]
    %v2788 = vld [vmem:[#allocation4 + $0xf68] sm:$0xff]
    %v2789 = vld [vmem:[#allocation4 + $0xf70] sm:$0xff]
    %v2790 = vld [vmem:[#allocation4 + $0xf78] sm:$0xff]
    %v2791 = vld [vmem:[#allocation4 + $0xf80] sm:$0xff]
    %v2792 = vld [vmem:[#allocation4 + $0xf88] sm:$0xff]
    %v2793 = vld [vmem:[#allocation4 + $0xf90] sm:$0xff]
    %v2794 = vld [vmem:[#allocation4 + $0xf98] sm:$0xff]
    %v2795 = vld [vmem:[#allocation4 + $0xfa0] sm:$0xff]
    %v2796 = vld [vmem:[#allocation4 + $0xfa8] sm:$0xff]
    %v2797 = vld [vmem:[#allocation4 + $0xfb0] sm:$0xff]
    %v2798 = vld [vmem:[#allocation4 + $0xfb8] sm:$0xff]
    %v2799 = vld [vmem:[#allocation4 + $0xfc0] sm:$0xff]
    %v2800 = vld [vmem:[#allocation4 + $0xfc8] sm:$0xff]
    %v2801 = vld [vmem:[#allocation4 + $0xfd0] sm:$0xff]
    %v2802 = vld [vmem:[#allocation4 + $0xfd8] sm:$0xff]
    %v2803 = vpack.c.bf16 %v2737, %v2737
    %v2804 = vpack.c.bf16 %v2738, %v2738
    %v2869 = vunpack.c.l.b16 %v2739
    %v2870 = vunpack.c.h.b16 %v2739
    %v2871 = vunpack.c.l.b16 %v2740
    %v2872 = vunpack.c.h.b16 %v2740
    %v2873 = vunpack.c.l.b16 %v2741
    %v2874 = vunpack.c.h.b16 %v2741
    %v2875 = vunpack.c.l.b16 %v2742
    %v2876 = vunpack.c.h.b16 %v2742
    %v2877 = vunpack.c.l.b16 %v2743
    %v2878 = vunpack.c.h.b16 %v2743
    %v2879 = vunpack.c.l.b16 %v2744
    %v2880 = vunpack.c.h.b16 %v2744
    %v2881 = vunpack.c.l.b16 %v2745
    %v2882 = vunpack.c.h.b16 %v2745
    %v2883 = vunpack.c.l.b16 %v2746
    %v2884 = vunpack.c.h.b16 %v2746
    %v2885 = vunpack.c.l.b16 %v2747
    %v2886 = vunpack.c.h.b16 %v2747
    %v2887 = vunpack.c.l.b16 %v2748
    %v2888 = vunpack.c.h.b16 %v2748
    %v2889 = vunpack.c.l.b16 %v2749
    %v2890 = vunpack.c.h.b16 %v2749
    %v2891 = vunpack.c.l.b16 %v2750
    %v2892 = vunpack.c.h.b16 %v2750
    %v2893 = vunpack.c.l.b16 %v2751
    %v2894 = vunpack.c.h.b16 %v2751
    %v2895 = vunpack.c.l.b16 %v2752
    %v2896 = vunpack.c.h.b16 %v2752
    %v2897 = vunpack.c.l.b16 %v2753
    %v2898 = vunpack.c.h.b16 %v2753
    %v2899 = vunpack.c.l.b16 %v2754
    %v2900 = vunpack.c.h.b16 %v2754
    %v2901 = vunpack.c.l.b16 %v2755
    %v2902 = vunpack.c.h.b16 %v2755
    %v2903 = vunpack.c.l.b16 %v2756
    %v2904 = vunpack.c.h.b16 %v2756
    %v2905 = vunpack.c.l.b16 %v2757
    %v2906 = vunpack.c.h.b16 %v2757
    %v2907 = vunpack.c.l.b16 %v2758
    %v2908 = vunpack.c.h.b16 %v2758
    %v2909 = vunpack.c.l.b16 %v2759
    %v2910 = vunpack.c.h.b16 %v2759
    %v2911 = vunpack.c.l.b16 %v2760
    %v2912 = vunpack.c.h.b16 %v2760
    %v2913 = vunpack.c.l.b16 %v2761
    %v2914 = vunpack.c.h.b16 %v2761
    %v2915 = vunpack.c.l.b16 %v2762
    %v2916 = vunpack.c.h.b16 %v2762
    %v2917 = vunpack.c.l.b16 %v2763
    %v2918 = vunpack.c.h.b16 %v2763
    %v2919 = vunpack.c.l.b16 %v2764
    %v2920 = vunpack.c.h.b16 %v2764
    %v2921 = vunpack.c.l.b16 %v2765
    %v2922 = vunpack.c.h.b16 %v2765
    %v2923 = vunpack.c.l.b16 %v2766
    %v2924 = vunpack.c.h.b16 %v2766
    %v2925 = vunpack.c.l.b16 %v2767
    %v2926 = vunpack.c.h.b16 %v2767
    %v2927 = vunpack.c.l.b16 %v2768
    %v2928 = vunpack.c.h.b16 %v2768
    %v2929 = vunpack.c.l.b16 %v2769
    %v2930 = vunpack.c.h.b16 %v2769
    %v2931 = vunpack.c.l.b16 %v2770
    %v2932 = vunpack.c.h.b16 %v2770
    %v2933 = vunpack.c.l.b16 %v2771
    %v2934 = vunpack.c.h.b16 %v2771
    %v2935 = vunpack.c.l.b16 %v2772
    %v2936 = vunpack.c.h.b16 %v2772
    %v2937 = vunpack.c.l.b16 %v2773
    %v2938 = vunpack.c.h.b16 %v2773
    %v2939 = vunpack.c.l.b16 %v2774
    %v2940 = vunpack.c.h.b16 %v2774
    %v2941 = vunpack.c.l.b16 %v2775
    %v2942 = vunpack.c.h.b16 %v2775
    %v2943 = vunpack.c.l.b16 %v2776
    %v2944 = vunpack.c.h.b16 %v2776
    %v2945 = vunpack.c.l.b16 %v2777
    %v2946 = vunpack.c.h.b16 %v2777
    %v2947 = vunpack.c.l.b16 %v2778
    %v2948 = vunpack.c.h.b16 %v2778
    %v2949 = vunpack.c.l.b16 %v2779
    %v2950 = vunpack.c.h.b16 %v2779
    %v2951 = vunpack.c.l.b16 %v2780
    %v2952 = vunpack.c.h.b16 %v2780
    %v2953 = vunpack.c.l.b16 %v2781
    %v2954 = vunpack.c.h.b16 %v2781
    %v2955 = vunpack.c.l.b16 %v2782
    %v2956 = vunpack.c.h.b16 %v2782
    %v2957 = vunpack.c.l.b16 %v2783
    %v2958 = vunpack.c.h.b16 %v2783
    %v2959 = vunpack.c.l.b16 %v2784
    %v2960 = vunpack.c.h.b16 %v2784
    %v2961 = vunpack.c.l.b16 %v2785
    %v2962 = vunpack.c.h.b16 %v2785
    %v2963 = vunpack.c.l.b16 %v2786
    %v2964 = vunpack.c.h.b16 %v2786
    %v2965 = vunpack.c.l.b16 %v2787
    %v2966 = vunpack.c.h.b16 %v2787
    %v2967 = vunpack.c.l.b16 %v2788
    %v2968 = vunpack.c.h.b16 %v2788
    %v2969 = vunpack.c.l.b16 %v2789
    %v2970 = vunpack.c.h.b16 %v2789
    %v2971 = vunpack.c.l.b16 %v2790
    %v2972 = vunpack.c.h.b16 %v2790
    %v2973 = vunpack.c.l.b16 %v2791
    %v2974 = vunpack.c.h.b16 %v2791
    %v2975 = vunpack.c.l.b16 %v2792
    %v2976 = vunpack.c.h.b16 %v2792
    %v2977 = vunpack.c.l.b16 %v2793
    %v2978 = vunpack.c.h.b16 %v2793
    %v2979 = vunpack.c.l.b16 %v2794
    %v2980 = vunpack.c.h.b16 %v2794
    %v2981 = vunpack.c.l.b16 %v2795
    %v2982 = vunpack.c.h.b16 %v2795
    %v2983 = vunpack.c.l.b16 %v2796
    %v2984 = vunpack.c.h.b16 %v2796
    %v2985 = vunpack.c.l.b16 %v2797
    %v2986 = vunpack.c.h.b16 %v2797
    %v2987 = vunpack.c.l.b16 %v2798
    %v2988 = vunpack.c.h.b16 %v2798
    %v2989 = vunpack.c.l.b16 %v2799
    %v2990 = vunpack.c.h.b16 %v2799
    %v2991 = vunpack.c.l.b16 %v2800
    %v2992 = vunpack.c.h.b16 %v2800
    %v2993 = vunpack.c.l.b16 %v2801
    %v2994 = vunpack.c.h.b16 %v2801
    %v2995 = vunpack.c.l.b16 %v2802
    %v2996 = vunpack.c.h.b16 %v2802
    %v2997 = vpack.c.b16 %v2873, %v2869
    %v2998 = vpack.c.b16 %v2874, %v2870
    %v2999 = vpack.c.b16 %v2875, %v2871
    %v3000 = vpack.c.b16 %v2876, %v2872
    %v3001 = vpack.c.b16 %v2881, %v2877
    %v3002 = vpack.c.b16 %v2882, %v2878
    %v3003 = vpack.c.b16 %v2883, %v2879
    %v3004 = vpack.c.b16 %v2884, %v2880
    %v3005 = vpack.c.b16 %v2889, %v2885
    %v3006 = vpack.c.b16 %v2890, %v2886
    %v3007 = vpack.c.b16 %v2891, %v2887
    %v3008 = vpack.c.b16 %v2892, %v2888
    %v3009 = vpack.c.b16 %v2897, %v2893
    %v3010 = vpack.c.b16 %v2898, %v2894
    %v3011 = vpack.c.b16 %v2899, %v2895
    %v3012 = vpack.c.b16 %v2900, %v2896
    %v3013 = vpack.c.b16 %v2905, %v2901
    %v3014 = vpack.c.b16 %v2906, %v2902
    %v3015 = vpack.c.b16 %v2907, %v2903
    %v3016 = vpack.c.b16 %v2908, %v2904
    %v3017 = vpack.c.b16 %v2913, %v2909
    %v3018 = vpack.c.b16 %v2914, %v2910
    %v3019 = vpack.c.b16 %v2915, %v2911
    %v3020 = vpack.c.b16 %v2916, %v2912
    %v3021 = vpack.c.b16 %v2921, %v2917
    %v3022 = vpack.c.b16 %v2922, %v2918
    %v3023 = vpack.c.b16 %v2923, %v2919
    %v3024 = vpack.c.b16 %v2924, %v2920
    %v3025 = vpack.c.b16 %v2929, %v2925
    %v3026 = vpack.c.b16 %v2930, %v2926
    %v3027 = vpack.c.b16 %v2931, %v2927
    %v3028 = vpack.c.b16 %v2932, %v2928
    %v3029 = vpack.c.b16 %v2937, %v2933
    %v3030 = vpack.c.b16 %v2938, %v2934
    %v3031 = vpack.c.b16 %v2939, %v2935
    %v3032 = vpack.c.b16 %v2940, %v2936
    %v3033 = vpack.c.b16 %v2945, %v2941
    %v3034 = vpack.c.b16 %v2946, %v2942
    %v3035 = vpack.c.b16 %v2947, %v2943
    %v3036 = vpack.c.b16 %v2948, %v2944
    %v3037 = vpack.c.b16 %v2953, %v2949
    %v3038 = vpack.c.b16 %v2954, %v2950
    %v3039 = vpack.c.b16 %v2955, %v2951
    %v3040 = vpack.c.b16 %v2956, %v2952
    %v3041 = vpack.c.b16 %v2961, %v2957
    %v3042 = vpack.c.b16 %v2962, %v2958
    %v3043 = vpack.c.b16 %v2963, %v2959
    %v3044 = vpack.c.b16 %v2964, %v2960
    %v3045 = vpack.c.b16 %v2969, %v2965
    %v3046 = vpack.c.b16 %v2970, %v2966
    %v3047 = vpack.c.b16 %v2971, %v2967
    %v3048 = vpack.c.b16 %v2972, %v2968
    %v3049 = vpack.c.b16 %v2977, %v2973
    %v3050 = vpack.c.b16 %v2978, %v2974
    %v3051 = vpack.c.b16 %v2979, %v2975
    %v3052 = vpack.c.b16 %v2980, %v2976
    %v3053 = vpack.c.b16 %v2985, %v2981
    %v3054 = vpack.c.b16 %v2986, %v2982
    %v3055 = vpack.c.b16 %v2987, %v2983
    %v3056 = vpack.c.b16 %v2988, %v2984
    %v3057 = vpack.c.b16 %v2993, %v2989
    %v3058 = vpack.c.b16 %v2994, %v2990
    %v3059 = vpack.c.b16 %v2995, %v2991
    %v3060 = vpack.c.b16 %v2996, %v2992
    %3125 = vmatpush.bf16.msra.mxu0 %v3025
    %3126 = vmatpush.bf16.msra.mxu0 %v3021
    %3127 = vmatpush.bf16.msra.mxu0 %v3017
    %3128 = vmatpush.bf16.msra.mxu0 %v3013
    %3129 = vmatpush.bf16.msra.mxu0 %v3009
    %3130 = vmatpush.bf16.msra.mxu0 %v3005
    %3131 = vmatpush.bf16.msra.mxu0 %v3001
    %3132 = vmatpush.bf16.msra.mxu0 %v2997
    %3133 = vmatmul.bf16.gmra.mxu0 %v2803
    %v3134 = vpop.f32.mrf.mxu0
    %v3135 = vadd.f32 0.0, %v3134
    %v3136 = vpop.f32.mrf.mxu0
    %3137 = vdwg.mxu0
    %3138 = vmatpush.bf16.msra.mxu0 %v3057
    %3139 = vmatpush.bf16.msra.mxu0 %v3053
    %3140 = vmatpush.bf16.msra.mxu0 %v3049
    %3141 = vmatpush.bf16.msra.mxu0 %v3045
    %3142 = vmatpush.bf16.msra.mxu0 %v3041
    %3143 = vmatpush.bf16.msra.mxu0 %v3037
    %3144 = vmatpush.bf16.msra.mxu0 %v3033
    %3145 = vmatpush.bf16.msra.mxu0 %v3029
    %3146 = vmatmul.bf16.gmra.mxu0 %v2804
    %v3147 = vpop.f32.mrf.mxu0
    %v3148 = vadd.f32 %v3135, %v3147
    %v3149 = vpop.f32.mrf.mxu0
    %3150 = vdwg.mxu0
    %3151 = vmatpush.bf16.msra.mxu0 %v3026
    %3152 = vmatpush.bf16.msra.mxu0 %v3022
    %3153 = vmatpush.bf16.msra.mxu0 %v3018
    %3154 = vmatpush.bf16.msra.mxu0 %v3014
    %3155 = vmatpush.bf16.msra.mxu0 %v3010
    %3156 = vmatpush.bf16.msra.mxu0 %v3006
    %3157 = vmatpush.bf16.msra.mxu0 %v3002
    %3158 = vmatpush.bf16.msra.mxu0 %v2998
    %3159 = vmatmul.bf16.gmra.mxu0 %v2803
    %v3160 = vpop.f32.mrf.mxu0
    %v3161 = vadd.f32 0.0, %v3160
    %v3162 = vpop.f32.mrf.mxu0
    %3163 = vdwg.mxu0
    %3164 = vmatpush.bf16.msra.mxu0 %v3058
    %3165 = vmatpush.bf16.msra.mxu0 %v3054
    %3166 = vmatpush.bf16.msra.mxu0 %v3050
    %3167 = vmatpush.bf16.msra.mxu0 %v3046
    %3168 = vmatpush.bf16.msra.mxu0 %v3042
    %3169 = vmatpush.bf16.msra.mxu0 %v3038
    %3170 = vmatpush.bf16.msra.mxu0 %v3034
    %3171 = vmatpush.bf16.msra.mxu0 %v3030
    %3172 = vmatmul.bf16.gmra.mxu0 %v2804
    %v3173 = vpop.f32.mrf.mxu0
    %v3174 = vadd.f32 %v3161, %v3173
    %v3175 = vpop.f32.mrf.mxu0
    %3176 = vdwg.mxu0
    %3177 = vmatpush.bf16.msra.mxu0 %v3027
    %3178 = vmatpush.bf16.msra.mxu0 %v3023
    %3179 = vmatpush.bf16.msra.mxu0 %v3019
    %3180 = vmatpush.bf16.msra.mxu0 %v3015
    %3181 = vmatpush.bf16.msra.mxu0 %v3011
    %3182 = vmatpush.bf16.msra.mxu0 %v3007
    %3183 = vmatpush.bf16.msra.mxu0 %v3003
    %3184 = vmatpush.bf16.msra.mxu0 %v2999
    %3185 = vmatmul.bf16.gmra.mxu0 %v2803
    %v3186 = vpop.f32.mrf.mxu0
    %v3187 = vadd.f32 0.0, %v3186
    %v3188 = vpop.f32.mrf.mxu0
    %3189 = vdwg.mxu0
    %3190 = vmatpush.bf16.msra.mxu0 %v3059
    %3191 = vmatpush.bf16.msra.mxu0 %v3055
    %3192 = vmatpush.bf16.msra.mxu0 %v3051
    %3193 = vmatpush.bf16.msra.mxu0 %v3047
    %3194 = vmatpush.bf16.msra.mxu0 %v3043
    %3195 = vmatpush.bf16.msra.mxu0 %v3039
    %3196 = vmatpush.bf16.msra.mxu0 %v3035
    %3197 = vmatpush.bf16.msra.mxu0 %v3031
    %3198 = vmatmul.bf16.gmra.mxu0 %v2804
    %v3199 = vpop.f32.mrf.mxu0
    %v3200 = vadd.f32 %v3187, %v3199
    %v3201 = vpop.f32.mrf.mxu0
    %3202 = vdwg.mxu0
    %3203 = vmatpush.bf16.msra.mxu0 %v3028
    %3204 = vmatpush.bf16.msra.mxu0 %v3024
    %3205 = vmatpush.bf16.msra.mxu0 %v3020
    %3206 = vmatpush.bf16.msra.mxu0 %v3016
    %3207 = vmatpush.bf16.msra.mxu0 %v3012
    %3208 = vmatpush.bf16.msra.mxu0 %v3008
    %3209 = vmatpush.bf16.msra.mxu0 %v3004
    %3210 = vmatpush.bf16.msra.mxu0 %v3000
    %3211 = vmatmul.bf16.gmra.mxu0 %v2803
    %v3212 = vpop.f32.mrf.mxu0
    %v3213 = vadd.f32 0.0, %v3212
    %v3214 = vpop.f32.mrf.mxu0
    %3215 = vdwg.mxu0
    %3216 = vmatpush.bf16.msra.mxu0 %v3060
    %3217 = vmatpush.bf16.msra.mxu0 %v3056
    %3218 = vmatpush.bf16.msra.mxu0 %v3052
    %3219 = vmatpush.bf16.msra.mxu0 %v3048
    %3220 = vmatpush.bf16.msra.mxu0 %v3044
    %3221 = vmatpush.bf16.msra.mxu0 %v3040
    %3222 = vmatpush.bf16.msra.mxu0 %v3036
    %3223 = vmatpush.bf16.msra.mxu0 %v3032
    %3224 = vmatmul.bf16.gmra.mxu0 %v2804
    %v3225 = vpop.f32.mrf.mxu0
    %v3226 = vadd.f32 %v3213, %v3225
    %v3227 = vpop.f32.mrf.mxu0
    %3228 = vdwg.mxu0
    %v3229 = vsel %vm1273, %v3148, 0.0
    %v3230 = vrot.slane %v3229, 4
    %v3231 = vadd.f32 %v3229, %v3230
    %v3232 = vrot.slane %v3231, 2
    %v3233 = vadd.f32 %v3231, %v3232
    %v3234 = vrot.slane %v3233, 1
    %v3235 = vadd.f32 %v3233, %v3234
    %v3236 = vsel %vm1273, %v3174, 0.0
    %v3237 = vrot.slane %v3236, 4
    %v3238 = vadd.f32 %v3236, %v3237
    %v3239 = vrot.slane %v3238, 2
    %v3240 = vadd.f32 %v3238, %v3239
    %v3241 = vrot.slane %v3240, 1
    %v3242 = vadd.f32 %v3240, %v3241
    %v3243 = vsel %vm1273, %v3200, 0.0
    %v3244 = vrot.slane %v3243, 4
    %v3245 = vadd.f32 %v3243, %v3244
    %v3246 = vrot.slane %v3245, 2
    %v3247 = vadd.f32 %v3245, %v3246
    %v3248 = vrot.slane %v3247, 1
    %v3249 = vadd.f32 %v3247, %v3248
    %v3250 = vsel %vm1273, %v3226, 0.0
    %v3251 = vrot.slane %v3250, 4
    %v3252 = vadd.f32 %v3250, %v3251
    %v3253 = vrot.slane %v3252, 2
    %v3254 = vadd.f32 %v3252, %v3253
    %v3255 = vrot.slane %v3254, 1
    %v3256 = vadd.f32 %v3254, %v3255
    %v3257 = vmul.f32 %v3235, %v1308
    %v3258 = vmul.f32 %v3242, %v1308
    %v3259 = vmul.f32 %v3249, %v1308
    %v3260 = vmul.f32 %v3256, %v1308
    %v3261 = vsub.f32 %v3148, %v3257
    %v3262 = vsub.f32 %v3174, %v3258
    %v3263 = vsub.f32 %v3200, %v3259
    %v3264 = vsub.f32 %v3226, %v3260
    %v3265 = vmul.f32 %v3261, %v3261
    %v3266 = vmul.f32 %v3262, %v3262
    %v3267 = vmul.f32 %v3263, %v3263
    %v3268 = vmul.f32 %v3264, %v3264
    %v3269 = vsel %vm1273, %v3265, 0.0
    %v3270 = vrot.slane %v3269, 4
    %v3271 = vadd.f32 %v3269, %v3270
    %v3272 = vrot.slane %v3271, 2
    %v3273 = vadd.f32 %v3271, %v3272
    %v3274 = vrot.slane %v3273, 1
    %v3275 = vadd.f32 %v3273, %v3274
    %v3276 = vsel %vm1273, %v3266, 0.0
    %v3277 = vrot.slane %v3276, 4
    %v3278 = vadd.f32 %v3276, %v3277
    %v3279 = vrot.slane %v3278, 2
    %v3280 = vadd.f32 %v3278, %v3279
    %v3281 = vrot.slane %v3280, 1
    %v3282 = vadd.f32 %v3280, %v3281
    %v3283 = vsel %vm1273, %v3267, 0.0
    %v3284 = vrot.slane %v3283, 4
    %v3285 = vadd.f32 %v3283, %v3284
    %v3286 = vrot.slane %v3285, 2
    %v3287 = vadd.f32 %v3285, %v3286
    %v3288 = vrot.slane %v3287, 1
    %v3289 = vadd.f32 %v3287, %v3288
    %v3290 = vsel %vm1273, %v3268, 0.0
    %v3291 = vrot.slane %v3290, 4
    %v3292 = vadd.f32 %v3290, %v3291
    %v3293 = vrot.slane %v3292, 2
    %v3294 = vadd.f32 %v3292, %v3293
    %v3295 = vrot.slane %v3294, 1
    %v3296 = vadd.f32 %v3294, %v3295
    %v3297 = vmul.f32 %v3275, %v1308
    %v3298 = vmul.f32 %v3282, %v1308
    %v3299 = vmul.f32 %v3289, %v1308
    %v3300 = vmul.f32 %v3296, %v1308
    %v3301 = vadd.f32 %v3297, 1e-05
    %v3302 = vadd.f32 %v3298, 1e-05
    %v3303 = vadd.f32 %v3299, 1e-05
    %v3304 = vadd.f32 %v3300, 1e-05
    %v3305 = vrsqrt.pop %v3301
    %v3306 = vmul.f32 %v3305, %v3301
    %v3307 = vmul.f32 %v3306, %v3305
    %v3308 = vmul.f32 0.5, %v3307
    %v3309 = vsub.f32 1.5, %v3308
    %v3310 = vmul.f32 %v3305, %v3309
    %vm3311 = vweird.f32 %v3301
    %vm3312 = vweird.f32 %v3305
    %vm3313 = vmor %vm3311, %vm3312
    %v3314 = vsel %vm3313, %v3305, %v3310
    %v3315 = vrsqrt.pop %v3302
    %v3316 = vmul.f32 %v3315, %v3302
    %v3317 = vmul.f32 %v3316, %v3315
    %v3318 = vmul.f32 0.5, %v3317
    %v3319 = vsub.f32 1.5, %v3318
    %v3320 = vmul.f32 %v3315, %v3319
    %vm3321 = vweird.f32 %v3302
    %vm3322 = vweird.f32 %v3315
    %vm3323 = vmor %vm3321, %vm3322
    %v3324 = vsel %vm3323, %v3315, %v3320
    %v3325 = vrsqrt.pop %v3303
    %v3326 = vmul.f32 %v3325, %v3303
    %v3327 = vmul.f32 %v3326, %v3325
    %v3328 = vmul.f32 0.5, %v3327
    %v3329 = vsub.f32 1.5, %v3328
    %v3330 = vmul.f32 %v3325, %v3329
    %vm3331 = vweird.f32 %v3303
    %vm3332 = vweird.f32 %v3325
    %vm3333 = vmor %vm3331, %vm3332
    %v3334 = vsel %vm3333, %v3325, %v3330
    %v3335 = vrsqrt.pop %v3304
    %v3336 = vmul.f32 %v3335, %v3304
    %v3337 = vmul.f32 %v3336, %v3335
    %v3338 = vmul.f32 0.5, %v3337
    %v3339 = vsub.f32 1.5, %v3338
    %v3340 = vmul.f32 %v3335, %v3339
    %vm3341 = vweird.f32 %v3304
    %vm3342 = vweird.f32 %v3335
    %vm3343 = vmor %vm3341, %vm3342
    %v3344 = vsel %vm3343, %v3335, %v3340
    %v3345 = vmul.f32 %v3261, %v3314
    %v3346 = vmul.f32 %v3262, %v3324
    %v3347 = vmul.f32 %v3263, %v3334
    %v3348 = vmul.f32 %v3264, %v3344
    %v3349 = vld [vmem:[#allocation7 + $0x18] sm:$0xf]
    %v3351 = vperm.slane %v3349, 0
    %v3352 = vperm.slane %v3349, 1
    %v3353 = vperm.slane %v3349, 2
    %v3354 = vperm.slane %v3349, 3
    %v3359 = vmul.f32 %v3345, %v3351
    %v3360 = vmul.f32 %v3346, %v3352
    %v3361 = vmul.f32 %v3347, %v3353
    %v3362 = vmul.f32 %v3348, %v3354
    %v3363 = vld [vmem:[#allocation7 + $0x1c] sm:$0xf]
    %v3365 = vperm.slane %v3363, 0
    %v3366 = vperm.slane %v3363, 1
    %v3367 = vperm.slane %v3363, 2
    %v3368 = vperm.slane %v3363, 3
    %v3373 = vadd.f32 %v3359, %v3365
    %v3374 = vadd.f32 %v3360, %v3366
    %v3375 = vadd.f32 %v3361, %v3367
    %v3376 = vadd.f32 %v3362, %v3368
    %vm3377 = vcmp.ge.f32.partialorder %v3373, 0.0
    %vm3378 = vcmp.ge.f32.partialorder %v3374, 0.0
    %vm3379 = vcmp.ge.f32.partialorder %v3375, 0.0
    %vm3380 = vcmp.ge.f32.partialorder %v3376, 0.0
    %v3381 = vmul.f32 %v3373, 0.01
    %v3382 = vmul.f32 %v3374, 0.01
    %v3383 = vmul.f32 %v3375, 0.01
    %v3384 = vmul.f32 %v3376, 0.01
    %v3385 = vsel %vm3377, %v3373, %v3381
    %v3386 = vsel %vm3378, %v3374, %v3382
    %v3387 = vsel %vm3379, %v3375, %v3383
    %v3388 = vsel %vm3380, %v3376, %v3384
    %v3389 = vld [vmem:[#allocation6] sm:$0xff]
    %v3390 = vld [vmem:[#allocation6 + $0x8] sm:$0xff]
    %v3391 = vld [vmem:[#allocation6 + $0x10] sm:$0xf]
    %v3392 = vld [vmem:[#allocation6 + $0x14] sm:$0xff]
    %v3393 = vld [vmem:[#allocation6 + $0x1c] sm:$0xff]
    %v3394 = vld [vmem:[#allocation6 + $0x24] sm:$0xf]
    %v3395 = vld [vmem:[#allocation6 + $0x28] sm:$0xff]
    %v3396 = vld [vmem:[#allocation6 + $0x30] sm:$0xff]
    %v3397 = vld [vmem:[#allocation6 + $0x38] sm:$0xf]
    %v3398 = vld [vmem:[#allocation6 + $0x3c] sm:$0xff]
    %v3399 = vld [vmem:[#allocation6 + $0x44] sm:$0xff]
    %v3400 = vld [vmem:[#allocation6 + $0x4c] sm:$0xf]
    %v3401 = vld [vmem:[#allocation6 + $0x50] sm:$0xff]
    %v3402 = vld [vmem:[#allocation6 + $0x58] sm:$0xff]
    %v3403 = vld [vmem:[#allocation6 + $0x60] sm:$0xf]
    %v3404 = vld [vmem:[#allocation6 + $0x64] sm:$0xff]
    %v3405 = vld [vmem:[#allocation6 + $0x6c] sm:$0xff]
    %v3406 = vld [vmem:[#allocation6 + $0x74] sm:$0xf]
    %v3407 = vld [vmem:[#allocation6 + $0x78] sm:$0xff]
    %v3408 = vld [vmem:[#allocation6 + $0x80] sm:$0xff]
    %v3409 = vld [vmem:[#allocation6 + $0x88] sm:$0xf]
    %v3410 = vld [vmem:[#allocation6 + $0x8c] sm:$0xff]
    %v3411 = vld [vmem:[#allocation6 + $0x94] sm:$0xff]
    %v3412 = vld [vmem:[#allocation6 + $0x9c] sm:$0xf]
    %v3413 = vld [vmem:[#allocation6 + $0xa0] sm:$0xff]
    %v3414 = vld [vmem:[#allocation6 + $0xa8] sm:$0xff]
    %v3415 = vld [vmem:[#allocation6 + $0xb0] sm:$0xf]
    %v3416 = vld [vmem:[#allocation6 + $0xb4] sm:$0xff]
    %v3417 = vld [vmem:[#allocation6 + $0xbc] sm:$0xff]
    %v3418 = vld [vmem:[#allocation6 + $0xc4] sm:$0xf]
    %v3419 = vld [vmem:[#allocation6 + $0xc8] sm:$0xff]
    %v3420 = vld [vmem:[#allocation6 + $0xd0] sm:$0xff]
    %v3421 = vld [vmem:[#allocation6 + $0xd8] sm:$0xf]
    %v3422 = vld [vmem:[#allocation6 + $0xdc] sm:$0xff]
    %v3423 = vld [vmem:[#allocation6 + $0xe4] sm:$0xff]
    %v3424 = vld [vmem:[#allocation6 + $0xec] sm:$0xf]
    %v3425 = vld [vmem:[#allocation6 + $0xf0] sm:$0xff]
    %v3426 = vld [vmem:[#allocation6 + $0xf8] sm:$0xff]
    %v3427 = vld [vmem:[#allocation6 + $0x100] sm:$0xf]
    %v3428 = vld [vmem:[#allocation6 + $0x104] sm:$0xff]
    %v3429 = vld [vmem:[#allocation6 + $0x10c] sm:$0xff]
    %v3430 = vld [vmem:[#allocation6 + $0x114] sm:$0xf]
    %v3431 = vld [vmem:[#allocation6 + $0x118] sm:$0xff]
    %v3432 = vld [vmem:[#allocation6 + $0x120] sm:$0xff]
    %v3433 = vld [vmem:[#allocation6 + $0x128] sm:$0xf]
    %v3434 = vld [vmem:[#allocation6 + $0x12c] sm:$0xff]
    %v3435 = vld [vmem:[#allocation6 + $0x134] sm:$0xff]
    %v3436 = vld [vmem:[#allocation6 + $0x13c] sm:$0xf]
    %v3437 = vld [vmem:[#allocation6 + $0x140] sm:$0xff]
    %v3438 = vld [vmem:[#allocation6 + $0x148] sm:$0xff]
    %v3439 = vld [vmem:[#allocation6 + $0x150] sm:$0xf]
    %v3440 = vld [vmem:[#allocation6 + $0x154] sm:$0xff]
    %v3441 = vld [vmem:[#allocation6 + $0x15c] sm:$0xff]
    %v3442 = vld [vmem:[#allocation6 + $0x164] sm:$0xf]
    %v3443 = vld [vmem:[#allocation6 + $0x168] sm:$0xff]
    %v3444 = vld [vmem:[#allocation6 + $0x170] sm:$0xff]
    %v3445 = vld [vmem:[#allocation6 + $0x178] sm:$0xf]
    %v3446 = vld [vmem:[#allocation6 + $0x17c] sm:$0xff]
    %v3447 = vld [vmem:[#allocation6 + $0x184] sm:$0xff]
    %v3448 = vld [vmem:[#allocation6 + $0x18c] sm:$0xf]
    %v3449 = vld [vmem:[#allocation6 + $0x190] sm:$0xff]
    %v3450 = vld [vmem:[#allocation6 + $0x198] sm:$0xff]
    %v3451 = vld [vmem:[#allocation6 + $0x1a0] sm:$0xf]
    %v3452 = vld [vmem:[#allocation6 + $0x1a4] sm:$0xff]
    %v3453 = vld [vmem:[#allocation6 + $0x1ac] sm:$0xff]
    %v3454 = vld [vmem:[#allocation6 + $0x1b4] sm:$0xf]
    %v3455 = vld [vmem:[#allocation6 + $0x1b8] sm:$0xff]
    %v3456 = vld [vmem:[#allocation6 + $0x1c0] sm:$0xff]
    %v3457 = vld [vmem:[#allocation6 + $0x1c8] sm:$0xf]
    %v3458 = vld [vmem:[#allocation6 + $0x1cc] sm:$0xff]
    %v3459 = vld [vmem:[#allocation6 + $0x1d4] sm:$0xff]
    %v3460 = vld [vmem:[#allocation6 + $0x1dc] sm:$0xf]
    %v3461 = vld [vmem:[#allocation6 + $0x1e0] sm:$0xff]
    %v3462 = vld [vmem:[#allocation6 + $0x1e8] sm:$0xff]
    %v3463 = vld [vmem:[#allocation6 + $0x1f0] sm:$0xf]
    %v3464 = vld [vmem:[#allocation6 + $0x1f4] sm:$0xff]
    %v3465 = vld [vmem:[#allocation6 + $0x1fc] sm:$0xff]
    %v3466 = vld [vmem:[#allocation6 + $0x204] sm:$0xf]
    %v3467 = vld [vmem:[#allocation6 + $0x208] sm:$0xff]
    %v3468 = vld [vmem:[#allocation6 + $0x210] sm:$0xff]
    %v3469 = vld [vmem:[#allocation6 + $0x218] sm:$0xf]
    %v3470 = vld [vmem:[#allocation6 + $0x21c] sm:$0xff]
    %v3471 = vld [vmem:[#allocation6 + $0x224] sm:$0xff]
    %v3472 = vld [vmem:[#allocation6 + $0x22c] sm:$0xf]
    %v3473 = vld [vmem:[#allocation6 + $0x230] sm:$0xff]
    %v3474 = vld [vmem:[#allocation6 + $0x238] sm:$0xff]
    %v3475 = vld [vmem:[#allocation6 + $0x240] sm:$0xf]
    %v3476 = vld [vmem:[#allocation6 + $0x244] sm:$0xff]
    %v3477 = vld [vmem:[#allocation6 + $0x24c] sm:$0xff]
    %v3478 = vld [vmem:[#allocation6 + $0x254] sm:$0xf]
    %v3479 = vld [vmem:[#allocation6 + $0x258] sm:$0xff]
    %v3480 = vld [vmem:[#allocation6 + $0x260] sm:$0xff]
    %v3481 = vld [vmem:[#allocation6 + $0x268] sm:$0xf]
    %v3482 = vld [vmem:[#allocation6 + $0x26c] sm:$0xff]
    %v3483 = vld [vmem:[#allocation6 + $0x274] sm:$0xff]
    %v3484 = vld [vmem:[#allocation6 + $0x27c] sm:$0xf]
    %v3485 = vld [vmem:[#allocation6 + $0x280] sm:$0xff]
    %v3486 = vld [vmem:[#allocation6 + $0x288] sm:$0xff]
    %v3487 = vld [vmem:[#allocation6 + $0x290] sm:$0xf]
    %v3488 = vld [vmem:[#allocation6 + $0x294] sm:$0xff]
    %v3489 = vld [vmem:[#allocation6 + $0x29c] sm:$0xff]
    %v3490 = vld [vmem:[#allocation6 + $0x2a4] sm:$0xf]
    %v3491 = vld [vmem:[#allocation6 + $0x2a8] sm:$0xff]
    %v3492 = vld [vmem:[#allocation6 + $0x2b0] sm:$0xff]
    %v3493 = vld [vmem:[#allocation6 + $0x2b8] sm:$0xf]
    %v3494 = vld [vmem:[#allocation6 + $0x2bc] sm:$0xff]
    %v3495 = vld [vmem:[#allocation6 + $0x2c4] sm:$0xff]
    %v3496 = vld [vmem:[#allocation6 + $0x2cc] sm:$0xf]
    %v3497 = vld [vmem:[#allocation6 + $0x2d0] sm:$0xff]
    %v3498 = vld [vmem:[#allocation6 + $0x2d8] sm:$0xff]
    %v3499 = vld [vmem:[#allocation6 + $0x2e0] sm:$0xf]
    %v3500 = vld [vmem:[#allocation6 + $0x2e4] sm:$0xff]
    %v3501 = vld [vmem:[#allocation6 + $0x2ec] sm:$0xff]
    %v3502 = vld [vmem:[#allocation6 + $0x2f4] sm:$0xf]
    %v3503 = vld [vmem:[#allocation6 + $0x2f8] sm:$0xff]
    %v3504 = vld [vmem:[#allocation6 + $0x300] sm:$0xff]
    %v3505 = vld [vmem:[#allocation6 + $0x308] sm:$0xf]
    %v3506 = vld [vmem:[#allocation6 + $0x30c] sm:$0xff]
    %v3507 = vld [vmem:[#allocation6 + $0x314] sm:$0xff]
    %v3508 = vld [vmem:[#allocation6 + $0x31c] sm:$0xf]
    %v3509 = vld [vmem:[#allocation6 + $0x320] sm:$0xff]
    %v3510 = vld [vmem:[#allocation6 + $0x328] sm:$0xff]
    %v3511 = vld [vmem:[#allocation6 + $0x330] sm:$0xf]
    %v3512 = vld [vmem:[#allocation6 + $0x334] sm:$0xff]
    %v3513 = vld [vmem:[#allocation6 + $0x33c] sm:$0xff]
    %v3514 = vld [vmem:[#allocation6 + $0x344] sm:$0xf]
    %v3515 = vld [vmem:[#allocation6 + $0x348] sm:$0xff]
    %v3516 = vld [vmem:[#allocation6 + $0x350] sm:$0xff]
    %v3517 = vld [vmem:[#allocation6 + $0x358] sm:$0xf]
    %v3518 = vld [vmem:[#allocation6 + $0x35c] sm:$0xff]
    %v3519 = vld [vmem:[#allocation6 + $0x364] sm:$0xff]
    %v3520 = vld [vmem:[#allocation6 + $0x36c] sm:$0xf]
    %v3521 = vld [vmem:[#allocation6 + $0x370] sm:$0xff]
    %v3522 = vld [vmem:[#allocation6 + $0x378] sm:$0xff]
    %v3523 = vld [vmem:[#allocation6 + $0x380] sm:$0xf]
    %v3524 = vld [vmem:[#allocation6 + $0x384] sm:$0xff]
    %v3525 = vld [vmem:[#allocation6 + $0x38c] sm:$0xff]
    %v3526 = vld [vmem:[#allocation6 + $0x394] sm:$0xf]
    %v3527 = vld [vmem:[#allocation6 + $0x398] sm:$0xff]
    %v3528 = vld [vmem:[#allocation6 + $0x3a0] sm:$0xff]
    %v3529 = vld [vmem:[#allocation6 + $0x3a8] sm:$0xf]
    %v3530 = vld [vmem:[#allocation6 + $0x3ac] sm:$0xff]
    %v3531 = vld [vmem:[#allocation6 + $0x3b4] sm:$0xff]
    %v3532 = vld [vmem:[#allocation6 + $0x3bc] sm:$0xf]
    %v3533 = vld [vmem:[#allocation6 + $0x3c0] sm:$0xff]
    %v3534 = vld [vmem:[#allocation6 + $0x3c8] sm:$0xff]
    %v3535 = vld [vmem:[#allocation6 + $0x3d0] sm:$0xf]
    %v3536 = vld [vmem:[#allocation6 + $0x3d4] sm:$0xff]
    %v3537 = vld [vmem:[#allocation6 + $0x3dc] sm:$0xff]
    %v3538 = vld [vmem:[#allocation6 + $0x3e4] sm:$0xf]
    %v3539 = vld [vmem:[#allocation6 + $0x3e8] sm:$0xff]
    %v3540 = vld [vmem:[#allocation6 + $0x3f0] sm:$0xff]
    %v3541 = vld [vmem:[#allocation6 + $0x3f8] sm:$0xf]
    %v3542 = vld [vmem:[#allocation6 + $0x3fc] sm:$0xff]
    %v3543 = vld [vmem:[#allocation6 + $0x404] sm:$0xff]
    %v3544 = vld [vmem:[#allocation6 + $0x40c] sm:$0xf]
    %v3545 = vld [vmem:[#allocation6 + $0x410] sm:$0xff]
    %v3546 = vld [vmem:[#allocation6 + $0x418] sm:$0xff]
    %v3547 = vld [vmem:[#allocation6 + $0x420] sm:$0xf]
    %v3548 = vld [vmem:[#allocation6 + $0x424] sm:$0xff]
    %v3549 = vld [vmem:[#allocation6 + $0x42c] sm:$0xff]
    %v3550 = vld [vmem:[#allocation6 + $0x434] sm:$0xf]
    %v3551 = vld [vmem:[#allocation6 + $0x438] sm:$0xff]
    %v3552 = vld [vmem:[#allocation6 + $0x440] sm:$0xff]
    %v3553 = vld [vmem:[#allocation6 + $0x448] sm:$0xf]
    %v3554 = vld [vmem:[#allocation6 + $0x44c] sm:$0xff]
    %v3555 = vld [vmem:[#allocation6 + $0x454] sm:$0xff]
    %v3556 = vld [vmem:[#allocation6 + $0x45c] sm:$0xf]
    %v3557 = vld [vmem:[#allocation6 + $0x460] sm:$0xff]
    %v3558 = vld [vmem:[#allocation6 + $0x468] sm:$0xff]
    %v3559 = vld [vmem:[#allocation6 + $0x470] sm:$0xf]
    %v3560 = vld [vmem:[#allocation6 + $0x474] sm:$0xff]
    %v3561 = vld [vmem:[#allocation6 + $0x47c] sm:$0xff]
    %v3562 = vld [vmem:[#allocation6 + $0x484] sm:$0xf]
    %v3563 = vld [vmem:[#allocation6 + $0x488] sm:$0xff]
    %v3564 = vld [vmem:[#allocation6 + $0x490] sm:$0xff]
    %v3565 = vld [vmem:[#allocation6 + $0x498] sm:$0xf]
    %v3566 = vld [vmem:[#allocation6 + $0x49c] sm:$0xff]
    %v3567 = vld [vmem:[#allocation6 + $0x4a4] sm:$0xff]
    %v3568 = vld [vmem:[#allocation6 + $0x4ac] sm:$0xf]
    %v3569 = vld [vmem:[#allocation6 + $0x4b0] sm:$0xff]
    %v3570 = vld [vmem:[#allocation6 + $0x4b8] sm:$0xff]
    %v3571 = vld [vmem:[#allocation6 + $0x4c0] sm:$0xf]
    %v3572 = vld [vmem:[#allocation6 + $0x4c4] sm:$0xff]
    %v3573 = vld [vmem:[#allocation6 + $0x4cc] sm:$0xff]
    %v3574 = vld [vmem:[#allocation6 + $0x4d4] sm:$0xf]
    %v3575 = vld [vmem:[#allocation6 + $0x4d8] sm:$0xff]
    %v3576 = vld [vmem:[#allocation6 + $0x4e0] sm:$0xff]
    %v3577 = vld [vmem:[#allocation6 + $0x4e8] sm:$0xf]
    %v3578 = vld [vmem:[#allocation6 + $0x4ec] sm:$0xff]
    %v3579 = vld [vmem:[#allocation6 + $0x4f4] sm:$0xff]
    %v3580 = vld [vmem:[#allocation6 + $0x4fc] sm:$0xf]
    %v3581 = vpack.c.bf16 %v3385, %v3385
    %v3582 = vpack.c.bf16 %v3386, %v3386
    %v3583 = vpack.c.bf16 %v3387, %v3387
    %v3584 = vpack.c.bf16 %v3388, %v3388
    %v3585 = vld [vmem:[#allocation7 + $0x20] sm:$0x1f]
    %v3587 = vperm.slane %v3585, 0
    %v3588 = vperm.slane %v3585, 1
    %v3589 = vperm.slane %v3585, 2
    %v3590 = vperm.slane %v3585, 3
    %v3591 = vperm.slane %v3585, 4
    %v3789 = vunpack.c.l.b16 %v3389
    %v3790 = vunpack.c.h.b16 %v3389
    %v3791 = vunpack.c.l.b16 %v3390
    %v3792 = vunpack.c.h.b16 %v3390
    %v3793 = vunpack.c.l.b16 %v3391
    %v3794 = vunpack.c.l.b16 %v3392
    %v3795 = vunpack.c.h.b16 %v3392
    %v3796 = vunpack.c.l.b16 %v3393
    %v3797 = vunpack.c.h.b16 %v3393
    %v3798 = vunpack.c.l.b16 %v3394
    %v3799 = vunpack.c.l.b16 %v3395
    %v3800 = vunpack.c.h.b16 %v3395
    %v3801 = vunpack.c.l.b16 %v3396
    %v3802 = vunpack.c.h.b16 %v3396
    %v3803 = vunpack.c.l.b16 %v3397
    %v3804 = vunpack.c.l.b16 %v3398
    %v3805 = vunpack.c.h.b16 %v3398
    %v3806 = vunpack.c.l.b16 %v3399
    %v3807 = vunpack.c.h.b16 %v3399
    %v3808 = vunpack.c.l.b16 %v3400
    %v3809 = vunpack.c.l.b16 %v3401
    %v3810 = vunpack.c.h.b16 %v3401
    %v3811 = vunpack.c.l.b16 %v3402
    %v3812 = vunpack.c.h.b16 %v3402
    %v3813 = vunpack.c.l.b16 %v3403
    %v3814 = vunpack.c.l.b16 %v3404
    %v3815 = vunpack.c.h.b16 %v3404
    %v3816 = vunpack.c.l.b16 %v3405
    %v3817 = vunpack.c.h.b16 %v3405
    %v3818 = vunpack.c.l.b16 %v3406
    %v3819 = vunpack.c.l.b16 %v3407
    %v3820 = vunpack.c.h.b16 %v3407
    %v3821 = vunpack.c.l.b16 %v3408
    %v3822 = vunpack.c.h.b16 %v3408
    %v3823 = vunpack.c.l.b16 %v3409
    %v3824 = vunpack.c.l.b16 %v3410
    %v3825 = vunpack.c.h.b16 %v3410
    %v3826 = vunpack.c.l.b16 %v3411
    %v3827 = vunpack.c.h.b16 %v3411
    %v3828 = vunpack.c.l.b16 %v3412
    %v3829 = vunpack.c.l.b16 %v3413
    %v3830 = vunpack.c.h.b16 %v3413
    %v3831 = vunpack.c.l.b16 %v3414
    %v3832 = vunpack.c.h.b16 %v3414
    %v3833 = vunpack.c.l.b16 %v3415
    %v3834 = vunpack.c.l.b16 %v3416
    %v3835 = vunpack.c.h.b16 %v3416
    %v3836 = vunpack.c.l.b16 %v3417
    %v3837 = vunpack.c.h.b16 %v3417
    %v3838 = vunpack.c.l.b16 %v3418
    %v3839 = vunpack.c.l.b16 %v3419
    %v3840 = vunpack.c.h.b16 %v3419
    %v3841 = vunpack.c.l.b16 %v3420
    %v3842 = vunpack.c.h.b16 %v3420
    %v3843 = vunpack.c.l.b16 %v3421
    %v3844 = vunpack.c.l.b16 %v3422
    %v3845 = vunpack.c.h.b16 %v3422
    %v3846 = vunpack.c.l.b16 %v3423
    %v3847 = vunpack.c.h.b16 %v3423
    %v3848 = vunpack.c.l.b16 %v3424
    %v3849 = vunpack.c.l.b16 %v3425
    %v3850 = vunpack.c.h.b16 %v3425
    %v3851 = vunpack.c.l.b16 %v3426
    %v3852 = vunpack.c.h.b16 %v3426
    %v3853 = vunpack.c.l.b16 %v3427
    %v3854 = vunpack.c.l.b16 %v3428
    %v3855 = vunpack.c.h.b16 %v3428
    %v3856 = vunpack.c.l.b16 %v3429
    %v3857 = vunpack.c.h.b16 %v3429
    %v3858 = vunpack.c.l.b16 %v3430
    %v3859 = vunpack.c.l.b16 %v3431
    %v3860 = vunpack.c.h.b16 %v3431
    %v3861 = vunpack.c.l.b16 %v3432
    %v3862 = vunpack.c.h.b16 %v3432
    %v3863 = vunpack.c.l.b16 %v3433
    %v3864 = vunpack.c.l.b16 %v3434
    %v3865 = vunpack.c.h.b16 %v3434
    %v3866 = vunpack.c.l.b16 %v3435
    %v3867 = vunpack.c.h.b16 %v3435
    %v3868 = vunpack.c.l.b16 %v3436
    %v3869 = vunpack.c.l.b16 %v3437
    %v3870 = vunpack.c.h.b16 %v3437
    %v3871 = vunpack.c.l.b16 %v3438
    %v3872 = vunpack.c.h.b16 %v3438
    %v3873 = vunpack.c.l.b16 %v3439
    %v3874 = vunpack.c.l.b16 %v3440
    %v3875 = vunpack.c.h.b16 %v3440
    %v3876 = vunpack.c.l.b16 %v3441
    %v3877 = vunpack.c.h.b16 %v3441
    %v3878 = vunpack.c.l.b16 %v3442
    %v3879 = vunpack.c.l.b16 %v3443
    %v3880 = vunpack.c.h.b16 %v3443
    %v3881 = vunpack.c.l.b16 %v3444
    %v3882 = vunpack.c.h.b16 %v3444
    %v3883 = vunpack.c.l.b16 %v3445
    %v3884 = vunpack.c.l.b16 %v3446
    %v3885 = vunpack.c.h.b16 %v3446
    %v3886 = vunpack.c.l.b16 %v3447
    %v3887 = vunpack.c.h.b16 %v3447
    %v3888 = vunpack.c.l.b16 %v3448
    %v3889 = vunpack.c.l.b16 %v3449
    %v3890 = vunpack.c.h.b16 %v3449
    %v3891 = vunpack.c.l.b16 %v3450
    %v3892 = vunpack.c.h.b16 %v3450
    %v3893 = vunpack.c.l.b16 %v3451
    %v3894 = vunpack.c.l.b16 %v3452
    %v3895 = vunpack.c.h.b16 %v3452
    %v3896 = vunpack.c.l.b16 %v3453
    %v3897 = vunpack.c.h.b16 %v3453
    %v3898 = vunpack.c.l.b16 %v3454
    %v3899 = vunpack.c.l.b16 %v3455
    %v3900 = vunpack.c.h.b16 %v3455
    %v3901 = vunpack.c.l.b16 %v3456
    %v3902 = vunpack.c.h.b16 %v3456
    %v3903 = vunpack.c.l.b16 %v3457
    %v3904 = vunpack.c.l.b16 %v3458
    %v3905 = vunpack.c.h.b16 %v3458
    %v3906 = vunpack.c.l.b16 %v3459
    %v3907 = vunpack.c.h.b16 %v3459
    %v3908 = vunpack.c.l.b16 %v3460
    %v3909 = vunpack.c.l.b16 %v3461
    %v3910 = vunpack.c.h.b16 %v3461
    %v3911 = vunpack.c.l.b16 %v3462
    %v3912 = vunpack.c.h.b16 %v3462
    %v3913 = vunpack.c.l.b16 %v3463
    %v3914 = vunpack.c.l.b16 %v3464
    %v3915 = vunpack.c.h.b16 %v3464
    %v3916 = vunpack.c.l.b16 %v3465
    %v3917 = vunpack.c.h.b16 %v3465
    %v3918 = vunpack.c.l.b16 %v3466
    %v3919 = vunpack.c.l.b16 %v3467
    %v3920 = vunpack.c.h.b16 %v3467
    %v3921 = vunpack.c.l.b16 %v3468
    %v3922 = vunpack.c.h.b16 %v3468
    %v3923 = vunpack.c.l.b16 %v3469
    %v3924 = vunpack.c.l.b16 %v3470
    %v3925 = vunpack.c.h.b16 %v3470
    %v3926 = vunpack.c.l.b16 %v3471
    %v3927 = vunpack.c.h.b16 %v3471
    %v3928 = vunpack.c.l.b16 %v3472
    %v3929 = vunpack.c.l.b16 %v3473
    %v3930 = vunpack.c.h.b16 %v3473
    %v3931 = vunpack.c.l.b16 %v3474
    %v3932 = vunpack.c.h.b16 %v3474
    %v3933 = vunpack.c.l.b16 %v3475
    %v3934 = vunpack.c.l.b16 %v3476
    %v3935 = vunpack.c.h.b16 %v3476
    %v3936 = vunpack.c.l.b16 %v3477
    %v3937 = vunpack.c.h.b16 %v3477
    %v3938 = vunpack.c.l.b16 %v3478
    %v3939 = vunpack.c.l.b16 %v3479
    %v3940 = vunpack.c.h.b16 %v3479
    %v3941 = vunpack.c.l.b16 %v3480
    %v3942 = vunpack.c.h.b16 %v3480
    %v3943 = vunpack.c.l.b16 %v3481
    %v3944 = vunpack.c.l.b16 %v3482
    %v3945 = vunpack.c.h.b16 %v3482
    %v3946 = vunpack.c.l.b16 %v3483
    %v3947 = vunpack.c.h.b16 %v3483
    %v3948 = vunpack.c.l.b16 %v3484
    %v3949 = vunpack.c.l.b16 %v3485
    %v3950 = vunpack.c.h.b16 %v3485
    %v3951 = vunpack.c.l.b16 %v3486
    %v3952 = vunpack.c.h.b16 %v3486
    %v3953 = vunpack.c.l.b16 %v3487
    %v3954 = vunpack.c.l.b16 %v3488
    %v3955 = vunpack.c.h.b16 %v3488
    %v3956 = vunpack.c.l.b16 %v3489
    %v3957 = vunpack.c.h.b16 %v3489
    %v3958 = vunpack.c.l.b16 %v3490
    %v3959 = vunpack.c.l.b16 %v3491
    %v3960 = vunpack.c.h.b16 %v3491
    %v3961 = vunpack.c.l.b16 %v3492
    %v3962 = vunpack.c.h.b16 %v3492
    %v3963 = vunpack.c.l.b16 %v3493
    %v3964 = vunpack.c.l.b16 %v3494
    %v3965 = vunpack.c.h.b16 %v3494
    %v3966 = vunpack.c.l.b16 %v3495
    %v3967 = vunpack.c.h.b16 %v3495
    %v3968 = vunpack.c.l.b16 %v3496
    %v3969 = vunpack.c.l.b16 %v3497
    %v3970 = vunpack.c.h.b16 %v3497
    %v3971 = vunpack.c.l.b16 %v3498
    %v3972 = vunpack.c.h.b16 %v3498
    %v3973 = vunpack.c.l.b16 %v3499
    %v3974 = vunpack.c.l.b16 %v3500
    %v3975 = vunpack.c.h.b16 %v3500
    %v3976 = vunpack.c.l.b16 %v3501
    %v3977 = vunpack.c.h.b16 %v3501
    %v3978 = vunpack.c.l.b16 %v3502
    %v3979 = vunpack.c.l.b16 %v3503
    %v3980 = vunpack.c.h.b16 %v3503
    %v3981 = vunpack.c.l.b16 %v3504
    %v3982 = vunpack.c.h.b16 %v3504
    %v3983 = vunpack.c.l.b16 %v3505
    %v3984 = vunpack.c.l.b16 %v3506
    %v3985 = vunpack.c.h.b16 %v3506
    %v3986 = vunpack.c.l.b16 %v3507
    %v3987 = vunpack.c.h.b16 %v3507
    %v3988 = vunpack.c.l.b16 %v3508
    %v3989 = vunpack.c.l.b16 %v3509
    %v3990 = vunpack.c.h.b16 %v3509
    %v3991 = vunpack.c.l.b16 %v3510
    %v3992 = vunpack.c.h.b16 %v3510
    %v3993 = vunpack.c.l.b16 %v3511
    %v3994 = vunpack.c.l.b16 %v3512
    %v3995 = vunpack.c.h.b16 %v3512
    %v3996 = vunpack.c.l.b16 %v3513
    %v3997 = vunpack.c.h.b16 %v3513
    %v3998 = vunpack.c.l.b16 %v3514
    %v3999 = vunpack.c.l.b16 %v3515
    %v4000 = vunpack.c.h.b16 %v3515
    %v4001 = vunpack.c.l.b16 %v3516
    %v4002 = vunpack.c.h.b16 %v3516
    %v4003 = vunpack.c.l.b16 %v3517
    %v4004 = vunpack.c.l.b16 %v3518
    %v4005 = vunpack.c.h.b16 %v3518
    %v4006 = vunpack.c.l.b16 %v3519
    %v4007 = vunpack.c.h.b16 %v3519
    %v4008 = vunpack.c.l.b16 %v3520
    %v4009 = vunpack.c.l.b16 %v3521
    %v4010 = vunpack.c.h.b16 %v3521
    %v4011 = vunpack.c.l.b16 %v3522
    %v4012 = vunpack.c.h.b16 %v3522
    %v4013 = vunpack.c.l.b16 %v3523
    %v4014 = vunpack.c.l.b16 %v3524
    %v4015 = vunpack.c.h.b16 %v3524
    %v4016 = vunpack.c.l.b16 %v3525
    %v4017 = vunpack.c.h.b16 %v3525
    %v4018 = vunpack.c.l.b16 %v3526
    %v4019 = vunpack.c.l.b16 %v3527
    %v4020 = vunpack.c.h.b16 %v3527
    %v4021 = vunpack.c.l.b16 %v3528
    %v4022 = vunpack.c.h.b16 %v3528
    %v4023 = vunpack.c.l.b16 %v3529
    %v4024 = vunpack.c.l.b16 %v3530
    %v4025 = vunpack.c.h.b16 %v3530
    %v4026 = vunpack.c.l.b16 %v3531
    %v4027 = vunpack.c.h.b16 %v3531
    %v4028 = vunpack.c.l.b16 %v3532
    %v4029 = vunpack.c.l.b16 %v3533
    %v4030 = vunpack.c.h.b16 %v3533
    %v4031 = vunpack.c.l.b16 %v3534
    %v4032 = vunpack.c.h.b16 %v3534
    %v4033 = vunpack.c.l.b16 %v3535
    %v4034 = vunpack.c.l.b16 %v3536
    %v4035 = vunpack.c.h.b16 %v3536
    %v4036 = vunpack.c.l.b16 %v3537
    %v4037 = vunpack.c.h.b16 %v3537
    %v4038 = vunpack.c.l.b16 %v3538
    %v4039 = vunpack.c.l.b16 %v3539
    %v4040 = vunpack.c.h.b16 %v3539
    %v4041 = vunpack.c.l.b16 %v3540
    %v4042 = vunpack.c.h.b16 %v3540
    %v4043 = vunpack.c.l.b16 %v3541
    %v4044 = vunpack.c.l.b16 %v3542
    %v4045 = vunpack.c.h.b16 %v3542
    %v4046 = vunpack.c.l.b16 %v3543
    %v4047 = vunpack.c.h.b16 %v3543
    %v4048 = vunpack.c.l.b16 %v3544
    %v4049 = vunpack.c.l.b16 %v3545
    %v4050 = vunpack.c.h.b16 %v3545
    %v4051 = vunpack.c.l.b16 %v3546
    %v4052 = vunpack.c.h.b16 %v3546
    %v4053 = vunpack.c.l.b16 %v3547
    %v4054 = vunpack.c.l.b16 %v3548
    %v4055 = vunpack.c.h.b16 %v3548
    %v4056 = vunpack.c.l.b16 %v3549
    %v4057 = vunpack.c.h.b16 %v3549
    %v4058 = vunpack.c.l.b16 %v3550
    %v4059 = vunpack.c.l.b16 %v3551
    %v4060 = vunpack.c.h.b16 %v3551
    %v4061 = vunpack.c.l.b16 %v3552
    %v4062 = vunpack.c.h.b16 %v3552
    %v4063 = vunpack.c.l.b16 %v3553
    %v4064 = vunpack.c.l.b16 %v3554
    %v4065 = vunpack.c.h.b16 %v3554
    %v4066 = vunpack.c.l.b16 %v3555
    %v4067 = vunpack.c.h.b16 %v3555
    %v4068 = vunpack.c.l.b16 %v3556
    %v4069 = vunpack.c.l.b16 %v3557
    %v4070 = vunpack.c.h.b16 %v3557
    %v4071 = vunpack.c.l.b16 %v3558
    %v4072 = vunpack.c.h.b16 %v3558
    %v4073 = vunpack.c.l.b16 %v3559
    %v4074 = vunpack.c.l.b16 %v3560
    %v4075 = vunpack.c.h.b16 %v3560
    %v4076 = vunpack.c.l.b16 %v3561
    %v4077 = vunpack.c.h.b16 %v3561
    %v4078 = vunpack.c.l.b16 %v3562
    %v4079 = vunpack.c.l.b16 %v3563
    %v4080 = vunpack.c.h.b16 %v3563
    %v4081 = vunpack.c.l.b16 %v3564
    %v4082 = vunpack.c.h.b16 %v3564
    %v4083 = vunpack.c.l.b16 %v3565
    %v4084 = vunpack.c.l.b16 %v3566
    %v4085 = vunpack.c.h.b16 %v3566
    %v4086 = vunpack.c.l.b16 %v3567
    %v4087 = vunpack.c.h.b16 %v3567
    %v4088 = vunpack.c.l.b16 %v3568
    %v4089 = vunpack.c.l.b16 %v3569
    %v4090 = vunpack.c.h.b16 %v3569
    %v4091 = vunpack.c.l.b16 %v3570
    %v4092 = vunpack.c.h.b16 %v3570
    %v4093 = vunpack.c.l.b16 %v3571
    %v4094 = vunpack.c.l.b16 %v3572
    %v4095 = vunpack.c.h.b16 %v3572
    %v4096 = vunpack.c.l.b16 %v3573
    %v4097 = vunpack.c.h.b16 %v3573
    %v4098 = vunpack.c.l.b16 %v3574
    %v4099 = vunpack.c.l.b16 %v3575
    %v4100 = vunpack.c.h.b16 %v3575
    %v4101 = vunpack.c.l.b16 %v3576
    %v4102 = vunpack.c.h.b16 %v3576
    %v4103 = vunpack.c.l.b16 %v3577
    %v4104 = vunpack.c.l.b16 %v3578
    %v4105 = vunpack.c.h.b16 %v3578
    %v4106 = vunpack.c.l.b16 %v3579
    %v4107 = vunpack.c.h.b16 %v3579
    %v4108 = vunpack.c.l.b16 %v3580
    %v4109 = vpack.c.b16 %v3794, %v3789
    %v4110 = vpack.c.b16 %v3795, %v3790
    %v4111 = vpack.c.b16 %v3796, %v3791
    %v4112 = vpack.c.b16 %v3797, %v3792
    %v4113 = vpack.c.b16 %v3798, %v3793
    %v4114 = vpack.c.b16 %v3804, %v3799
    %v4115 = vpack.c.b16 %v3805, %v3800
    %v4116 = vpack.c.b16 %v3806, %v3801
    %v4117 = vpack.c.b16 %v3807, %v3802
    %v4118 = vpack.c.b16 %v3808, %v3803
    %v4119 = vpack.c.b16 %v3814, %v3809
    %v4120 = vpack.c.b16 %v3815, %v3810
    %v4121 = vpack.c.b16 %v3816, %v3811
    %v4122 = vpack.c.b16 %v3817, %v3812
    %v4123 = vpack.c.b16 %v3818, %v3813
    %v4124 = vpack.c.b16 %v3824, %v3819
    %v4125 = vpack.c.b16 %v3825, %v3820
    %v4126 = vpack.c.b16 %v3826, %v3821
    %v4127 = vpack.c.b16 %v3827, %v3822
    %v4128 = vpack.c.b16 %v3828, %v3823
    %v4129 = vpack.c.b16 %v3834, %v3829
    %v4130 = vpack.c.b16 %v3835, %v3830
    %v4131 = vpack.c.b16 %v3836, %v3831
    %v4132 = vpack.c.b16 %v3837, %v3832
    %v4133 = vpack.c.b16 %v3838, %v3833
    %v4134 = vpack.c.b16 %v3844, %v3839
    %v4135 = vpack.c.b16 %v3845, %v3840
    %v4136 = vpack.c.b16 %v3846, %v3841
    %v4137 = vpack.c.b16 %v3847, %v3842
    %v4138 = vpack.c.b16 %v3848, %v3843
    %v4139 = vpack.c.b16 %v3854, %v3849
    %v4140 = vpack.c.b16 %v3855, %v3850
    %v4141 = vpack.c.b16 %v3856, %v3851
    %v4142 = vpack.c.b16 %v3857, %v3852
    %v4143 = vpack.c.b16 %v3858, %v3853
    %v4144 = vpack.c.b16 %v3864, %v3859
    %v4145 = vpack.c.b16 %v3865, %v3860
    %v4146 = vpack.c.b16 %v3866, %v3861
    %v4147 = vpack.c.b16 %v3867, %v3862
    %v4148 = vpack.c.b16 %v3868, %v3863
    %v4149 = vpack.c.b16 %v3874, %v3869
    %v4150 = vpack.c.b16 %v3875, %v3870
    %v4151 = vpack.c.b16 %v3876, %v3871
    %v4152 = vpack.c.b16 %v3877, %v3872
    %v4153 = vpack.c.b16 %v3878, %v3873
    %v4154 = vpack.c.b16 %v3884, %v3879
    %v4155 = vpack.c.b16 %v3885, %v3880
    %v4156 = vpack.c.b16 %v3886, %v3881
    %v4157 = vpack.c.b16 %v3887, %v3882
    %v4158 = vpack.c.b16 %v3888, %v3883
    %v4159 = vpack.c.b16 %v3894, %v3889
    %v4160 = vpack.c.b16 %v3895, %v3890
    %v4161 = vpack.c.b16 %v3896, %v3891
    %v4162 = vpack.c.b16 %v3897, %v3892
    %v4163 = vpack.c.b16 %v3898, %v3893
    %v4164 = vpack.c.b16 %v3904, %v3899
    %v4165 = vpack.c.b16 %v3905, %v3900
    %v4166 = vpack.c.b16 %v3906, %v3901
    %v4167 = vpack.c.b16 %v3907, %v3902
    %v4168 = vpack.c.b16 %v3908, %v3903
    %v4169 = vpack.c.b16 %v3914, %v3909
    %v4170 = vpack.c.b16 %v3915, %v3910
    %v4171 = vpack.c.b16 %v3916, %v3911
    %v4172 = vpack.c.b16 %v3917, %v3912
    %v4173 = vpack.c.b16 %v3918, %v3913
    %v4174 = vpack.c.b16 %v3924, %v3919
    %v4175 = vpack.c.b16 %v3925, %v3920
    %v4176 = vpack.c.b16 %v3926, %v3921
    %v4177 = vpack.c.b16 %v3927, %v3922
    %v4178 = vpack.c.b16 %v3928, %v3923
    %v4179 = vpack.c.b16 %v3934, %v3929
    %v4180 = vpack.c.b16 %v3935, %v3930
    %v4181 = vpack.c.b16 %v3936, %v3931
    %v4182 = vpack.c.b16 %v3937, %v3932
    %v4183 = vpack.c.b16 %v3938, %v3933
    %v4184 = vpack.c.b16 %v3944, %v3939
    %v4185 = vpack.c.b16 %v3945, %v3940
    %v4186 = vpack.c.b16 %v3946, %v3941
    %v4187 = vpack.c.b16 %v3947, %v3942
    %v4188 = vpack.c.b16 %v3948, %v3943
    %v4189 = vpack.c.b16 %v3954, %v3949
    %v4190 = vpack.c.b16 %v3955, %v3950
    %v4191 = vpack.c.b16 %v3956, %v3951
    %v4192 = vpack.c.b16 %v3957, %v3952
    %v4193 = vpack.c.b16 %v3958, %v3953
    %v4194 = vpack.c.b16 %v3964, %v3959
    %v4195 = vpack.c.b16 %v3965, %v3960
    %v4196 = vpack.c.b16 %v3966, %v3961
    %v4197 = vpack.c.b16 %v3967, %v3962
    %v4198 = vpack.c.b16 %v3968, %v3963
    %v4199 = vpack.c.b16 %v3974, %v3969
    %v4200 = vpack.c.b16 %v3975, %v3970
    %v4201 = vpack.c.b16 %v3976, %v3971
    %v4202 = vpack.c.b16 %v3977, %v3972
    %v4203 = vpack.c.b16 %v3978, %v3973
    %v4204 = vpack.c.b16 %v3984, %v3979
    %v4205 = vpack.c.b16 %v3985, %v3980
    %v4206 = vpack.c.b16 %v3986, %v3981
    %v4207 = vpack.c.b16 %v3987, %v3982
    %v4208 = vpack.c.b16 %v3988, %v3983
    %v4209 = vpack.c.b16 %v3994, %v3989
    %v4210 = vpack.c.b16 %v3995, %v3990
    %v4211 = vpack.c.b16 %v3996, %v3991
    %v4212 = vpack.c.b16 %v3997, %v3992
    %v4213 = vpack.c.b16 %v3998, %v3993
    %v4214 = vpack.c.b16 %v4004, %v3999
    %v4215 = vpack.c.b16 %v4005, %v4000
    %v4216 = vpack.c.b16 %v4006, %v4001
    %v4217 = vpack.c.b16 %v4007, %v4002
    %v4218 = vpack.c.b16 %v4008, %v4003
    %v4219 = vpack.c.b16 %v4014, %v4009
    %v4220 = vpack.c.b16 %v4015, %v4010
    %v4221 = vpack.c.b16 %v4016, %v4011
    %v4222 = vpack.c.b16 %v4017, %v4012
    %v4223 = vpack.c.b16 %v4018, %v4013
    %v4224 = vpack.c.b16 %v4024, %v4019
    %v4225 = vpack.c.b16 %v4025, %v4020
    %v4226 = vpack.c.b16 %v4026, %v4021
    %v4227 = vpack.c.b16 %v4027, %v4022
    %v4228 = vpack.c.b16 %v4028, %v4023
    %v4229 = vpack.c.b16 %v4034, %v4029
    %v4230 = vpack.c.b16 %v4035, %v4030
    %v4231 = vpack.c.b16 %v4036, %v4031
    %v4232 = vpack.c.b16 %v4037, %v4032
    %v4233 = vpack.c.b16 %v4038, %v4033
    %v4234 = vpack.c.b16 %v4044, %v4039
    %v4235 = vpack.c.b16 %v4045, %v4040
    %v4236 = vpack.c.b16 %v4046, %v4041
    %v4237 = vpack.c.b16 %v4047, %v4042
    %v4238 = vpack.c.b16 %v4048, %v4043
    %v4239 = vpack.c.b16 %v4054, %v4049
    %v4240 = vpack.c.b16 %v4055, %v4050
    %v4241 = vpack.c.b16 %v4056, %v4051
    %v4242 = vpack.c.b16 %v4057, %v4052
    %v4243 = vpack.c.b16 %v4058, %v4053
    %v4244 = vpack.c.b16 %v4064, %v4059
    %v4245 = vpack.c.b16 %v4065, %v4060
    %v4246 = vpack.c.b16 %v4066, %v4061
    %v4247 = vpack.c.b16 %v4067, %v4062
    %v4248 = vpack.c.b16 %v4068, %v4063
    %v4249 = vpack.c.b16 %v4074, %v4069
    %v4250 = vpack.c.b16 %v4075, %v4070
    %v4251 = vpack.c.b16 %v4076, %v4071
    %v4252 = vpack.c.b16 %v4077, %v4072
    %v4253 = vpack.c.b16 %v4078, %v4073
    %v4254 = vpack.c.b16 %v4084, %v4079
    %v4255 = vpack.c.b16 %v4085, %v4080
    %v4256 = vpack.c.b16 %v4086, %v4081
    %v4257 = vpack.c.b16 %v4087, %v4082
    %v4258 = vpack.c.b16 %v4088, %v4083
    %v4259 = vpack.c.b16 %v4094, %v4089
    %v4260 = vpack.c.b16 %v4095, %v4090
    %v4261 = vpack.c.b16 %v4096, %v4091
    %v4262 = vpack.c.b16 %v4097, %v4092
    %v4263 = vpack.c.b16 %v4098, %v4093
    %v4264 = vpack.c.b16 %v4104, %v4099
    %v4265 = vpack.c.b16 %v4105, %v4100
    %v4266 = vpack.c.b16 %v4106, %v4101
    %v4267 = vpack.c.b16 %v4107, %v4102
    %v4268 = vpack.c.b16 %v4108, %v4103
    %4429 = vmatpush.bf16.msra.mxu0 %v4144
    %4430 = vmatpush.bf16.msra.mxu0 %v4139
    %4431 = vmatpush.bf16.msra.mxu0 %v4134
    %4432 = vmatpush.bf16.msra.mxu0 %v4129
    %4433 = vmatpush.bf16.msra.mxu0 %v4124
    %4434 = vmatpush.bf16.msra.mxu0 %v4119
    %4435 = vmatpush.bf16.msra.mxu0 %v4114
    %4436 = vmatpush.bf16.msra.mxu0 %v4109
    %4437 = vmatmul.bf16.gmra.mxu0 %v3581
    %v4438 = vpop.f32.mrf.mxu0
    %v4439 = vadd.f32 %v3587, %v4438
    %v4440 = vpop.f32.mrf.mxu0
    %4441 = vdwg.mxu0
    %4442 = vmatpush.bf16.msra.mxu0 %v4184
    %4443 = vmatpush.bf16.msra.mxu0 %v4179
    %4444 = vmatpush.bf16.msra.mxu0 %v4174
    %4445 = vmatpush.bf16.msra.mxu0 %v4169
    %4446 = vmatpush.bf16.msra.mxu0 %v4164
    %4447 = vmatpush.bf16.msra.mxu0 %v4159
    %4448 = vmatpush.bf16.msra.mxu0 %v4154
    %4449 = vmatpush.bf16.msra.mxu0 %v4149
    %4450 = vmatmul.bf16.gmra.mxu0 %v3582
    %v4451 = vpop.f32.mrf.mxu0
    %v4452 = vadd.f32 %v4439, %v4451
    %v4453 = vpop.f32.mrf.mxu0
    %4454 = vdwg.mxu0
    %4455 = vmatpush.bf16.msra.mxu0 %v4224
    %4456 = vmatpush.bf16.msra.mxu0 %v4219
    %4457 = vmatpush.bf16.msra.mxu0 %v4214
    %4458 = vmatpush.bf16.msra.mxu0 %v4209
    %4459 = vmatpush.bf16.msra.mxu0 %v4204
    %4460 = vmatpush.bf16.msra.mxu0 %v4199
    %4461 = vmatpush.bf16.msra.mxu0 %v4194
    %4462 = vmatpush.bf16.msra.mxu0 %v4189
    %4463 = vmatmul.bf16.gmra.mxu0 %v3583
    %v4464 = vpop.f32.mrf.mxu0
    %v4465 = vadd.f32 %v4452, %v4464
    %v4466 = vpop.f32.mrf.mxu0
    %4467 = vdwg.mxu0
    %4468 = vmatpush.bf16.msra.mxu0 %v4264
    %4469 = vmatpush.bf16.msra.mxu0 %v4259
    %4470 = vmatpush.bf16.msra.mxu0 %v4254
    %4471 = vmatpush.bf16.msra.mxu0 %v4249
    %4472 = vmatpush.bf16.msra.mxu0 %v4244
    %4473 = vmatpush.bf16.msra.mxu0 %v4239
    %4474 = vmatpush.bf16.msra.mxu0 %v4234
    %4475 = vmatpush.bf16.msra.mxu0 %v4229
    %4476 = vmatmul.bf16.gmra.mxu0 %v3584
    %v4477 = vpop.f32.mrf.mxu0
    %v4478 = vadd.f32 %v4465, %v4477
    %v4479 = vpop.f32.mrf.mxu0
    %4480 = vdwg.mxu0
    %4481 = vmatpush.bf16.msra.mxu0 %v4145
    %4482 = vmatpush.bf16.msra.mxu0 %v4140
    %4483 = vmatpush.bf16.msra.mxu0 %v4135
    %4484 = vmatpush.bf16.msra.mxu0 %v4130
    %4485 = vmatpush.bf16.msra.mxu0 %v4125
    %4486 = vmatpush.bf16.msra.mxu0 %v4120
    %4487 = vmatpush.bf16.msra.mxu0 %v4115
    %4488 = vmatpush.bf16.msra.mxu0 %v4110
    %4489 = vmatmul.bf16.gmra.mxu0 %v3581
    %v4490 = vpop.f32.mrf.mxu0
    %v4491 = vadd.f32 %v3588, %v4490
    %v4492 = vpop.f32.mrf.mxu0
    %4493 = vdwg.mxu0
    %4494 = vmatpush.bf16.msra.mxu0 %v4185
    %4495 = vmatpush.bf16.msra.mxu0 %v4180
    %4496 = vmatpush.bf16.msra.mxu0 %v4175
    %4497 = vmatpush.bf16.msra.mxu0 %v4170
    %4498 = vmatpush.bf16.msra.mxu0 %v4165
    %4499 = vmatpush.bf16.msra.mxu0 %v4160
    %4500 = vmatpush.bf16.msra.mxu0 %v4155
    %4501 = vmatpush.bf16.msra.mxu0 %v4150
    %4502 = vmatmul.bf16.gmra.mxu0 %v3582
    %v4503 = vpop.f32.mrf.mxu0
    %v4504 = vadd.f32 %v4491, %v4503
    %v4505 = vpop.f32.mrf.mxu0
    %4506 = vdwg.mxu0
    %4507 = vmatpush.bf16.msra.mxu0 %v4225
    %4508 = vmatpush.bf16.msra.mxu0 %v4220
    %4509 = vmatpush.bf16.msra.mxu0 %v4215
    %4510 = vmatpush.bf16.msra.mxu0 %v4210
    %4511 = vmatpush.bf16.msra.mxu0 %v4205
    %4512 = vmatpush.bf16.msra.mxu0 %v4200
    %4513 = vmatpush.bf16.msra.mxu0 %v4195
    %4514 = vmatpush.bf16.msra.mxu0 %v4190
    %4515 = vmatmul.bf16.gmra.mxu0 %v3583
    %v4516 = vpop.f32.mrf.mxu0
    %v4517 = vadd.f32 %v4504, %v4516
    %v4518 = vpop.f32.mrf.mxu0
    %4519 = vdwg.mxu0
    %4520 = vmatpush.bf16.msra.mxu0 %v4265
    %4521 = vmatpush.bf16.msra.mxu0 %v4260
    %4522 = vmatpush.bf16.msra.mxu0 %v4255
    %4523 = vmatpush.bf16.msra.mxu0 %v4250
    %4524 = vmatpush.bf16.msra.mxu0 %v4245
    %4525 = vmatpush.bf16.msra.mxu0 %v4240
    %4526 = vmatpush.bf16.msra.mxu0 %v4235
    %4527 = vmatpush.bf16.msra.mxu0 %v4230
    %4528 = vmatmul.bf16.gmra.mxu0 %v3584
    %v4529 = vpop.f32.mrf.mxu0
    %v4530 = vadd.f32 %v4517, %v4529
    %v4531 = vpop.f32.mrf.mxu0
    %4532 = vdwg.mxu0
    %4533 = vmatpush.bf16.msra.mxu0 %v4146
    %4534 = vmatpush.bf16.msra.mxu0 %v4141
    %4535 = vmatpush.bf16.msra.mxu0 %v4136
    %4536 = vmatpush.bf16.msra.mxu0 %v4131
    %4537 = vmatpush.bf16.msra.mxu0 %v4126
    %4538 = vmatpush.bf16.msra.mxu0 %v4121
    %4539 = vmatpush.bf16.msra.mxu0 %v4116
    %4540 = vmatpush.bf16.msra.mxu0 %v4111
    %4541 = vmatmul.bf16.gmra.mxu0 %v3581
    %v4542 = vpop.f32.mrf.mxu0
    %v4543 = vadd.f32 %v3589, %v4542
    %v4544 = vpop.f32.mrf.mxu0
    %4545 = vdwg.mxu0
    %4546 = vmatpush.bf16.msra.mxu0 %v4186
    %4547 = vmatpush.bf16.msra.mxu0 %v4181
    %4548 = vmatpush.bf16.msra.mxu0 %v4176
    %4549 = vmatpush.bf16.msra.mxu0 %v4171
    %4550 = vmatpush.bf16.msra.mxu0 %v4166
    %4551 = vmatpush.bf16.msra.mxu0 %v4161
    %4552 = vmatpush.bf16.msra.mxu0 %v4156
    %4553 = vmatpush.bf16.msra.mxu0 %v4151
    %4554 = vmatmul.bf16.gmra.mxu0 %v3582
    %v4555 = vpop.f32.mrf.mxu0
    %v4556 = vadd.f32 %v4543, %v4555
    %v4557 = vpop.f32.mrf.mxu0
    %4558 = vdwg.mxu0
    %4559 = vmatpush.bf16.msra.mxu0 %v4226
    %4560 = vmatpush.bf16.msra.mxu0 %v4221
    %4561 = vmatpush.bf16.msra.mxu0 %v4216
    %4562 = vmatpush.bf16.msra.mxu0 %v4211
    %4563 = vmatpush.bf16.msra.mxu0 %v4206
    %4564 = vmatpush.bf16.msra.mxu0 %v4201
    %4565 = vmatpush.bf16.msra.mxu0 %v4196
    %4566 = vmatpush.bf16.msra.mxu0 %v4191
    %4567 = vmatmul.bf16.gmra.mxu0 %v3583
    %v4568 = vpop.f32.mrf.mxu0
    %v4569 = vadd.f32 %v4556, %v4568
    %v4570 = vpop.f32.mrf.mxu0
    %4571 = vdwg.mxu0
    %4572 = vmatpush.bf16.msra.mxu0 %v4266
    %4573 = vmatpush.bf16.msra.mxu0 %v4261
    %4574 = vmatpush.bf16.msra.mxu0 %v4256
    %4575 = vmatpush.bf16.msra.mxu0 %v4251
    %4576 = vmatpush.bf16.msra.mxu0 %v4246
    %4577 = vmatpush.bf16.msra.mxu0 %v4241
    %4578 = vmatpush.bf16.msra.mxu0 %v4236
    %4579 = vmatpush.bf16.msra.mxu0 %v4231
    %4580 = vmatmul.bf16.gmra.mxu0 %v3584
    %v4581 = vpop.f32.mrf.mxu0
    %v4582 = vadd.f32 %v4569, %v4581
    %v4583 = vpop.f32.mrf.mxu0
    %4584 = vdwg.mxu0
    %4585 = vmatpush.bf16.msra.mxu0 %v4147
    %4586 = vmatpush.bf16.msra.mxu0 %v4142
    %4587 = vmatpush.bf16.msra.mxu0 %v4137
    %4588 = vmatpush.bf16.msra.mxu0 %v4132
    %4589 = vmatpush.bf16.msra.mxu0 %v4127
    %4590 = vmatpush.bf16.msra.mxu0 %v4122
    %4591 = vmatpush.bf16.msra.mxu0 %v4117
    %4592 = vmatpush.bf16.msra.mxu0 %v4112
    %4593 = vmatmul.bf16.gmra.mxu0 %v3581
    %v4594 = vpop.f32.mrf.mxu0
    %v4595 = vadd.f32 %v3590, %v4594
    %v4596 = vpop.f32.mrf.mxu0
    %4597 = vdwg.mxu0
    %4598 = vmatpush.bf16.msra.mxu0 %v4187
    %4599 = vmatpush.bf16.msra.mxu0 %v4182
    %4600 = vmatpush.bf16.msra.mxu0 %v4177
    %4601 = vmatpush.bf16.msra.mxu0 %v4172
    %4602 = vmatpush.bf16.msra.mxu0 %v4167
    %4603 = vmatpush.bf16.msra.mxu0 %v4162
    %4604 = vmatpush.bf16.msra.mxu0 %v4157
    %4605 = vmatpush.bf16.msra.mxu0 %v4152
    %4606 = vmatmul.bf16.gmra.mxu0 %v3582
    %v4607 = vpop.f32.mrf.mxu0
    %v4608 = vadd.f32 %v4595, %v4607
    %v4609 = vpop.f32.mrf.mxu0
    %4610 = vdwg.mxu0
    %4611 = vmatpush.bf16.msra.mxu0 %v4227
    %4612 = vmatpush.bf16.msra.mxu0 %v4222
    %4613 = vmatpush.bf16.msra.mxu0 %v4217
    %4614 = vmatpush.bf16.msra.mxu0 %v4212
    %4615 = vmatpush.bf16.msra.mxu0 %v4207
    %4616 = vmatpush.bf16.msra.mxu0 %v4202
    %4617 = vmatpush.bf16.msra.mxu0 %v4197
    %4618 = vmatpush.bf16.msra.mxu0 %v4192
    %4619 = vmatmul.bf16.gmra.mxu0 %v3583
    %v4620 = vpop.f32.mrf.mxu0
    %v4621 = vadd.f32 %v4608, %v4620
    %v4622 = vpop.f32.mrf.mxu0
    %4623 = vdwg.mxu0
    %4624 = vmatpush.bf16.msra.mxu0 %v4267
    %4625 = vmatpush.bf16.msra.mxu0 %v4262
    %4626 = vmatpush.bf16.msra.mxu0 %v4257
    %4627 = vmatpush.bf16.msra.mxu0 %v4252
    %4628 = vmatpush.bf16.msra.mxu0 %v4247
    %4629 = vmatpush.bf16.msra.mxu0 %v4242
    %4630 = vmatpush.bf16.msra.mxu0 %v4237
    %4631 = vmatpush.bf16.msra.mxu0 %v4232
    %4632 = vmatmul.bf16.gmra.mxu0 %v3584
    %v4633 = vpop.f32.mrf.mxu0
    %v4634 = vadd.f32 %v4621, %v4633
    %v4635 = vpop.f32.mrf.mxu0
    %4636 = vdwg.mxu0
    %4637 = vmatpush.bf16.msra.mxu0 %v4148
    %4638 = vmatpush.bf16.msra.mxu0 %v4143
    %4639 = vmatpush.bf16.msra.mxu0 %v4138
    %4640 = vmatpush.bf16.msra.mxu0 %v4133
    %4641 = vmatpush.bf16.msra.mxu0 %v4128
    %4642 = vmatpush.bf16.msra.mxu0 %v4123
    %4643 = vmatpush.bf16.msra.mxu0 %v4118
    %4644 = vmatpush.bf16.msra.mxu0 %v4113
    %4645 = vmatmul.bf16.gmra.mxu0 %v3581
    %v4646 = vpop.f32.mrf.mxu0
    %v4647 = vadd.f32 %v3591, %v4646
    %v4648 = vpop.f32.mrf.mxu0
    %4649 = vdwg.mxu0
    %4650 = vmatpush.bf16.msra.mxu0 %v4188
    %4651 = vmatpush.bf16.msra.mxu0 %v4183
    %4652 = vmatpush.bf16.msra.mxu0 %v4178
    %4653 = vmatpush.bf16.msra.mxu0 %v4173
    %4654 = vmatpush.bf16.msra.mxu0 %v4168
    %4655 = vmatpush.bf16.msra.mxu0 %v4163
    %4656 = vmatpush.bf16.msra.mxu0 %v4158
    %4657 = vmatpush.bf16.msra.mxu0 %v4153
    %4658 = vmatmul.bf16.gmra.mxu0 %v3582
    %v4659 = vpop.f32.mrf.mxu0
    %v4660 = vadd.f32 %v4647, %v4659
    %v4661 = vpop.f32.mrf.mxu0
    %4662 = vdwg.mxu0
    %4663 = vmatpush.bf16.msra.mxu0 %v4228
    %4664 = vmatpush.bf16.msra.mxu0 %v4223
    %4665 = vmatpush.bf16.msra.mxu0 %v4218
    %4666 = vmatpush.bf16.msra.mxu0 %v4213
    %4667 = vmatpush.bf16.msra.mxu0 %v4208
    %4668 = vmatpush.bf16.msra.mxu0 %v4203
    %4669 = vmatpush.bf16.msra.mxu0 %v4198
    %4670 = vmatpush.bf16.msra.mxu0 %v4193
    %4671 = vmatmul.bf16.gmra.mxu0 %v3583
    %v4672 = vpop.f32.mrf.mxu0
    %v4673 = vadd.f32 %v4660, %v4672
    %v4674 = vpop.f32.mrf.mxu0
    %4675 = vdwg.mxu0
    %4676 = vmatpush.bf16.msra.mxu0 %v4268
    %4677 = vmatpush.bf16.msra.mxu0 %v4263
    %4678 = vmatpush.bf16.msra.mxu0 %v4258
    %4679 = vmatpush.bf16.msra.mxu0 %v4253
    %4680 = vmatpush.bf16.msra.mxu0 %v4248
    %4681 = vmatpush.bf16.msra.mxu0 %v4243
    %4682 = vmatpush.bf16.msra.mxu0 %v4238
    %4683 = vmatpush.bf16.msra.mxu0 %v4233
    %4684 = vmatmul.bf16.gmra.mxu0 %v3584
    %v4685 = vpop.f32.mrf.mxu0
    %v4686 = vadd.f32 %v4673, %v4685
    %v4687 = vpop.f32.mrf.mxu0
    %4688 = vdwg.mxu0
    %v4689 = vtanh.pop %v4478
    %v4690 = vtanh.pop %v4530
    %v4691 = vtanh.pop %v4582
    %v4692 = vtanh.pop %v4634
    %v4693 = vtanh.pop %v4686
    %v4698 = vrot.slane %v4690, 4
    %v4699 = vrot.slane %v4692, 4
    %v4700 = vsel %vm1273, %v4689, %v4698
    %v4701 = vsel %vm1273, %v4691, %v4699
    %4704 = vst [vmem:[%s6] sm:$0xff] %v4700
    %4705 = vst [vmem:[%s6 + $0x8] sm:$0xff] %v4701
    %4706 = vst [vmem:[%s6 + $0x10] sm:$0xf] %v4693
    // Predicated region
    $region38: #{vae_forward.1} parent=1 // pred_check
      _
    $region39: #{vae_forward.1} parent=1 // pred_check_branch
      %4708 = sbr.rel (0) target = $region41
    $region40: #{vae_forward.1} parent=1 // pred_region
      _
    $region41: #{vae_forward.1} parent=1 // pred_fallthru
      _
    // Predicated region
    $region42: #{vae_forward.1} parent=1 // pred_check
      _
    $region43: #{vae_forward.1} parent=1 // pred_check_branch
      %4710 = sbr.rel (0) target = $region45
    $region44: #{vae_forward.1} parent=1 // pred_region
      _
    $region45: #{vae_forward.1} parent=1 // pred_fallthru
      _
    // Predicated region
    $region46: #{vae_forward.1} parent=1 // pred_check
      _
    $region47: #{vae_forward.1} parent=1 // pred_check_branch
      %4712 = sbr.rel (0) target = $region49
    $region48: #{vae_forward.1} parent=1 // pred_region
      _
    $region49: #{vae_forward.1} parent=1 // pred_fallthru
      _
    // Predicated region
    $region50: #{vae_forward.1} parent=1 // pred_check
      _
    $region51: #{vae_forward.1} parent=1 // pred_check_branch
      %4714 = sbr.rel (0) target = $region53
    $region52: #{vae_forward.1} parent=1 // pred_region
      _
    $region53: #{vae_forward.1} parent=1 // pred_fallthru
      _
    %4715 = vsyncpa [#allocation3], 1
    %4716 = vsyncpa [#allocation5], 1
    %4717 = vsyncpa [#allocation8], 1

</llo_original>
